<compile_context>
chip_gen: v7x
topology: tpu7x:2x2x1
jax: 0.10.0
libtpu: 0.0.40
codegen_flags: <defaults>
</compile_context>

<pallas_src>
import functools

import jax
import jax.numpy as jnp
import numpy as np
from jax.experimental import pallas as pl
from jax.experimental.pallas import tpu as pltpu


# ----------------------------------------------------------------------------
# Kernel
# ----------------------------------------------------------------------------
def _lstm_kernel(x_ref, wih1_ref, whh1_ref, w2_ref, b1_ref, b2_ref,
                 wfc_ref, bfc_ref, out_ref,
                 h1_ref, c1_ref, h2_ref, c2_ref, *, unroll):
    """One (batch-block, time-tile) grid step of the fused LSTM+FC.

    x_ref   : (Tt, Bt, Dp)  raw input tile, time-major, compute dtype (bf16)
    wih1_ref: (Dp, 4H)      layer-1 input->gates  (gate order i,f,o,g)
    whh1_ref: (H, 4H)       layer-1 hidden->gates
    w2_ref  : (2H, 4H)      layer-2 stacked [Wih2; Whh2]
    b1_ref  : (1, 4H) f32   layer-1 combined bias
    b2_ref  : (1, 4H) f32   layer-2 combined bias
    wfc_ref : (H, C)        FC weights
    bfc_ref : (1, C) f32    FC bias
    out_ref : (Bt, C) f32   logits (written only on the last time tile)
    h*/c*   : (Bt, H) f32   VMEM scratch, persists across time tiles
    """
    t_idx = pl.program_id(1)
    t_tile, b_tile, _ = x_ref.shape
    H = whh1_ref.shape[0]

    # Reset recurrent state at the start of every batch block's time sweep.
    @pl.when(t_idx == 0)
    def _():
        h1_ref[...] = jnp.zeros_like(h1_ref)
        c1_ref[...] = jnp.zeros_like(c1_ref)
        h2_ref[...] = jnp.zeros_like(h2_ref)
        c2_ref[...] = jnp.zeros_like(c2_ref)

    # Hoist loop-invariant loads / broadcasts out of the unrolled step body
    # (JAX does not CSE broadcast_in_dim inside the loop).
    wih1 = wih1_ref[...]
    whh1 = whh1_ref[...]
    w2 = w2_ref[...]
    mm_dtype = wih1.dtype
    b1 = jnp.broadcast_to(b1_ref[...], (b_tile, 4 * H))
    b2 = jnp.broadcast_to(b2_ref[...], (b_tile, 4 * H))

    def gate_act(g):
        # Gate order (i, f, o, g): one sigmoid over the contiguous first 3H
        # columns, one tanh over the last H columns (half the EUP work of
        # running both nonlinearities full-width).
        sg = jax.nn.sigmoid(g[:, :3 * H])
        gg = jnp.tanh(g[:, 3 * H:])
        return sg[:, :H], sg[:, H:2 * H], sg[:, 2 * H:3 * H], gg

    def step(t, carry):
        h1, c1, h2, c2 = carry

        # ---- layer 1: fused input projection + recurrence (bias folded) ----
        x_t = x_ref[t]                                     # (Bt, Dp)
        g1 = (jnp.dot(x_t, wih1, preferred_element_type=jnp.float32)
              + jnp.dot(h1.astype(mm_dtype), whh1,
                        preferred_element_type=jnp.float32)
              + b1)
        i1, f1, o1, gg1 = gate_act(g1)
        c1 = f1 * c1 + i1 * gg1
        h1 = o1 * jnp.tanh(c1)

        # ---- layer 2: single stacked matmul [h1, h2] @ [[Wih2],[Whh2]] ----
        hcat = jnp.concatenate([h1, h2], axis=-1).astype(mm_dtype)  # (Bt, 2H)
        g2 = jnp.dot(hcat, w2, preferred_element_type=jnp.float32) + b2
        i2, f2, o2, gg2 = gate_act(g2)
        c2 = f2 * c2 + i2 * gg2
        h2 = o2 * jnp.tanh(c2)

        return (h1, c1, h2, c2)

    carry0 = (h1_ref[...], c1_ref[...], h2_ref[...], c2_ref[...])
    h1, c1, h2, c2 = jax.lax.fori_loop(0, t_tile, step, carry0, unroll=unroll)

    # Persist state for the next time tile.
    h1_ref[...] = h1
    c1_ref[...] = c1
    h2_ref[...] = h2
    c2_ref[...] = c2

    # ---- FC head on the final hidden state of layer 2 (== out[:, -1, :]) ----
    @pl.when(t_idx == pl.num_programs(1) - 1)
    def _():
        out_ref[...] = (jnp.dot(h2.astype(wfc_ref.dtype), wfc_ref[...],
                                preferred_element_type=jnp.float32)
                        + bfc_ref[...])


# ----------------------------------------------------------------------------
# Wrapper
# ----------------------------------------------------------------------------
def _largest_divisor(n, cap):
    for d in range(min(cap, n), 0, -1):
        if n % d == 0:
            return d
    return 1


@functools.partial(jax.jit, static_argnames=("t_tile", "b_tile"))
def lstm_forward(x_btd, packed, t_tile=32, b_tile=8):
    """x_btd: (B, T, D) batch-first, exactly like the PyTorch module."""
    B, T, D = x_btd.shape
    d_pad = packed["wih1"].shape[0]
    H = packed["whh1"].shape[0]
    C = packed["wfc"].shape[1]
    dtype = packed["wih1"].dtype

    # Time-major input stream (tiny: D features). Pad D to the packed width.
    x_tbd = jnp.transpose(x_btd, (1, 0, 2))
    x_tbd = jnp.pad(x_tbd, ((0, 0), (0, 0), (0, d_pad - D))).astype(dtype)

    tt = _largest_divisor(T, t_tile)
    bt = _largest_divisor(B, b_tile)
    grid = (B // bt, T // tt)

    kernel = functools.partial(_lstm_kernel, unroll=min(8, tt))

    return pl.pallas_call(
        kernel,
        out_shape=jax.ShapeDtypeStruct((B, C), jnp.float32),
        grid_spec=pltpu.PrefetchScalarGridSpec(
            num_scalar_prefetch=0,
            grid=grid,
            in_specs=[
                pl.BlockSpec((tt, bt, d_pad), lambda b, t: (t, b, 0)),
                pl.BlockSpec((d_pad, 4 * H), lambda b, t: (0, 0)),
                pl.BlockSpec((H, 4 * H), lambda b, t: (0, 0)),
                pl.BlockSpec((2 * H, 4 * H), lambda b, t: (0, 0)),
                pl.BlockSpec((1, 4 * H), lambda b, t: (0, 0)),
                pl.BlockSpec((1, 4 * H), lambda b, t: (0, 0)),
                pl.BlockSpec((H, C), lambda b, t: (0, 0)),
                pl.BlockSpec((1, C), lambda b, t: (0, 0)),
            ],
            out_specs=pl.BlockSpec((bt, C), lambda b, t: (b, 0)),
            scratch_shapes=[pltpu.VMEM((bt, H), jnp.float32)] * 4,
        ),
        compiler_params=pltpu.CompilerParams(
            dimension_semantics=("parallel", "arbitrary"),
            vmem_limit_bytes=64 * 1024 * 1024,
        ),
    )(x_tbd, packed["wih1"], packed["whh1"], packed["w2"],
      packed["b1"], packed["b2"], packed["wfc"], packed["bfc"])


# ----------------------------------------------------------------------------
# Parameter init (PyTorch layout) and kernel-layout packing
# ----------------------------------------------------------------------------
def init_params(key, input_size, hidden_size, num_layers, num_classes):
    k = 1.0 / np.sqrt(hidden_size)
    layers = []
    for l in range(num_layers):
        d_in = input_size if l == 0 else hidden_size
        key, k1, k2, k3, k4 = jax.random.split(key, 5)
        layers.append({
            "wih": jax.random.uniform(k1, (4 * hidden_size, d_in), jnp.float32, -k, k),
            "whh": jax.random.uniform(k2, (4 * hidden_size, hidden_size), jnp.float32, -k, k),
            "bih": jax.random.uniform(k3, (4 * hidden_size,), jnp.float32, -k, k),
            "bhh": jax.random.uniform(k4, (4 * hidden_size,), jnp.float32, -k, k),
        })
    key, k5, k6 = jax.random.split(key, 3)
    w_fc = jax.random.uniform(k5, (num_classes, hidden_size), jnp.float32, -k, k)
    b_fc = jax.random.uniform(k6, (num_classes,), jnp.float32, -k, k)
    return {"lstm": layers, "fc": {"w": w_fc, "b": b_fc}}


def pack_params(raw, compute_dtype=jnp.bfloat16):
    """Transpose, permute gate columns (i,f,g,o)->(i,f,o,g), stack layer-2
    weights, pad D to a multiple of 8, and cast matmul operands."""
    def permute(w_t):  # (d, 4H) column blocks i,f,g,o -> i,f,o,g
        i, f, g, o = jnp.split(w_t, 4, axis=-1)
        return jnp.concatenate([i, f, o, g], axis=-1)

    l1, l2 = raw["lstm"]
    wih1 = permute(l1["wih"].T)                       # (D, 4H)
    D = wih1.shape[0]
    d_pad = -(-D // 8) * 8
    wih1 = jnp.pad(wih1, ((0, d_pad - D), (0, 0)))
    whh1 = permute(l1["whh"].T)                       # (H, 4H)
    b1 = permute((l1["bih"] + l1["bhh"]).reshape(1, -1))
    w2 = jnp.concatenate([permute(l2["wih"].T), permute(l2["whh"].T)], axis=0)
    b2 = permute((l2["bih"] + l2["bhh"]).reshape(1, -1))
    return {
        "wih1": wih1.astype(compute_dtype),
        "whh1": whh1.astype(compute_dtype),
        "w2": w2.astype(compute_dtype),
        "b1": b1.astype(jnp.float32),
        "b2": b2.astype(jnp.float32),
        "wfc": raw["fc"]["w"].T.astype(compute_dtype),
        "bfc": raw["fc"]["b"].reshape(1, -1).astype(jnp.float32),
    }


# ----------------------------------------------------------------------------
# Pure-JAX f32 reference (PyTorch semantics) for correctness checking
# ----------------------------------------------------------------------------
def lstm_forward_ref(x_btd, raw):
    h = jnp.transpose(x_btd, (1, 0, 2)).astype(jnp.float32)
    for layer in raw["lstm"]:
        wih_t = layer["wih"].T
        whh_t = layer["whh"].T
        bias = layer["bih"] + layer["bhh"]
        H = whh_t.shape[0]
        B = h.shape[1]

        def step(carry, x_t, wih_t=wih_t, whh_t=whh_t, bias=bias, H=H):
            hp, cp = carry
            g = x_t @ wih_t + hp @ whh_t + bias
            i = jax.nn.sigmoid(g[:, 0 * H:1 * H])
            f = jax.nn.sigmoid(g[:, 1 * H:2 * H])
            gg = jnp.tanh(g[:, 2 * H:3 * H])
            o = jax.nn.sigmoid(g[:, 3 * H:4 * H])
            c = f * cp + i * gg
            hn = o * jnp.tanh(c)
            return (hn, c), hn

        init = (jnp.zeros((B, H), jnp.float32), jnp.zeros((B, H), jnp.float32))
        _, h = jax.lax.scan(step, init, h)
    return h[-1] @ raw["fc"]["w"].T + raw["fc"]["b"]


# ----------------------------------------------------------------------------
if __name__ == "__main__":
    input_size = 4
    hidden_size = 64
    num_layers = 2
    num_classes = 4
    batch = 8          # multiple of 8: fills vreg sublanes / MXU M dim
    seq = 16           # tiled as 2 time-tiles of 8 (exercises state carry)

    key = jax.random.PRNGKey(0)
    key, kx, kp = jax.random.split(key, 3)
    x = jax.random.normal(kx, (batch, seq, input_size), jnp.float32)
    raw = init_params(kp, input_size, hidden_size, num_layers, num_classes)

    ref = lstm_forward_ref(x, raw)

    # Strict semantic check with f32 storage.
    out_f32 = lstm_forward(x, pack_params(raw, jnp.float32), t_tile=8, b_tile=8)
    out_f32 = jax.block_until_ready(out_f32)
    np.testing.assert_allclose(np.asarray(out_f32), np.asarray(ref),
                               rtol=2e-4, atol=2e-4)

    # Production config: bf16 weights / matmul activations, f32 carries.
    out_bf16 = lstm_forward(x, pack_params(raw, jnp.bfloat16), t_tile=8, b_tile=8)
    out_bf16 = jax.block_until_ready(out_bf16)
    np.testing.assert_allclose(np.asarray(out_bf16), np.asarray(ref),
                               rtol=5e-2, atol=3e-2)

    assert out_bf16.shape == (batch, num_classes)
    print("KERNEL_OK")
</pallas_src>

<mosaic_0001>
module attributes {stable_mosaic.version = 11 : i64} {
  func.func @_lstm_kernel(%arg0: i32, %arg1: i32, %arg2: memref<8x8x8xf32, #tpu.memory_space<vmem>>, %arg3: memref<8x256xf32, #tpu.memory_space<vmem>>, %arg4: memref<64x256xf32, #tpu.memory_space<vmem>>, %arg5: memref<128x256xf32, #tpu.memory_space<vmem>>, %arg6: memref<1x256xf32, #tpu.memory_space<vmem>>, %arg7: memref<1x256xf32, #tpu.memory_space<vmem>>, %arg8: memref<64x4xf32, #tpu.memory_space<vmem>>, %arg9: memref<1x4xf32, #tpu.memory_space<vmem>>, %arg10: memref<8x4xf32, #tpu.memory_space<vmem>>, %arg11: memref<8x64xf32, #tpu.memory_space<vmem>>, %arg12: memref<8x64xf32, #tpu.memory_space<vmem>>, %arg13: memref<8x64xf32, #tpu.memory_space<vmem>>, %arg14: memref<8x64xf32, #tpu.memory_space<vmem>>) attributes {dimension_semantics = [#tpu.dimension_semantics<parallel>, #tpu.dimension_semantics<arbitrary>], iteration_bounds = array<i64: 1, 2>, scalar_prefetch = 0 : i64, scratch_operands = 4 : i64, tpu.core_type = #tpu.core_type<tc>, window_params = [{transform_indices = @transform_0, window_bounds = array<i64: 8, 8, 8>}, {pipeline_mode = #tpu.pipeline_mode<synchronous>, transform_indices = @transform_1, window_bounds = array<i64: 8, 256>}, {pipeline_mode = #tpu.pipeline_mode<synchronous>, transform_indices = @transform_2, window_bounds = array<i64: 64, 256>}, {pipeline_mode = #tpu.pipeline_mode<synchronous>, transform_indices = @transform_3, window_bounds = array<i64: 128, 256>}, {pipeline_mode = #tpu.pipeline_mode<synchronous>, transform_indices = @transform_4, window_bounds = array<i64: 1, 256>}, {pipeline_mode = #tpu.pipeline_mode<synchronous>, transform_indices = @transform_5, window_bounds = array<i64: 1, 256>}, {pipeline_mode = #tpu.pipeline_mode<synchronous>, transform_indices = @transform_6, window_bounds = array<i64: 64, 4>}, {pipeline_mode = #tpu.pipeline_mode<synchronous>, transform_indices = @transform_7, window_bounds = array<i64: 1, 4>}, {transform_indices = @transform_8, window_bounds = array<i64: 8, 4>}]} {
    %c0_i32 = arith.constant 0 : i32
    %0 = arith.cmpi eq, %arg1, %c0_i32 : i32
    %1 = arith.extui %0 : i1 to i32
    %c0_i32_0 = arith.constant 0 : i32
    %2 = arith.cmpi ne, %1, %c0_i32_0 : i32
    scf.if %2 {
      %cst_84 = arith.constant 0.000000e+00 : f32
      %359 = vector.broadcast %cst_84 : f32 to vector<8x64xf32>
      %c0_85 = arith.constant 0 : index
      %c0_86 = arith.constant 0 : index
      %360 = vector.load %arg11[%c0_85, %c0_86] : memref<8x64xf32, #tpu.memory_space<vmem>>, vector<8x64xf32>
      tpu.vector_store %arg11[%c0_85, %c0_86], %359 {strides = array<i32>} : memref<8x64xf32, #tpu.memory_space<vmem>>, vector<8x64xf32>,
      %cst_87 = arith.constant 0.000000e+00 : f32
      %361 = vector.broadcast %cst_87 : f32 to vector<8x64xf32>
      %c0_88 = arith.constant 0 : index
      %c0_89 = arith.constant 0 : index
      %362 = vector.load %arg12[%c0_88, %c0_89] : memref<8x64xf32, #tpu.memory_space<vmem>>, vector<8x64xf32>
      tpu.vector_store %arg12[%c0_88, %c0_89], %361 {strides = array<i32>} : memref<8x64xf32, #tpu.memory_space<vmem>>, vector<8x64xf32>,
      %cst_90 = arith.constant 0.000000e+00 : f32
      %363 = vector.broadcast %cst_90 : f32 to vector<8x64xf32>
      %c0_91 = arith.constant 0 : index
      %c0_92 = arith.constant 0 : index
      %364 = vector.load %arg13[%c0_91, %c0_92] : memref<8x64xf32, #tpu.memory_space<vmem>>, vector<8x64xf32>
      tpu.vector_store %arg13[%c0_91, %c0_92], %363 {strides = array<i32>} : memref<8x64xf32, #tpu.memory_space<vmem>>, vector<8x64xf32>,
      %cst_93 = arith.constant 0.000000e+00 : f32
      %365 = vector.broadcast %cst_93 : f32 to vector<8x64xf32>
      %c0_94 = arith.constant 0 : index
      %c0_95 = arith.constant 0 : index
      %366 = vector.load %arg14[%c0_94, %c0_95] : memref<8x64xf32, #tpu.memory_space<vmem>>, vector<8x64xf32>
      tpu.vector_store %arg14[%c0_94, %c0_95], %365 {strides = array<i32>} : memref<8x64xf32, #tpu.memory_space<vmem>>, vector<8x64xf32>,
    } else {
    }
    %c0 = arith.constant 0 : index
    %c0_1 = arith.constant 0 : index
    %3 = vector.load %arg3[%c0, %c0_1] : memref<8x256xf32, #tpu.memory_space<vmem>>, vector<8x256xf32>
    %c0_2 = arith.constant 0 : index
    %c0_3 = arith.constant 0 : index
    %4 = vector.load %arg4[%c0_2, %c0_3] : memref<64x256xf32, #tpu.memory_space<vmem>>, vector<64x256xf32>
    %c0_4 = arith.constant 0 : index
    %c0_5 = arith.constant 0 : index
    %5 = vector.load %arg5[%c0_4, %c0_5] : memref<128x256xf32, #tpu.memory_space<vmem>>, vector<128x256xf32>
    %c0_6 = arith.constant 0 : index
    %c0_7 = arith.constant 0 : index
    %6 = vector.load %arg6[%c0_6, %c0_7] : memref<1x256xf32, #tpu.memory_space<vmem>>, vector<1x256xf32>
    %7 = vector.shape_cast %6 : vector<1x256xf32> to vector<1x256xf32>
    %8 = vector.broadcast %7 : vector<1x256xf32> to vector<8x256xf32>
    %c0_8 = arith.constant 0 : index
    %c0_9 = arith.constant 0 : index
    %9 = vector.load %arg7[%c0_8, %c0_9] : memref<1x256xf32, #tpu.memory_space<vmem>>, vector<1x256xf32>
    %10 = vector.shape_cast %9 : vector<1x256xf32> to vector<1x256xf32>
    %11 = vector.broadcast %10 : vector<1x256xf32> to vector<8x256xf32>
    %c0_10 = arith.constant 0 : index
    %c0_11 = arith.constant 0 : index
    %12 = vector.load %arg11[%c0_10, %c0_11] : memref<8x64xf32, #tpu.memory_space<vmem>>, vector<8x64xf32>
    %c0_12 = arith.constant 0 : index
    %c0_13 = arith.constant 0 : index
    %13 = vector.load %arg12[%c0_12, %c0_13] : memref<8x64xf32, #tpu.memory_space<vmem>>, vector<8x64xf32>
    %c0_14 = arith.constant 0 : index
    %c0_15 = arith.constant 0 : index
    %14 = vector.load %arg13[%c0_14, %c0_15] : memref<8x64xf32, #tpu.memory_space<vmem>>, vector<8x64xf32>
    %c0_16 = arith.constant 0 : index
    %c0_17 = arith.constant 0 : index
    %15 = vector.load %arg14[%c0_16, %c0_17] : memref<8x64xf32, #tpu.memory_space<vmem>>, vector<8x64xf32>
    %c0_i32_18 = arith.constant 0 : i32
    %16 = arith.index_cast %c0_i32_18 : i32 to index
    %c0_19 = arith.constant 0 : index
    %c0_20 = arith.constant 0 : index
    %17 = vector.load %arg2[%16, %c0_19, %c0_20] : memref<8x8x8xf32, #tpu.memory_space<vmem>>, vector<1x8x8xf32>
    %18 = vector.shape_cast %17 : vector<1x8x8xf32> to vector<8x8xf32>
    %cst = arith.constant dense<0.000000e+00> : vector<8x256xf32>
    %19 = tpu.matmul %18, %3, %cst {dimension_numbers = #tpu.dot_dimension_numbers<[1], [0], [0], [1], [0, 0, 1, 1], [], []>} : vector<8x8xf32>, vector<8x256xf32>, vector<8x256xf32> -> vector<8x256xf32>
    %cst_21 = arith.constant dense<0.000000e+00> : vector<8x256xf32>
    %20 = tpu.matmul %12, %4, %cst_21 {dimension_numbers = #tpu.dot_dimension_numbers<[1], [0], [0], [1], [0, 0, 1, 1], [], []>} : vector<8x64xf32>, vector<64x256xf32>, vector<8x256xf32> -> vector<8x256xf32>
    %21 = arith.addf %19, %20 : vector<8x256xf32>
    %22 = arith.addf %21, %8 : vector<8x256xf32>
    %23 = vector.extract_strided_slice %22 {offsets = [0, 0], sizes = [8, 192], strides = [1, 1]} : vector<8x256xf32> to vector<8x192xf32>
    %24 = arith.negf %23 : vector<8x192xf32>
    %25 = math.exp %24 : vector<8x192xf32>
    %cst_22 = arith.constant 1.000000e+00 : f32
    %26 = vector.broadcast %cst_22 : f32 to vector<8x192xf32>
    %27 = arith.addf %26, %25 : vector<8x192xf32>
    %28 = arith.divf %26, %27 : vector<8x192xf32>
    %29 = vector.extract_strided_slice %22 {offsets = [0, 192], sizes = [8, 64], strides = [1, 1]} : vector<8x256xf32> to vector<8x64xf32>
    %30 = math.tanh %29 : vector<8x64xf32>
    %31 = vector.extract_strided_slice %28 {offsets = [0, 0], sizes = [8, 64], strides = [1, 1]} : vector<8x192xf32> to vector<8x64xf32>
    %32 = vector.extract_strided_slice %28 {offsets = [0, 64], sizes = [8, 64], strides = [1, 1]} : vector<8x192xf32> to vector<8x64xf32>
    %33 = vector.extract_strided_slice %28 {offsets = [0, 128], sizes = [8, 64], strides = [1, 1]} : vector<8x192xf32> to vector<8x64xf32>
    %34 = arith.mulf %32, %13 : vector<8x64xf32>
    %35 = arith.mulf %31, %30 : vector<8x64xf32>
    %36 = arith.addf %34, %35 : vector<8x64xf32>
    %37 = math.tanh %36 : vector<8x64xf32>
    %38 = arith.mulf %33, %37 : vector<8x64xf32>
    %39 = tpu.concatenate %38, %14 in 1 : vector<8x64xf32>, vector<8x64xf32> -> vector<8x128xf32>
    %cst_23 = arith.constant dense<0.000000e+00> : vector<8x256xf32>
    %40 = tpu.matmul %39, %5, %cst_23 {dimension_numbers = #tpu.dot_dimension_numbers<[1], [0], [0], [1], [0, 0, 1, 1], [], []>} : vector<8x128xf32>, vector<128x256xf32>, vector<8x256xf32> -> vector<8x256xf32>
    %41 = arith.addf %40, %11 : vector<8x256xf32>
    %42 = vector.extract_strided_slice %41 {offsets = [0, 0], sizes = [8, 192], strides = [1, 1]} : vector<8x256xf32> to vector<8x192xf32>
    %43 = arith.negf %42 : vector<8x192xf32>
    %44 = math.exp %43 : vector<8x192xf32>
    %cst_24 = arith.constant 1.000000e+00 : f32
    %45 = vector.broadcast %cst_24 : f32 to vector<8x192xf32>
    %46 = arith.addf %45, %44 : vector<8x192xf32>
    %47 = arith.divf %45, %46 : vector<8x192xf32>
    %48 = vector.extract_strided_slice %41 {offsets = [0, 192], sizes = [8, 64], strides = [1, 1]} : vector<8x256xf32> to vector<8x64xf32>
    %49 = math.tanh %48 : vector<8x64xf32>
    %50 = vector.extract_strided_slice %47 {offsets = [0, 0], sizes = [8, 64], strides = [1, 1]} : vector<8x192xf32> to vector<8x64xf32>
    %51 = vector.extract_strided_slice %47 {offsets = [0, 64], sizes = [8, 64], strides = [1, 1]} : vector<8x192xf32> to vector<8x64xf32>
    %52 = vector.extract_strided_slice %47 {offsets = [0, 128], sizes = [8, 64], strides = [1, 1]} : vector<8x192xf32> to vector<8x64xf32>
    %53 = arith.mulf %51, %15 : vector<8x64xf32>
    %54 = arith.mulf %50, %49 : vector<8x64xf32>
    %55 = arith.addf %53, %54 : vector<8x64xf32>
    %56 = math.tanh %55 : vector<8x64xf32>
    %57 = arith.mulf %52, %56 : vector<8x64xf32>
    %c1_i32 = arith.constant 1 : i32
    %58 = arith.index_cast %c1_i32 : i32 to index
    %c0_25 = arith.constant 0 : index
    %c0_26 = arith.constant 0 : index
    %59 = vector.load %arg2[%58, %c0_25, %c0_26] : memref<8x8x8xf32, #tpu.memory_space<vmem>>, vector<1x8x8xf32>
    %60 = vector.shape_cast %59 : vector<1x8x8xf32> to vector<8x8xf32>
    %cst_27 = arith.constant dense<0.000000e+00> : vector<8x256xf32>
    %61 = tpu.matmul %60, %3, %cst_27 {dimension_numbers = #tpu.dot_dimension_numbers<[1], [0], [0], [1], [0, 0, 1, 1], [], []>} : vector<8x8xf32>, vector<8x256xf32>, vector<8x256xf32> -> vector<8x256xf32>
    %cst_28 = arith.constant dense<0.000000e+00> : vector<8x256xf32>
    %62 = tpu.matmul %38, %4, %cst_28 {dimension_numbers = #tpu.dot_dimension_numbers<[1], [0], [0], [1], [0, 0, 1, 1], [], []>} : vector<8x64xf32>, vector<64x256xf32>, vector<8x256xf32> -> vector<8x256xf32>
    %63 = arith.addf %61, %62 : vector<8x256xf32>
    %64 = arith.addf %63, %8 : vector<8x256xf32>
    %65 = vector.extract_strided_slice %64 {offsets = [0, 0], sizes = [8, 192], strides = [1, 1]} : vector<8x256xf32> to vector<8x192xf32>
    %66 = arith.negf %65 : vector<8x192xf32>
    %67 = math.exp %66 : vector<8x192xf32>
    %cst_29 = arith.constant 1.000000e+00 : f32
    %68 = vector.broadcast %cst_29 : f32 to vector<8x192xf32>
    %69 = arith.addf %68, %67 : vector<8x192xf32>
    %70 = arith.divf %68, %69 : vector<8x192xf32>
    %71 = vector.extract_strided_slice %64 {offsets = [0, 192], sizes = [8, 64], strides = [1, 1]} : vector<8x256xf32> to vector<8x64xf32>
    %72 = math.tanh %71 : vector<8x64xf32>
    %73 = vector.extract_strided_slice %70 {offsets = [0, 0], sizes = [8, 64], strides = [1, 1]} : vector<8x192xf32> to vector<8x64xf32>
    %74 = vector.extract_strided_slice %70 {offsets = [0, 64], sizes = [8, 64], strides = [1, 1]} : vector<8x192xf32> to vector<8x64xf32>
    %75 = vector.extract_strided_slice %70 {offsets = [0, 128], sizes = [8, 64], strides = [1, 1]} : vector<8x192xf32> to vector<8x64xf32>
    %76 = arith.mulf %74, %36 : vector<8x64xf32>
    %77 = arith.mulf %73, %72 : vector<8x64xf32>
    %78 = arith.addf %76, %77 : vector<8x64xf32>
    %79 = math.tanh %78 : vector<8x64xf32>
    %80 = arith.mulf %75, %79 : vector<8x64xf32>
    %81 = tpu.concatenate %80, %57 in 1 : vector<8x64xf32>, vector<8x64xf32> -> vector<8x128xf32>
    %cst_30 = arith.constant dense<0.000000e+00> : vector<8x256xf32>
    %82 = tpu.matmul %81, %5, %cst_30 {dimension_numbers = #tpu.dot_dimension_numbers<[1], [0], [0], [1], [0, 0, 1, 1], [], []>} : vector<8x128xf32>, vector<128x256xf32>, vector<8x256xf32> -> vector<8x256xf32>
    %83 = arith.addf %82, %11 : vector<8x256xf32>
    %84 = vector.extract_strided_slice %83 {offsets = [0, 0], sizes = [8, 192], strides = [1, 1]} : vector<8x256xf32> to vector<8x192xf32>
    %85 = arith.negf %84 : vector<8x192xf32>
    %86 = math.exp %85 : vector<8x192xf32>
    %cst_31 = arith.constant 1.000000e+00 : f32
    %87 = vector.broadcast %cst_31 : f32 to vector<8x192xf32>
    %88 = arith.addf %87, %86 : vector<8x192xf32>
    %89 = arith.divf %87, %88 : vector<8x192xf32>
    %90 = vector.extract_strided_slice %83 {offsets = [0, 192], sizes = [8, 64], strides = [1, 1]} : vector<8x256xf32> to vector<8x64xf32>
    %91 = math.tanh %90 : vector<8x64xf32>
    %92 = vector.extract_strided_slice %89 {offsets = [0, 0], sizes = [8, 64], strides = [1, 1]} : vector<8x192xf32> to vector<8x64xf32>
    %93 = vector.extract_strided_slice %89 {offsets = [0, 64], sizes = [8, 64], strides = [1, 1]} : vector<8x192xf32> to vector<8x64xf32>
    %94 = vector.extract_strided_slice %89 {offsets = [0, 128], sizes = [8, 64], strides = [1, 1]} : vector<8x192xf32> to vector<8x64xf32>
    %95 = arith.mulf %93, %55 : vector<8x64xf32>
    %96 = arith.mulf %92, %91 : vector<8x64xf32>
    %97 = arith.addf %95, %96 : vector<8x64xf32>
    %98 = math.tanh %97 : vector<8x64xf32>
    %99 = arith.mulf %94, %98 : vector<8x64xf32>
    %c2_i32 = arith.constant 2 : i32
    %100 = arith.index_cast %c2_i32 : i32 to index
    %c0_32 = arith.constant 0 : index
    %c0_33 = arith.constant 0 : index
    %101 = vector.load %arg2[%100, %c0_32, %c0_33] : memref<8x8x8xf32, #tpu.memory_space<vmem>>, vector<1x8x8xf32>
    %102 = vector.shape_cast %101 : vector<1x8x8xf32> to vector<8x8xf32>
    %cst_34 = arith.constant dense<0.000000e+00> : vector<8x256xf32>
    %103 = tpu.matmul %102, %3, %cst_34 {dimension_numbers = #tpu.dot_dimension_numbers<[1], [0], [0], [1], [0, 0, 1, 1], [], []>} : vector<8x8xf32>, vector<8x256xf32>, vector<8x256xf32> -> vector<8x256xf32>
    %cst_35 = arith.constant dense<0.000000e+00> : vector<8x256xf32>
    %104 = tpu.matmul %80, %4, %cst_35 {dimension_numbers = #tpu.dot_dimension_numbers<[1], [0], [0], [1], [0, 0, 1, 1], [], []>} : vector<8x64xf32>, vector<64x256xf32>, vector<8x256xf32> -> vector<8x256xf32>
    %105 = arith.addf %103, %104 : vector<8x256xf32>
    %106 = arith.addf %105, %8 : vector<8x256xf32>
    %107 = vector.extract_strided_slice %106 {offsets = [0, 0], sizes = [8, 192], strides = [1, 1]} : vector<8x256xf32> to vector<8x192xf32>
    %108 = arith.negf %107 : vector<8x192xf32>
    %109 = math.exp %108 : vector<8x192xf32>
    %cst_36 = arith.constant 1.000000e+00 : f32
    %110 = vector.broadcast %cst_36 : f32 to vector<8x192xf32>
    %111 = arith.addf %110, %109 : vector<8x192xf32>
    %112 = arith.divf %110, %111 : vector<8x192xf32>
    %113 = vector.extract_strided_slice %106 {offsets = [0, 192], sizes = [8, 64], strides = [1, 1]} : vector<8x256xf32> to vector<8x64xf32>
    %114 = math.tanh %113 : vector<8x64xf32>
    %115 = vector.extract_strided_slice %112 {offsets = [0, 0], sizes = [8, 64], strides = [1, 1]} : vector<8x192xf32> to vector<8x64xf32>
    %116 = vector.extract_strided_slice %112 {offsets = [0, 64], sizes = [8, 64], strides = [1, 1]} : vector<8x192xf32> to vector<8x64xf32>
    %117 = vector.extract_strided_slice %112 {offsets = [0, 128], sizes = [8, 64], strides = [1, 1]} : vector<8x192xf32> to vector<8x64xf32>
    %118 = arith.mulf %116, %78 : vector<8x64xf32>
    %119 = arith.mulf %115, %114 : vector<8x64xf32>
    %120 = arith.addf %118, %119 : vector<8x64xf32>
    %121 = math.tanh %120 : vector<8x64xf32>
    %122 = arith.mulf %117, %121 : vector<8x64xf32>
    %123 = tpu.concatenate %122, %99 in 1 : vector<8x64xf32>, vector<8x64xf32> -> vector<8x128xf32>
    %cst_37 = arith.constant dense<0.000000e+00> : vector<8x256xf32>
    %124 = tpu.matmul %123, %5, %cst_37 {dimension_numbers = #tpu.dot_dimension_numbers<[1], [0], [0], [1], [0, 0, 1, 1], [], []>} : vector<8x128xf32>, vector<128x256xf32>, vector<8x256xf32> -> vector<8x256xf32>
    %125 = arith.addf %124, %11 : vector<8x256xf32>
    %126 = vector.extract_strided_slice %125 {offsets = [0, 0], sizes = [8, 192], strides = [1, 1]} : vector<8x256xf32> to vector<8x192xf32>
    %127 = arith.negf %126 : vector<8x192xf32>
    %128 = math.exp %127 : vector<8x192xf32>
    %cst_38 = arith.constant 1.000000e+00 : f32
    %129 = vector.broadcast %cst_38 : f32 to vector<8x192xf32>
    %130 = arith.addf %129, %128 : vector<8x192xf32>
    %131 = arith.divf %129, %130 : vector<8x192xf32>
    %132 = vector.extract_strided_slice %125 {offsets = [0, 192], sizes = [8, 64], strides = [1, 1]} : vector<8x256xf32> to vector<8x64xf32>
    %133 = math.tanh %132 : vector<8x64xf32>
    %134 = vector.extract_strided_slice %131 {offsets = [0, 0], sizes = [8, 64], strides = [1, 1]} : vector<8x192xf32> to vector<8x64xf32>
    %135 = vector.extract_strided_slice %131 {offsets = [0, 64], sizes = [8, 64], strides = [1, 1]} : vector<8x192xf32> to vector<8x64xf32>
    %136 = vector.extract_strided_slice %131 {offsets = [0, 128], sizes = [8, 64], strides = [1, 1]} : vector<8x192xf32> to vector<8x64xf32>
    %137 = arith.mulf %135, %97 : vector<8x64xf32>
    %138 = arith.mulf %134, %133 : vector<8x64xf32>
    %139 = arith.addf %137, %138 : vector<8x64xf32>
    %140 = math.tanh %139 : vector<8x64xf32>
    %141 = arith.mulf %136, %140 : vector<8x64xf32>
    %c3_i32 = arith.constant 3 : i32
    %142 = arith.index_cast %c3_i32 : i32 to index
    %c0_39 = arith.constant 0 : index
    %c0_40 = arith.constant 0 : index
    %143 = vector.load %arg2[%142, %c0_39, %c0_40] : memref<8x8x8xf32, #tpu.memory_space<vmem>>, vector<1x8x8xf32>
    %144 = vector.shape_cast %143 : vector<1x8x8xf32> to vector<8x8xf32>
    %cst_41 = arith.constant dense<0.000000e+00> : vector<8x256xf32>
    %145 = tpu.matmul %144, %3, %cst_41 {dimension_numbers = #tpu.dot_dimension_numbers<[1], [0], [0], [1], [0, 0, 1, 1], [], []>} : vector<8x8xf32>, vector<8x256xf32>, vector<8x256xf32> -> vector<8x256xf32>
    %cst_42 = arith.constant dense<0.000000e+00> : vector<8x256xf32>
    %146 = tpu.matmul %122, %4, %cst_42 {dimension_numbers = #tpu.dot_dimension_numbers<[1], [0], [0], [1], [0, 0, 1, 1], [], []>} : vector<8x64xf32>, vector<64x256xf32>, vector<8x256xf32> -> vector<8x256xf32>
    %147 = arith.addf %145, %146 : vector<8x256xf32>
    %148 = arith.addf %147, %8 : vector<8x256xf32>
    %149 = vector.extract_strided_slice %148 {offsets = [0, 0], sizes = [8, 192], strides = [1, 1]} : vector<8x256xf32> to vector<8x192xf32>
    %150 = arith.negf %149 : vector<8x192xf32>
    %151 = math.exp %150 : vector<8x192xf32>
    %cst_43 = arith.constant 1.000000e+00 : f32
    %152 = vector.broadcast %cst_43 : f32 to vector<8x192xf32>
    %153 = arith.addf %152, %151 : vector<8x192xf32>
    %154 = arith.divf %152, %153 : vector<8x192xf32>
    %155 = vector.extract_strided_slice %148 {offsets = [0, 192], sizes = [8, 64], strides = [1, 1]} : vector<8x256xf32> to vector<8x64xf32>
    %156 = math.tanh %155 : vector<8x64xf32>
    %157 = vector.extract_strided_slice %154 {offsets = [0, 0], sizes = [8, 64], strides = [1, 1]} : vector<8x192xf32> to vector<8x64xf32>
    %158 = vector.extract_strided_slice %154 {offsets = [0, 64], sizes = [8, 64], strides = [1, 1]} : vector<8x192xf32> to vector<8x64xf32>
    %159 = vector.extract_strided_slice %154 {offsets = [0, 128], sizes = [8, 64], strides = [1, 1]} : vector<8x192xf32> to vector<8x64xf32>
    %160 = arith.mulf %158, %120 : vector<8x64xf32>
    %161 = arith.mulf %157, %156 : vector<8x64xf32>
    %162 = arith.addf %160, %161 : vector<8x64xf32>
    %163 = math.tanh %162 : vector<8x64xf32>
    %164 = arith.mulf %159, %163 : vector<8x64xf32>
    %165 = tpu.concatenate %164, %141 in 1 : vector<8x64xf32>, vector<8x64xf32> -> vector<8x128xf32>
    %cst_44 = arith.constant dense<0.000000e+00> : vector<8x256xf32>
    %166 = tpu.matmul %165, %5, %cst_44 {dimension_numbers = #tpu.dot_dimension_numbers<[1], [0], [0], [1], [0, 0, 1, 1], [], []>} : vector<8x128xf32>, vector<128x256xf32>, vector<8x256xf32> -> vector<8x256xf32>
    %167 = arith.addf %166, %11 : vector<8x256xf32>
    %168 = vector.extract_strided_slice %167 {offsets = [0, 0], sizes = [8, 192], strides = [1, 1]} : vector<8x256xf32> to vector<8x192xf32>
    %169 = arith.negf %168 : vector<8x192xf32>
    %170 = math.exp %169 : vector<8x192xf32>
    %cst_45 = arith.constant 1.000000e+00 : f32
    %171 = vector.broadcast %cst_45 : f32 to vector<8x192xf32>
    %172 = arith.addf %171, %170 : vector<8x192xf32>
    %173 = arith.divf %171, %172 : vector<8x192xf32>
    %174 = vector.extract_strided_slice %167 {offsets = [0, 192], sizes = [8, 64], strides = [1, 1]} : vector<8x256xf32> to vector<8x64xf32>
    %175 = math.tanh %174 : vector<8x64xf32>
    %176 = vector.extract_strided_slice %173 {offsets = [0, 0], sizes = [8, 64], strides = [1, 1]} : vector<8x192xf32> to vector<8x64xf32>
    %177 = vector.extract_strided_slice %173 {offsets = [0, 64], sizes = [8, 64], strides = [1, 1]} : vector<8x192xf32> to vector<8x64xf32>
    %178 = vector.extract_strided_slice %173 {offsets = [0, 128], sizes = [8, 64], strides = [1, 1]} : vector<8x192xf32> to vector<8x64xf32>
    %179 = arith.mulf %177, %139 : vector<8x64xf32>
    %180 = arith.mulf %176, %175 : vector<8x64xf32>
    %181 = arith.addf %179, %180 : vector<8x64xf32>
    %182 = math.tanh %181 : vector<8x64xf32>
    %183 = arith.mulf %178, %182 : vector<8x64xf32>
    %c4_i32 = arith.constant 4 : i32
    %184 = arith.index_cast %c4_i32 : i32 to index
    %c0_46 = arith.constant 0 : index
    %c0_47 = arith.constant 0 : index
    %185 = vector.load %arg2[%184, %c0_46, %c0_47] : memref<8x8x8xf32, #tpu.memory_space<vmem>>, vector<1x8x8xf32>
    %186 = vector.shape_cast %185 : vector<1x8x8xf32> to vector<8x8xf32>
    %cst_48 = arith.constant dense<0.000000e+00> : vector<8x256xf32>
    %187 = tpu.matmul %186, %3, %cst_48 {dimension_numbers = #tpu.dot_dimension_numbers<[1], [0], [0], [1], [0, 0, 1, 1], [], []>} : vector<8x8xf32>, vector<8x256xf32>, vector<8x256xf32> -> vector<8x256xf32>
    %cst_49 = arith.constant dense<0.000000e+00> : vector<8x256xf32>
    %188 = tpu.matmul %164, %4, %cst_49 {dimension_numbers = #tpu.dot_dimension_numbers<[1], [0], [0], [1], [0, 0, 1, 1], [], []>} : vector<8x64xf32>, vector<64x256xf32>, vector<8x256xf32> -> vector<8x256xf32>
    %189 = arith.addf %187, %188 : vector<8x256xf32>
    %190 = arith.addf %189, %8 : vector<8x256xf32>
    %191 = vector.extract_strided_slice %190 {offsets = [0, 0], sizes = [8, 192], strides = [1, 1]} : vector<8x256xf32> to vector<8x192xf32>
    %192 = arith.negf %191 : vector<8x192xf32>
    %193 = math.exp %192 : vector<8x192xf32>
    %cst_50 = arith.constant 1.000000e+00 : f32
    %194 = vector.broadcast %cst_50 : f32 to vector<8x192xf32>
    %195 = arith.addf %194, %193 : vector<8x192xf32>
    %196 = arith.divf %194, %195 : vector<8x192xf32>
    %197 = vector.extract_strided_slice %190 {offsets = [0, 192], sizes = [8, 64], strides = [1, 1]} : vector<8x256xf32> to vector<8x64xf32>
    %198 = math.tanh %197 : vector<8x64xf32>
    %199 = vector.extract_strided_slice %196 {offsets = [0, 0], sizes = [8, 64], strides = [1, 1]} : vector<8x192xf32> to vector<8x64xf32>
    %200 = vector.extract_strided_slice %196 {offsets = [0, 64], sizes = [8, 64], strides = [1, 1]} : vector<8x192xf32> to vector<8x64xf32>
    %201 = vector.extract_strided_slice %196 {offsets = [0, 128], sizes = [8, 64], strides = [1, 1]} : vector<8x192xf32> to vector<8x64xf32>
    %202 = arith.mulf %200, %162 : vector<8x64xf32>
    %203 = arith.mulf %199, %198 : vector<8x64xf32>
    %204 = arith.addf %202, %203 : vector<8x64xf32>
    %205 = math.tanh %204 : vector<8x64xf32>
    %206 = arith.mulf %201, %205 : vector<8x64xf32>
    %207 = tpu.concatenate %206, %183 in 1 : vector<8x64xf32>, vector<8x64xf32> -> vector<8x128xf32>
    %cst_51 = arith.constant dense<0.000000e+00> : vector<8x256xf32>
    %208 = tpu.matmul %207, %5, %cst_51 {dimension_numbers = #tpu.dot_dimension_numbers<[1], [0], [0], [1], [0, 0, 1, 1], [], []>} : vector<8x128xf32>, vector<128x256xf32>, vector<8x256xf32> -> vector<8x256xf32>
    %209 = arith.addf %208, %11 : vector<8x256xf32>
    %210 = vector.extract_strided_slice %209 {offsets = [0, 0], sizes = [8, 192], strides = [1, 1]} : vector<8x256xf32> to vector<8x192xf32>
    %211 = arith.negf %210 : vector<8x192xf32>
    %212 = math.exp %211 : vector<8x192xf32>
    %cst_52 = arith.constant 1.000000e+00 : f32
    %213 = vector.broadcast %cst_52 : f32 to vector<8x192xf32>
    %214 = arith.addf %213, %212 : vector<8x192xf32>
    %215 = arith.divf %213, %214 : vector<8x192xf32>
    %216 = vector.extract_strided_slice %209 {offsets = [0, 192], sizes = [8, 64], strides = [1, 1]} : vector<8x256xf32> to vector<8x64xf32>
    %217 = math.tanh %216 : vector<8x64xf32>
    %218 = vector.extract_strided_slice %215 {offsets = [0, 0], sizes = [8, 64], strides = [1, 1]} : vector<8x192xf32> to vector<8x64xf32>
    %219 = vector.extract_strided_slice %215 {offsets = [0, 64], sizes = [8, 64], strides = [1, 1]} : vector<8x192xf32> to vector<8x64xf32>
    %220 = vector.extract_strided_slice %215 {offsets = [0, 128], sizes = [8, 64], strides = [1, 1]} : vector<8x192xf32> to vector<8x64xf32>
    %221 = arith.mulf %219, %181 : vector<8x64xf32>
    %222 = arith.mulf %218, %217 : vector<8x64xf32>
    %223 = arith.addf %221, %222 : vector<8x64xf32>
    %224 = math.tanh %223 : vector<8x64xf32>
    %225 = arith.mulf %220, %224 : vector<8x64xf32>
    %c5_i32 = arith.constant 5 : i32
    %226 = arith.index_cast %c5_i32 : i32 to index
    %c0_53 = arith.constant 0 : index
    %c0_54 = arith.constant 0 : index
    %227 = vector.load %arg2[%226, %c0_53, %c0_54] : memref<8x8x8xf32, #tpu.memory_space<vmem>>, vector<1x8x8xf32>
    %228 = vector.shape_cast %227 : vector<1x8x8xf32> to vector<8x8xf32>
    %cst_55 = arith.constant dense<0.000000e+00> : vector<8x256xf32>
    %229 = tpu.matmul %228, %3, %cst_55 {dimension_numbers = #tpu.dot_dimension_numbers<[1], [0], [0], [1], [0, 0, 1, 1], [], []>} : vector<8x8xf32>, vector<8x256xf32>, vector<8x256xf32> -> vector<8x256xf32>
    %cst_56 = arith.constant dense<0.000000e+00> : vector<8x256xf32>
    %230 = tpu.matmul %206, %4, %cst_56 {dimension_numbers = #tpu.dot_dimension_numbers<[1], [0], [0], [1], [0, 0, 1, 1], [], []>} : vector<8x64xf32>, vector<64x256xf32>, vector<8x256xf32> -> vector<8x256xf32>
    %231 = arith.addf %229, %230 : vector<8x256xf32>
    %232 = arith.addf %231, %8 : vector<8x256xf32>
    %233 = vector.extract_strided_slice %232 {offsets = [0, 0], sizes = [8, 192], strides = [1, 1]} : vector<8x256xf32> to vector<8x192xf32>
    %234 = arith.negf %233 : vector<8x192xf32>
    %235 = math.exp %234 : vector<8x192xf32>
    %cst_57 = arith.constant 1.000000e+00 : f32
    %236 = vector.broadcast %cst_57 : f32 to vector<8x192xf32>
    %237 = arith.addf %236, %235 : vector<8x192xf32>
    %238 = arith.divf %236, %237 : vector<8x192xf32>
    %239 = vector.extract_strided_slice %232 {offsets = [0, 192], sizes = [8, 64], strides = [1, 1]} : vector<8x256xf32> to vector<8x64xf32>
    %240 = math.tanh %239 : vector<8x64xf32>
    %241 = vector.extract_strided_slice %238 {offsets = [0, 0], sizes = [8, 64], strides = [1, 1]} : vector<8x192xf32> to vector<8x64xf32>
    %242 = vector.extract_strided_slice %238 {offsets = [0, 64], sizes = [8, 64], strides = [1, 1]} : vector<8x192xf32> to vector<8x64xf32>
    %243 = vector.extract_strided_slice %238 {offsets = [0, 128], sizes = [8, 64], strides = [1, 1]} : vector<8x192xf32> to vector<8x64xf32>
    %244 = arith.mulf %242, %204 : vector<8x64xf32>
    %245 = arith.mulf %241, %240 : vector<8x64xf32>
    %246 = arith.addf %244, %245 : vector<8x64xf32>
    %247 = math.tanh %246 : vector<8x64xf32>
    %248 = arith.mulf %243, %247 : vector<8x64xf32>
    %249 = tpu.concatenate %248, %225 in 1 : vector<8x64xf32>, vector<8x64xf32> -> vector<8x128xf32>
    %cst_58 = arith.constant dense<0.000000e+00> : vector<8x256xf32>
    %250 = tpu.matmul %249, %5, %cst_58 {dimension_numbers = #tpu.dot_dimension_numbers<[1], [0], [0], [1], [0, 0, 1, 1], [], []>} : vector<8x128xf32>, vector<128x256xf32>, vector<8x256xf32> -> vector<8x256xf32>
    %251 = arith.addf %250, %11 : vector<8x256xf32>
    %252 = vector.extract_strided_slice %251 {offsets = [0, 0], sizes = [8, 192], strides = [1, 1]} : vector<8x256xf32> to vector<8x192xf32>
    %253 = arith.negf %252 : vector<8x192xf32>
    %254 = math.exp %253 : vector<8x192xf32>
    %cst_59 = arith.constant 1.000000e+00 : f32
    %255 = vector.broadcast %cst_59 : f32 to vector<8x192xf32>
    %256 = arith.addf %255, %254 : vector<8x192xf32>
    %257 = arith.divf %255, %256 : vector<8x192xf32>
    %258 = vector.extract_strided_slice %251 {offsets = [0, 192], sizes = [8, 64], strides = [1, 1]} : vector<8x256xf32> to vector<8x64xf32>
    %259 = math.tanh %258 : vector<8x64xf32>
    %260 = vector.extract_strided_slice %257 {offsets = [0, 0], sizes = [8, 64], strides = [1, 1]} : vector<8x192xf32> to vector<8x64xf32>
    %261 = vector.extract_strided_slice %257 {offsets = [0, 64], sizes = [8, 64], strides = [1, 1]} : vector<8x192xf32> to vector<8x64xf32>
    %262 = vector.extract_strided_slice %257 {offsets = [0, 128], sizes = [8, 64], strides = [1, 1]} : vector<8x192xf32> to vector<8x64xf32>
    %263 = arith.mulf %261, %223 : vector<8x64xf32>
    %264 = arith.mulf %260, %259 : vector<8x64xf32>
    %265 = arith.addf %263, %264 : vector<8x64xf32>
    %266 = math.tanh %265 : vector<8x64xf32>
    %267 = arith.mulf %262, %266 : vector<8x64xf32>
    %c6_i32 = arith.constant 6 : i32
    %268 = arith.index_cast %c6_i32 : i32 to index
    %c0_60 = arith.constant 0 : index
    %c0_61 = arith.constant 0 : index
    %269 = vector.load %arg2[%268, %c0_60, %c0_61] : memref<8x8x8xf32, #tpu.memory_space<vmem>>, vector<1x8x8xf32>
    %270 = vector.shape_cast %269 : vector<1x8x8xf32> to vector<8x8xf32>
    %cst_62 = arith.constant dense<0.000000e+00> : vector<8x256xf32>
    %271 = tpu.matmul %270, %3, %cst_62 {dimension_numbers = #tpu.dot_dimension_numbers<[1], [0], [0], [1], [0, 0, 1, 1], [], []>} : vector<8x8xf32>, vector<8x256xf32>, vector<8x256xf32> -> vector<8x256xf32>
    %cst_63 = arith.constant dense<0.000000e+00> : vector<8x256xf32>
    %272 = tpu.matmul %248, %4, %cst_63 {dimension_numbers = #tpu.dot_dimension_numbers<[1], [0], [0], [1], [0, 0, 1, 1], [], []>} : vector<8x64xf32>, vector<64x256xf32>, vector<8x256xf32> -> vector<8x256xf32>
    %273 = arith.addf %271, %272 : vector<8x256xf32>
    %274 = arith.addf %273, %8 : vector<8x256xf32>
    %275 = vector.extract_strided_slice %274 {offsets = [0, 0], sizes = [8, 192], strides = [1, 1]} : vector<8x256xf32> to vector<8x192xf32>
    %276 = arith.negf %275 : vector<8x192xf32>
    %277 = math.exp %276 : vector<8x192xf32>
    %cst_64 = arith.constant 1.000000e+00 : f32
    %278 = vector.broadcast %cst_64 : f32 to vector<8x192xf32>
    %279 = arith.addf %278, %277 : vector<8x192xf32>
    %280 = arith.divf %278, %279 : vector<8x192xf32>
    %281 = vector.extract_strided_slice %274 {offsets = [0, 192], sizes = [8, 64], strides = [1, 1]} : vector<8x256xf32> to vector<8x64xf32>
    %282 = math.tanh %281 : vector<8x64xf32>
    %283 = vector.extract_strided_slice %280 {offsets = [0, 0], sizes = [8, 64], strides = [1, 1]} : vector<8x192xf32> to vector<8x64xf32>
    %284 = vector.extract_strided_slice %280 {offsets = [0, 64], sizes = [8, 64], strides = [1, 1]} : vector<8x192xf32> to vector<8x64xf32>
    %285 = vector.extract_strided_slice %280 {offsets = [0, 128], sizes = [8, 64], strides = [1, 1]} : vector<8x192xf32> to vector<8x64xf32>
    %286 = arith.mulf %284, %246 : vector<8x64xf32>
    %287 = arith.mulf %283, %282 : vector<8x64xf32>
    %288 = arith.addf %286, %287 : vector<8x64xf32>
    %289 = math.tanh %288 : vector<8x64xf32>
    %290 = arith.mulf %285, %289 : vector<8x64xf32>
    %291 = tpu.concatenate %290, %267 in 1 : vector<8x64xf32>, vector<8x64xf32> -> vector<8x128xf32>
    %cst_65 = arith.constant dense<0.000000e+00> : vector<8x256xf32>
    %292 = tpu.matmul %291, %5, %cst_65 {dimension_numbers = #tpu.dot_dimension_numbers<[1], [0], [0], [1], [0, 0, 1, 1], [], []>} : vector<8x128xf32>, vector<128x256xf32>, vector<8x256xf32> -> vector<8x256xf32>
    %293 = arith.addf %292, %11 : vector<8x256xf32>
    %294 = vector.extract_strided_slice %293 {offsets = [0, 0], sizes = [8, 192], strides = [1, 1]} : vector<8x256xf32> to vector<8x192xf32>
    %295 = arith.negf %294 : vector<8x192xf32>
    %296 = math.exp %295 : vector<8x192xf32>
    %cst_66 = arith.constant 1.000000e+00 : f32
    %297 = vector.broadcast %cst_66 : f32 to vector<8x192xf32>
    %298 = arith.addf %297, %296 : vector<8x192xf32>
    %299 = arith.divf %297, %298 : vector<8x192xf32>
    %300 = vector.extract_strided_slice %293 {offsets = [0, 192], sizes = [8, 64], strides = [1, 1]} : vector<8x256xf32> to vector<8x64xf32>
    %301 = math.tanh %300 : vector<8x64xf32>
    %302 = vector.extract_strided_slice %299 {offsets = [0, 0], sizes = [8, 64], strides = [1, 1]} : vector<8x192xf32> to vector<8x64xf32>
    %303 = vector.extract_strided_slice %299 {offsets = [0, 64], sizes = [8, 64], strides = [1, 1]} : vector<8x192xf32> to vector<8x64xf32>
    %304 = vector.extract_strided_slice %299 {offsets = [0, 128], sizes = [8, 64], strides = [1, 1]} : vector<8x192xf32> to vector<8x64xf32>
    %305 = arith.mulf %303, %265 : vector<8x64xf32>
    %306 = arith.mulf %302, %301 : vector<8x64xf32>
    %307 = arith.addf %305, %306 : vector<8x64xf32>
    %308 = math.tanh %307 : vector<8x64xf32>
    %309 = arith.mulf %304, %308 : vector<8x64xf32>
    %c7_i32 = arith.constant 7 : i32
    %310 = arith.index_cast %c7_i32 : i32 to index
    %c0_67 = arith.constant 0 : index
    %c0_68 = arith.constant 0 : index
    %311 = vector.load %arg2[%310, %c0_67, %c0_68] : memref<8x8x8xf32, #tpu.memory_space<vmem>>, vector<1x8x8xf32>
    %312 = vector.shape_cast %311 : vector<1x8x8xf32> to vector<8x8xf32>
    %cst_69 = arith.constant dense<0.000000e+00> : vector<8x256xf32>
    %313 = tpu.matmul %312, %3, %cst_69 {dimension_numbers = #tpu.dot_dimension_numbers<[1], [0], [0], [1], [0, 0, 1, 1], [], []>} : vector<8x8xf32>, vector<8x256xf32>, vector<8x256xf32> -> vector<8x256xf32>
    %cst_70 = arith.constant dense<0.000000e+00> : vector<8x256xf32>
    %314 = tpu.matmul %290, %4, %cst_70 {dimension_numbers = #tpu.dot_dimension_numbers<[1], [0], [0], [1], [0, 0, 1, 1], [], []>} : vector<8x64xf32>, vector<64x256xf32>, vector<8x256xf32> -> vector<8x256xf32>
    %315 = arith.addf %313, %314 : vector<8x256xf32>
    %316 = arith.addf %315, %8 : vector<8x256xf32>
    %317 = vector.extract_strided_slice %316 {offsets = [0, 0], sizes = [8, 192], strides = [1, 1]} : vector<8x256xf32> to vector<8x192xf32>
    %318 = arith.negf %317 : vector<8x192xf32>
    %319 = math.exp %318 : vector<8x192xf32>
    %cst_71 = arith.constant 1.000000e+00 : f32
    %320 = vector.broadcast %cst_71 : f32 to vector<8x192xf32>
    %321 = arith.addf %320, %319 : vector<8x192xf32>
    %322 = arith.divf %320, %321 : vector<8x192xf32>
    %323 = vector.extract_strided_slice %316 {offsets = [0, 192], sizes = [8, 64], strides = [1, 1]} : vector<8x256xf32> to vector<8x64xf32>
    %324 = math.tanh %323 : vector<8x64xf32>
    %325 = vector.extract_strided_slice %322 {offsets = [0, 0], sizes = [8, 64], strides = [1, 1]} : vector<8x192xf32> to vector<8x64xf32>
    %326 = vector.extract_strided_slice %322 {offsets = [0, 64], sizes = [8, 64], strides = [1, 1]} : vector<8x192xf32> to vector<8x64xf32>
    %327 = vector.extract_strided_slice %322 {offsets = [0, 128], sizes = [8, 64], strides = [1, 1]} : vector<8x192xf32> to vector<8x64xf32>
    %328 = arith.mulf %326, %288 : vector<8x64xf32>
    %329 = arith.mulf %325, %324 : vector<8x64xf32>
    %330 = arith.addf %328, %329 : vector<8x64xf32>
    %331 = math.tanh %330 : vector<8x64xf32>
    %332 = arith.mulf %327, %331 : vector<8x64xf32>
    %333 = tpu.concatenate %332, %309 in 1 : vector<8x64xf32>, vector<8x64xf32> -> vector<8x128xf32>
    %cst_72 = arith.constant dense<0.000000e+00> : vector<8x256xf32>
    %334 = tpu.matmul %333, %5, %cst_72 {dimension_numbers = #tpu.dot_dimension_numbers<[1], [0], [0], [1], [0, 0, 1, 1], [], []>} : vector<8x128xf32>, vector<128x256xf32>, vector<8x256xf32> -> vector<8x256xf32>
    %335 = arith.addf %334, %11 : vector<8x256xf32>
    %336 = vector.extract_strided_slice %335 {offsets = [0, 0], sizes = [8, 192], strides = [1, 1]} : vector<8x256xf32> to vector<8x192xf32>
    %337 = arith.negf %336 : vector<8x192xf32>
    %338 = math.exp %337 : vector<8x192xf32>
    %cst_73 = arith.constant 1.000000e+00 : f32
    %339 = vector.broadcast %cst_73 : f32 to vector<8x192xf32>
    %340 = arith.addf %339, %338 : vector<8x192xf32>
    %341 = arith.divf %339, %340 : vector<8x192xf32>
    %342 = vector.extract_strided_slice %335 {offsets = [0, 192], sizes = [8, 64], strides = [1, 1]} : vector<8x256xf32> to vector<8x64xf32>
    %343 = math.tanh %342 : vector<8x64xf32>
    %344 = vector.extract_strided_slice %341 {offsets = [0, 0], sizes = [8, 64], strides = [1, 1]} : vector<8x192xf32> to vector<8x64xf32>
    %345 = vector.extract_strided_slice %341 {offsets = [0, 64], sizes = [8, 64], strides = [1, 1]} : vector<8x192xf32> to vector<8x64xf32>
    %346 = vector.extract_strided_slice %341 {offsets = [0, 128], sizes = [8, 64], strides = [1, 1]} : vector<8x192xf32> to vector<8x64xf32>
    %347 = arith.mulf %345, %307 : vector<8x64xf32>
    %348 = arith.mulf %344, %343 : vector<8x64xf32>
    %349 = arith.addf %347, %348 : vector<8x64xf32>
    %350 = math.tanh %349 : vector<8x64xf32>
    %351 = arith.mulf %346, %350 : vector<8x64xf32>
    %c8_i32 = arith.constant 8 : i32
    %c0_74 = arith.constant 0 : index
    %c0_75 = arith.constant 0 : index
    %352 = vector.load %arg11[%c0_74, %c0_75] : memref<8x64xf32, #tpu.memory_space<vmem>>, vector<8x64xf32>
    tpu.vector_store %arg11[%c0_74, %c0_75], %332 {strides = array<i32>} : memref<8x64xf32, #tpu.memory_space<vmem>>, vector<8x64xf32>,
    %c0_76 = arith.constant 0 : index
    %c0_77 = arith.constant 0 : index
    %353 = vector.load %arg12[%c0_76, %c0_77] : memref<8x64xf32, #tpu.memory_space<vmem>>, vector<8x64xf32>
    tpu.vector_store %arg12[%c0_76, %c0_77], %330 {strides = array<i32>} : memref<8x64xf32, #tpu.memory_space<vmem>>, vector<8x64xf32>,
    %c0_78 = arith.constant 0 : index
    %c0_79 = arith.constant 0 : index
    %354 = vector.load %arg13[%c0_78, %c0_79] : memref<8x64xf32, #tpu.memory_space<vmem>>, vector<8x64xf32>
    tpu.vector_store %arg13[%c0_78, %c0_79], %351 {strides = array<i32>} : memref<8x64xf32, #tpu.memory_space<vmem>>, vector<8x64xf32>,
    %c0_80 = arith.constant 0 : index
    %c0_81 = arith.constant 0 : index
    %355 = vector.load %arg14[%c0_80, %c0_81] : memref<8x64xf32, #tpu.memory_space<vmem>>, vector<8x64xf32>
    tpu.vector_store %arg14[%c0_80, %c0_81], %349 {strides = array<i32>} : memref<8x64xf32, #tpu.memory_space<vmem>>, vector<8x64xf32>,
    %c1_i32_82 = arith.constant 1 : i32
    %356 = arith.cmpi eq, %arg1, %c1_i32_82 : i32
    %357 = arith.extui %356 : i1 to i32
    %c0_i32_83 = arith.constant 0 : i32
    %358 = arith.cmpi ne, %357, %c0_i32_83 : i32
    scf.if %358 {
      %c0_84 = arith.constant 0 : index
      %c0_85 = arith.constant 0 : index
      %359 = vector.load %arg8[%c0_84, %c0_85] : memref<64x4xf32, #tpu.memory_space<vmem>>, vector<64x4xf32>
      %cst_86 = arith.constant dense<0.000000e+00> : vector<8x4xf32>
      %360 = tpu.matmul %351, %359, %cst_86 {dimension_numbers = #tpu.dot_dimension_numbers<[1], [0], [0], [1], [0, 0, 1, 1], [], []>} : vector<8x64xf32>, vector<64x4xf32>, vector<8x4xf32> -> vector<8x4xf32>
      %c0_87 = arith.constant 0 : index
      %c0_88 = arith.constant 0 : index
      %361 = vector.load %arg9[%c0_87, %c0_88] : memref<1x4xf32, #tpu.memory_space<vmem>>, vector<1x4xf32>
      %362 = vector.broadcast %361 : vector<1x4xf32> to vector<8x4xf32>
      %363 = arith.addf %360, %362 : vector<8x4xf32>
      %c0_89 = arith.constant 0 : index
      %c0_90 = arith.constant 0 : index
      %364 = vector.load %arg10[%c0_89, %c0_90] : memref<8x4xf32, #tpu.memory_space<vmem>>, vector<8x4xf32>
      tpu.vector_store %arg10[%c0_89, %c0_90], %363 {strides = array<i32>} : memref<8x4xf32, #tpu.memory_space<vmem>>, vector<8x4xf32>,
    } else {
    }
    return
  }
  func.func @transform_0(%arg0: i32, %arg1: i32) -> (i32, i32, i32) {
    %c0_i32 = arith.constant 0 : i32
    %c0_i32_0 = arith.constant 0 : i32
    return %arg1, %arg0, %c0_i32 : i32, i32, i32
  }
  func.func @transform_1(%arg0: i32, %arg1: i32) -> (i32, i32) {
    %c0_i32 = arith.constant 0 : i32
    %c0_i32_0 = arith.constant 0 : i32
    %c0_i32_1 = arith.constant 0 : i32
    return %c0_i32, %c0_i32_0 : i32, i32
  }
  func.func @transform_2(%arg0: i32, %arg1: i32) -> (i32, i32) {
    %c0_i32 = arith.constant 0 : i32
    %c0_i32_0 = arith.constant 0 : i32
    %c0_i32_1 = arith.constant 0 : i32
    return %c0_i32, %c0_i32_0 : i32, i32
  }
  func.func @transform_3(%arg0: i32, %arg1: i32) -> (i32, i32) {
    %c0_i32 = arith.constant 0 : i32
    %c0_i32_0 = arith.constant 0 : i32
    %c0_i32_1 = arith.constant 0 : i32
    return %c0_i32, %c0_i32_0 : i32, i32
  }
  func.func @transform_4(%arg0: i32, %arg1: i32) -> (i32, i32) {
    %c0_i32 = arith.constant 0 : i32
    %c0_i32_0 = arith.constant 0 : i32
    %c0_i32_1 = arith.constant 0 : i32
    return %c0_i32, %c0_i32_0 : i32, i32
  }
  func.func @transform_5(%arg0: i32, %arg1: i32) -> (i32, i32) {
    %c0_i32 = arith.constant 0 : i32
    %c0_i32_0 = arith.constant 0 : i32
    %c0_i32_1 = arith.constant 0 : i32
    return %c0_i32, %c0_i32_0 : i32, i32
  }
  func.func @transform_6(%arg0: i32, %arg1: i32) -> (i32, i32) {
    %c0_i32 = arith.constant 0 : i32
    %c0_i32_0 = arith.constant 0 : i32
    %c0_i32_1 = arith.constant 0 : i32
    return %c0_i32, %c0_i32_0 : i32, i32
  }
  func.func @transform_7(%arg0: i32, %arg1: i32) -> (i32, i32) {
    %c0_i32 = arith.constant 0 : i32
    %c0_i32_0 = arith.constant 0 : i32
    %c0_i32_1 = arith.constant 0 : i32
    return %c0_i32, %c0_i32_0 : i32, i32
  }
  func.func @transform_8(%arg0: i32, %arg1: i32) -> (i32, i32) {
    %c0_i32 = arith.constant 0 : i32
    %c0_i32_0 = arith.constant 0 : i32
    return %arg0, %c0_i32 : i32, i32
  }
}

</mosaic_0001>

<llo_original>
// kernel: lstm_forward.1
$region0: #{lstm_forward.1}
  #allocation0 [shape = 'u32[]', space=smem, size = 0x4, offset = 0x4, fixed_abs, tag = 'smem constant byte address 0x4 - core index']
  #allocation1 [shape = 'u32[144,128]{1,0:T(1,128)}', space=vmem, size = 0x12000, scoped, tag = 'internal scratch']
  #allocation2 [shape = 'f32[8,64]{1,0:T(8,128)}', space=vmem, size = 0x1000, scoped, tag = 'scratch operand']
  #allocation3 [shape = 'f32[8,64]{1,0:T(8,128)}', space=vmem, size = 0x1000, scoped, tag = 'scratch operand']
  #allocation4 [shape = 'f32[8,64]{1,0:T(8,128)}', space=vmem, size = 0x1000, scoped, tag = 'scratch operand']
  #allocation5 [shape = 'f32[8,64]{1,0:T(8,128)}', space=vmem, size = 0x1000, scoped, tag = 'scratch operand']
  %s0 = inlined_call_operand.hbm [shape: f32[16,8,8], index: 0, kind: input, shape index: {}]
  %s1 = inlined_call_operand.hbm [shape: f32[8,256], index: 1, kind: input, shape index: {}]
  %s2 = inlined_call_operand.hbm [shape: f32[64,256], index: 2, kind: input, shape index: {}]
  %s3 = inlined_call_operand.hbm [shape: f32[128,256], index: 3, kind: input, shape index: {}]
  %s4 = inlined_call_operand.hbm [shape: f32[1,256], index: 4, kind: input, shape index: {}]
  %s5 = inlined_call_operand.hbm [shape: f32[1,256], index: 5, kind: input, shape index: {}]
  %s6 = inlined_call_operand.hbm [shape: f32[64,4], index: 6, kind: input, shape index: {}]
  %s7 = inlined_call_operand.hbm [shape: f32[1,4], index: 7, kind: input, shape index: {}]
  %s8 = inlined_call_operand.hbm [shape: f32[8,4], index: 8, kind: output, shape index: {}]
  %s9 = sld [smem:[#allocation0]]
  $region105: #{lstm_forward.1} parent=0
    _
  %s11 = ssub.s32 1, %s9
  %s12 = scalar_select 0, %s11, %s9
  $region1: #{lstm_forward.1} parent=0
    #allocation6 [shape = 'u8[65536]{0}', space=vmem, size = 0x10000, scoped, tag = 'input window, operand 0']
    #allocation7 [shape = 's32[2]{0}', space=sflag, size = 0x8, scoped, tag = 'scoped memory for lstm_forward.1']
    #allocation8 [shape = 's32[2]{0}', space=sflag, size = 0x8, scoped, tag = 'scoped memory for lstm_forward.1']
    #allocation9 [shape = 'u8[8192]{0}', space=vmem, size = 0x2000, scoped, tag = 'input window, operand 1, single buffered']
    #allocation10 [shape = 's32[1]{0}', space=sflag, size = 0x4, scoped, tag = 'scoped memory for lstm_forward.1']
    #allocation11 [shape = 'u8[65536]{0}', space=vmem, size = 0x10000, scoped, tag = 'input window, operand 2, single buffered']
    #allocation12 [shape = 'u8[131072]{0}', space=vmem, size = 0x20000, scoped, tag = 'input window, operand 3, single buffered']
    #allocation13 [shape = 's32[1]{0}', space=sflag, size = 0x4, scoped, tag = 'scoped memory for lstm_forward.1']
    #allocation14 [shape = 'u8[1024]{0}', space=vmem, size = 0x400, scoped, tag = 'input window, operand 4, single buffered']
    #allocation15 [shape = 'u8[1024]{0}', space=vmem, size = 0x400, scoped, tag = 'input window, operand 5, single buffered']
    #allocation16 [shape = 's32[1]{0}', space=sflag, size = 0x4, scoped, tag = 'scoped memory for lstm_forward.1']
    #allocation17 [shape = 'u8[32768]{0}', space=vmem, size = 0x8000, scoped, tag = 'input window, operand 6, single buffered']
    #allocation18 [shape = 'u8[512]{0}', space=vmem, size = 0x400, scoped, tag = 'input window, operand 7, single buffered']
    #allocation19 [shape = 's32[1]{0}', space=sflag, size = 0x4, scoped, tag = 'scoped memory for lstm_forward.1']
    #allocation20 [shape = 'u8[4096]{0}', space=vmem, size = 0x1000, scoped, tag = 'output window, operand 0, single buffered']
    %13 = vsyncpa [#allocation7], 0
    %s14 = scalar_lea.sflag [#allocation7], 1
    %15 = vsyncpa %s14, 0
    %16 = vsyncpa [#allocation10], 0
    %17 = vsyncpa [#allocation13], 0
    %18 = vsyncpa [#allocation16], 0
    %19 = vsyncpa [#allocation19], 0
    %20 = vsyncpa [#allocation8], 0
    loop: start=0, step=1, limit=4
    $region2: #{lstm_forward.1} parent=1 // loop_pre_header
      _
    $region3: #{lstm_forward.1} parent=1 // loop_header
      %s22 = sphi 0, %s26
      %p23 = scmp.ge.s32.totalorder %s22, 4
      %s29 = sphi 0, %s41
      %s30 = sphi 0, %s37
      %s31 = sphi 0, %s29
      %s32 = sphi 0, %s30
      %s33 = sphi 0, %s31
      %s34 = sphi 0, %s32
      %s46 = sphi 0, %s48
      %s49 = sphi 0, %s46
      %s50 = sphi 0, %s49
      %s66 = sphi 0, %s50
      %s70 = sphi 0, %s70
      %s72 = sphi 0, %s70
      %s73 = sphi 0, %s72
      %s87 = sphi 0, %s73
      %s91 = sphi 0, %s91
      %s93 = sphi 0, %s91
      %s94 = sphi 0, %s93
      %s108 = sphi 0, %s94
      %s112 = sphi 0, %s112
      %s114 = sphi 0, %s112
      %s115 = sphi 0, %s114
      %s129 = sphi 0, %s115
      %s133 = sphi 0, %s133
      %s135 = sphi 0, %s133
      %s136 = sphi 0, %s135
      %s150 = sphi 0, %s136
      %s154 = sphi 0, %s154
      %s156 = sphi 0, %s154
      %s157 = sphi 0, %s156
      %s171 = sphi 0, %s157
      %s175 = sphi 0, %s175
      %s177 = sphi 0, %s175
      %s178 = sphi 0, %s177
      %s192 = sphi 0, %s178
      %s196 = sphi 0, %s196
      %s198 = sphi 0, %s196
      %s199 = sphi 0, %s198
      %s213 = sphi 0, %s199
      %s219 = sphi 0, %s221
      %s222 = sphi 0, %s219
      %s223 = sphi 0, %s222
      %s239 = sphi 0, %s223
    $region4: #{lstm_forward.1} parent=1 // loop_header_branch
      %25 = sbr.rel (%p23) target = $region8
    $region5: #{lstm_forward.1} parent=1 // loop_body
      %s27 = ssub.s32 %s22, 1
      %s28 = ssub.s32 %s22, 2
      %s35 = sadd.s32 1, %s30
      %p36 = scmp.ge.s32.totalorder %s35, 2
      %s37 = scalar_select %p36, 0, %s35
      %s38 = sadd.s32 1, %s29
      %s39 = scalar_select %p36, %s38, %s29
      %p40 = scmp.ge.s32.totalorder %s39, 1
      %s41 = scalar_select %p40, 0, %s39
      %s42 = ssub.s32 %s30, %s37
      %s43 = ssub.s32 %s29, %s41
      %s44 = sor.u32 %s42, %s43
      %p45 = scmp.eq.s32.totalorder %s44, 0
      %s47 = sadd.s32 %s46, 1
      %s48 = scalar_select %p45, %s46, %s47
      %p51 = pneg %p45
      %p52 = scmp.eq.s32.totalorder %s22, 1
      %p53 = por %p51, %p52
      %p54 = scmp.ne.s32.totalorder %s46, %s49
      %p55 = scmp.eq.s32.totalorder %s22, 0
      %p56 = por %p54, %p55
      %p57 = scmp.ne.s32.totalorder %s46, %s49
      %p58 = scmp.eq.s32.totalorder %s27, 1
      %p59 = por %p57, %p58
      %p60 = scmp.ne.s32.totalorder %s49, %s50
      %p61 = scmp.eq.s32.totalorder %s27, 0
      %p62 = por %p60, %p61
      %p63 = scmp.ne.s32.totalorder %s49, %s50
      %p64 = scmp.eq.s32.totalorder %s28, 1
      %p65 = por %p63, %p64
      %p67 = scmp.ne.s32.totalorder %s50, %s66
      %p68 = scmp.eq.s32.totalorder %s28, 0
      %p69 = por %p67, %p68
      %s71 = sadd.s32 %s70, 1
      %p74 = scmp.eq.s32.totalorder %s22, 1
      %p75 = scmp.ne.s32.totalorder %s70, %s72
      %p76 = scmp.eq.s32.totalorder %s22, 0
      %p77 = por %p75, %p76
      %p78 = scmp.ne.s32.totalorder %s70, %s72
      %p79 = scmp.eq.s32.totalorder %s27, 1
      %p80 = por %p78, %p79
      %p81 = scmp.ne.s32.totalorder %s72, %s73
      %p82 = scmp.eq.s32.totalorder %s27, 0
      %p83 = por %p81, %p82
      %p84 = scmp.ne.s32.totalorder %s72, %s73
      %p85 = scmp.eq.s32.totalorder %s28, 1
      %p86 = por %p84, %p85
      %p88 = scmp.ne.s32.totalorder %s73, %s87
      %p89 = scmp.eq.s32.totalorder %s28, 0
      %p90 = por %p88, %p89
      %s92 = sadd.s32 %s91, 1
      %p95 = scmp.eq.s32.totalorder %s22, 1
      %p96 = scmp.ne.s32.totalorder %s91, %s93
      %p97 = scmp.eq.s32.totalorder %s22, 0
      %p98 = por %p96, %p97
      %p99 = scmp.ne.s32.totalorder %s91, %s93
      %p100 = scmp.eq.s32.totalorder %s27, 1
      %p101 = por %p99, %p100
      %p102 = scmp.ne.s32.totalorder %s93, %s94
      %p103 = scmp.eq.s32.totalorder %s27, 0
      %p104 = por %p102, %p103
      %p105 = scmp.ne.s32.totalorder %s93, %s94
      %p106 = scmp.eq.s32.totalorder %s28, 1
      %p107 = por %p105, %p106
      %p109 = scmp.ne.s32.totalorder %s94, %s108
      %p110 = scmp.eq.s32.totalorder %s28, 0
      %p111 = por %p109, %p110
      %s113 = sadd.s32 %s112, 1
      %p116 = scmp.eq.s32.totalorder %s22, 1
      %p117 = scmp.ne.s32.totalorder %s112, %s114
      %p118 = scmp.eq.s32.totalorder %s22, 0
      %p119 = por %p117, %p118
      %p120 = scmp.ne.s32.totalorder %s112, %s114
      %p121 = scmp.eq.s32.totalorder %s27, 1
      %p122 = por %p120, %p121
      %p123 = scmp.ne.s32.totalorder %s114, %s115
      %p124 = scmp.eq.s32.totalorder %s27, 0
      %p125 = por %p123, %p124
      %p126 = scmp.ne.s32.totalorder %s114, %s115
      %p127 = scmp.eq.s32.totalorder %s28, 1
      %p128 = por %p126, %p127
      %p130 = scmp.ne.s32.totalorder %s115, %s129
      %p131 = scmp.eq.s32.totalorder %s28, 0
      %p132 = por %p130, %p131
      %s134 = sadd.s32 %s133, 1
      %p137 = scmp.eq.s32.totalorder %s22, 1
      %p138 = scmp.ne.s32.totalorder %s133, %s135
      %p139 = scmp.eq.s32.totalorder %s22, 0
      %p140 = por %p138, %p139
      %p141 = scmp.ne.s32.totalorder %s133, %s135
      %p142 = scmp.eq.s32.totalorder %s27, 1
      %p143 = por %p141, %p142
      %p144 = scmp.ne.s32.totalorder %s135, %s136
      %p145 = scmp.eq.s32.totalorder %s27, 0
      %p146 = por %p144, %p145
      %p147 = scmp.ne.s32.totalorder %s135, %s136
      %p148 = scmp.eq.s32.totalorder %s28, 1
      %p149 = por %p147, %p148
      %p151 = scmp.ne.s32.totalorder %s136, %s150
      %p152 = scmp.eq.s32.totalorder %s28, 0
      %p153 = por %p151, %p152
      %s155 = sadd.s32 %s154, 1
      %p158 = scmp.eq.s32.totalorder %s22, 1
      %p159 = scmp.ne.s32.totalorder %s154, %s156
      %p160 = scmp.eq.s32.totalorder %s22, 0
      %p161 = por %p159, %p160
      %p162 = scmp.ne.s32.totalorder %s154, %s156
      %p163 = scmp.eq.s32.totalorder %s27, 1
      %p164 = por %p162, %p163
      %p165 = scmp.ne.s32.totalorder %s156, %s157
      %p166 = scmp.eq.s32.totalorder %s27, 0
      %p167 = por %p165, %p166
      %p168 = scmp.ne.s32.totalorder %s156, %s157
      %p169 = scmp.eq.s32.totalorder %s28, 1
      %p170 = por %p168, %p169
      %p172 = scmp.ne.s32.totalorder %s157, %s171
      %p173 = scmp.eq.s32.totalorder %s28, 0
      %p174 = por %p172, %p173
      %s176 = sadd.s32 %s175, 1
      %p179 = scmp.eq.s32.totalorder %s22, 1
      %p180 = scmp.ne.s32.totalorder %s175, %s177
      %p181 = scmp.eq.s32.totalorder %s22, 0
      %p182 = por %p180, %p181
      %p183 = scmp.ne.s32.totalorder %s175, %s177
      %p184 = scmp.eq.s32.totalorder %s27, 1
      %p185 = por %p183, %p184
      %p186 = scmp.ne.s32.totalorder %s177, %s178
      %p187 = scmp.eq.s32.totalorder %s27, 0
      %p188 = por %p186, %p187
      %p189 = scmp.ne.s32.totalorder %s177, %s178
      %p190 = scmp.eq.s32.totalorder %s28, 1
      %p191 = por %p189, %p190
      %p193 = scmp.ne.s32.totalorder %s178, %s192
      %p194 = scmp.eq.s32.totalorder %s28, 0
      %p195 = por %p193, %p194
      %s197 = sadd.s32 %s196, 1
      %p200 = scmp.eq.s32.totalorder %s22, 1
      %p201 = scmp.ne.s32.totalorder %s196, %s198
      %p202 = scmp.eq.s32.totalorder %s22, 0
      %p203 = por %p201, %p202
      %p204 = scmp.ne.s32.totalorder %s196, %s198
      %p205 = scmp.eq.s32.totalorder %s27, 1
      %p206 = por %p204, %p205
      %p207 = scmp.ne.s32.totalorder %s198, %s199
      %p208 = scmp.eq.s32.totalorder %s27, 0
      %p209 = por %p207, %p208
      %p210 = scmp.ne.s32.totalorder %s198, %s199
      %p211 = scmp.eq.s32.totalorder %s28, 1
      %p212 = por %p210, %p211
      %p214 = scmp.ne.s32.totalorder %s199, %s213
      %p215 = scmp.eq.s32.totalorder %s28, 0
      %p216 = por %p214, %p215
      %s217 = ssub.s32 %s29, %s41
      %p218 = scmp.eq.s32.totalorder %s217, 0
      %s220 = sadd.s32 %s219, 1
      %s221 = scalar_select %p218, %s219, %s220
      %p224 = pneg %p218
      %p225 = scmp.eq.s32.totalorder %s22, 1
      %p226 = por %p224, %p225
      %p227 = scmp.ne.s32.totalorder %s219, %s222
      %p228 = scmp.eq.s32.totalorder %s22, 0
      %p229 = por %p227, %p228
      %p230 = scmp.ne.s32.totalorder %s219, %s222
      %p231 = scmp.eq.s32.totalorder %s27, 1
      %p232 = por %p230, %p231
      %p233 = scmp.ne.s32.totalorder %s222, %s223
      %p234 = scmp.eq.s32.totalorder %s27, 0
      %p235 = por %p233, %p234
      %p236 = scmp.ne.s32.totalorder %s222, %s223
      %p237 = scmp.eq.s32.totalorder %s28, 1
      %p238 = por %p236, %p237
      %p240 = scmp.ne.s32.totalorder %s223, %s239
      %p241 = scmp.eq.s32.totalorder %s28, 0
      %p242 = por %p240, %p241
      %p243 = scmp.le.s32.totalorder 1, %s22
      %p244 = scmp.lt.s32.totalorder %s22, 3
      %p245 = pnand %p243, %p244
      %p246 = pneg %p245
      // Predicated region
      $region9: #{lstm_forward.1} parent=5 // pred_check
        _
      $region10: #{lstm_forward.1} parent=5 // pred_check_branch
        %248 = sbr.rel (%p245) target = $region12
      $region11: #{lstm_forward.1} parent=5 // pred_region
        %s249 = ssub.s32 %s22, 1
        // Predicated region
        $region13: #{lstm_forward.1} parent=11 // pred_check
          %p250 = pneg %p83
        $region14: #{lstm_forward.1} parent=11 // pred_check_branch
          %252 = sbr.rel (%p250) target = $region16
        $region15: #{lstm_forward.1} parent=11 // pred_region
          %s254 = ssub.s32 256, 256
          %255 = vsyncadd [#allocation10], %s254
          %s257 = sshll.u32 [#allocation9], 4
          %s258 = int_to_ptr.vmem [resolvable:$true] %s257
          %260 = dma.hbm_to_vmem [thread:$0]  %s1, 256, %s258, [#allocation10]
        $region16: #{lstm_forward.1} parent=11 // pred_fallthru
          _
        // Predicated region
        $region17: #{lstm_forward.1} parent=11 // pred_check
          %p261 = pneg %p104
        $region18: #{lstm_forward.1} parent=11 // pred_check_branch
          %263 = sbr.rel (%p261) target = $region20
        $region19: #{lstm_forward.1} parent=11 // pred_region
          %s265 = ssub.s32 2048, 2048
          %266 = vsyncadd [#allocation10], %s265
          %s267 = sshll.u32 [#allocation11], 4
          %s268 = int_to_ptr.vmem [resolvable:$true] %s267
          %273 = dma.hbm_to_vmem [thread:$0]  %s2, 2048, %s268, [#allocation10], 256, 256, 16
        $region20: #{lstm_forward.1} parent=11 // pred_fallthru
          _
        // Predicated region
        $region21: #{lstm_forward.1} parent=11 // pred_check
          %p274 = pneg %p125
        $region22: #{lstm_forward.1} parent=11 // pred_check_branch
          %276 = sbr.rel (%p274) target = $region24
        $region23: #{lstm_forward.1} parent=11 // pred_region
          %s278 = ssub.s32 4096, 4096
          %279 = vsyncadd [#allocation13], %s278
          %s280 = sshll.u32 [#allocation12], 4
          %s281 = int_to_ptr.vmem [resolvable:$true] %s280
          %286 = dma.hbm_to_vmem [thread:$0]  %s3, 4096, %s281, [#allocation13], 256, 256, 16
        $region24: #{lstm_forward.1} parent=11 // pred_fallthru
          _
        // Predicated region
        $region25: #{lstm_forward.1} parent=11 // pred_check
          %p287 = pneg %p146
        $region26: #{lstm_forward.1} parent=11 // pred_check_branch
          %289 = sbr.rel (%p287) target = $region28
        $region27: #{lstm_forward.1} parent=11 // pred_region
          %s291 = ssub.s32 32, 32
          %292 = vsyncadd [#allocation13], %s291
          %s294 = sshll.u32 [#allocation14], 4
          %s295 = int_to_ptr.vmem [resolvable:$true] %s294
          %297 = dma.hbm_to_vmem [thread:$0]  %s4, 32, %s295, [#allocation13]
        $region28: #{lstm_forward.1} parent=11 // pred_fallthru
          _
        // Predicated region
        $region29: #{lstm_forward.1} parent=11 // pred_check
          %p298 = pneg %p167
        $region30: #{lstm_forward.1} parent=11 // pred_check_branch
          %300 = sbr.rel (%p298) target = $region32
        $region31: #{lstm_forward.1} parent=11 // pred_region
          %s302 = ssub.s32 32, 32
          %303 = vsyncadd [#allocation16], %s302
          %s305 = sshll.u32 [#allocation15], 4
          %s306 = int_to_ptr.vmem [resolvable:$true] %s305
          %308 = dma.hbm_to_vmem [thread:$0]  %s5, 32, %s306, [#allocation16]
        $region32: #{lstm_forward.1} parent=11 // pred_fallthru
          _
        // Predicated region
        $region33: #{lstm_forward.1} parent=11 // pred_check
          %p309 = pneg %p188
        $region34: #{lstm_forward.1} parent=11 // pred_check_branch
          %311 = sbr.rel (%p309) target = $region36
        $region35: #{lstm_forward.1} parent=11 // pred_region
          %s313 = ssub.s32 1024, 1024
          %314 = vsyncadd [#allocation16], %s313
          %s315 = sshll.u32 [#allocation17], 4
          %s316 = int_to_ptr.vmem [resolvable:$true] %s315
          %321 = dma.hbm_to_vmem [thread:$0]  %s6, 1024, %s316, [#allocation16], 128, 128, 8
        $region36: #{lstm_forward.1} parent=11 // pred_fallthru
          _
        // Predicated region
        $region37: #{lstm_forward.1} parent=11 // pred_check
          %p322 = pneg %p209
        $region38: #{lstm_forward.1} parent=11 // pred_check_branch
          %324 = sbr.rel (%p322) target = $region40
        $region39: #{lstm_forward.1} parent=11 // pred_region
          %s326 = ssub.s32 16, 16
          %327 = vsyncadd [#allocation19], %s326
          %s329 = sshll.u32 [#allocation18], 4
          %s330 = int_to_ptr.vmem [resolvable:$true] %s329
          %332 = dma.hbm_to_vmem [thread:$0]  %s7, 16, %s330, [#allocation19]
        $region40: #{lstm_forward.1} parent=11 // pred_fallthru
          _
      $region12: #{lstm_forward.1} parent=5 // pred_fallthru
        _
      %p333 = scmp.lt.s32.totalorder %s22, 2
      // Predicated region
      $region41: #{lstm_forward.1} parent=5 // pred_check
        %p334 = pneg %p333
      $region42: #{lstm_forward.1} parent=5 // pred_check_branch
        %336 = sbr.rel (%p334) target = $region44
      $region43: #{lstm_forward.1} parent=5 // pred_region
        // Predicated region
        $region45: #{lstm_forward.1} parent=43 // pred_check
          %p337 = pneg %p56
        $region46: #{lstm_forward.1} parent=43 // pred_check_branch
          %339 = sbr.rel (%p337) target = $region48
        $region47: #{lstm_forward.1} parent=43 // pred_region
          %s340 = sand.u32 %s46, 1
          %s341 = scalar_lea.sflag [#allocation7], %s340
          %s342 = sand.u32 %s46, 1
          %s343 = smul.addr %s342, 64
          %s344 = scalar_lea.vmem [#allocation6], %s343
          %s345 = smul.u32 8, %s30
          %s347 = ssub.s32 1024, 1024
          %348 = vsyncadd %s341, %s347
          %s349 = sadd.s32 %s29, %s345
          %s350 = smul.addr %s349, 128
          %s351 = scalar_lea.hbm %s0, %s350
          %s352 = sshll.u32 %s344, 4
          %s353 = int_to_ptr.vmem [resolvable:$true] %s352
          %358 = dma.hbm_to_vmem [thread:$0]  %s351, 1024, %s353, %s341, 128, 128, 8
        $region48: #{lstm_forward.1} parent=43 // pred_fallthru
          _
      $region44: #{lstm_forward.1} parent=5 // pred_fallthru
        _
      %p359 = scmp.le.s32.totalorder 1, %s22
      %p360 = scmp.lt.s32.totalorder %s22, 3
      %p361 = pnand %p359, %p360
      %p362 = pneg %p361
      // Predicated region
      $region49: #{lstm_forward.1} parent=5 // pred_check
        _
      $region50: #{lstm_forward.1} parent=5 // pred_check_branch
        %364 = sbr.rel (%p361) target = $region52
      $region51: #{lstm_forward.1} parent=5 // pred_region
        %s365 = ssub.s32 %s22, 1
        %s366 = sand.u32 %s49, 1
        %s367 = scalar_lea.sflag [#allocation7], %s366
        %s368 = sand.u32 %s49, 1
        %s369 = smul.addr %s368, 64
        %s370 = scalar_lea.vmem [#allocation6], %s369
        // Predicated region
        $region53: #{lstm_forward.1} parent=51 // pred_check
          %p371 = pneg %p62
        $region54: #{lstm_forward.1} parent=51 // pred_check_branch
          %373 = sbr.rel (%p371) target = $region56
        $region55: #{lstm_forward.1} parent=51 // pred_region
          %374 = dma.done %s367, 1024
        $region56: #{lstm_forward.1} parent=51 // pred_fallthru
          _
        // Predicated region
        $region57: #{lstm_forward.1} parent=51 // pred_check
          %p375 = pneg %p83
        $region58: #{lstm_forward.1} parent=51 // pred_check_branch
          %377 = sbr.rel (%p375) target = $region60
        $region59: #{lstm_forward.1} parent=51 // pred_region
          %378 = dma.done [#allocation10], 256
        $region60: #{lstm_forward.1} parent=51 // pred_fallthru
          _
        // Predicated region
        $region61: #{lstm_forward.1} parent=51 // pred_check
          %p379 = pneg %p104
        $region62: #{lstm_forward.1} parent=51 // pred_check_branch
          %381 = sbr.rel (%p379) target = $region64
        $region63: #{lstm_forward.1} parent=51 // pred_region
          %382 = dma.done [#allocation10], 2048
        $region64: #{lstm_forward.1} parent=51 // pred_fallthru
          _
        // Predicated region
        $region65: #{lstm_forward.1} parent=51 // pred_check
          %p383 = pneg %p125
        $region66: #{lstm_forward.1} parent=51 // pred_check_branch
          %385 = sbr.rel (%p383) target = $region68
        $region67: #{lstm_forward.1} parent=51 // pred_region
          %386 = dma.done [#allocation13], 4096
        $region68: #{lstm_forward.1} parent=51 // pred_fallthru
          _
        // Predicated region
        $region69: #{lstm_forward.1} parent=51 // pred_check
          %p387 = pneg %p146
        $region70: #{lstm_forward.1} parent=51 // pred_check_branch
          %389 = sbr.rel (%p387) target = $region72
        $region71: #{lstm_forward.1} parent=51 // pred_region
          %390 = dma.done [#allocation13], 32
        $region72: #{lstm_forward.1} parent=51 // pred_fallthru
          _
        // Predicated region
        $region73: #{lstm_forward.1} parent=51 // pred_check
          %p391 = pneg %p167
        $region74: #{lstm_forward.1} parent=51 // pred_check_branch
          %393 = sbr.rel (%p391) target = $region76
        $region75: #{lstm_forward.1} parent=51 // pred_region
          %394 = dma.done [#allocation16], 32
        $region76: #{lstm_forward.1} parent=51 // pred_fallthru
          _
        // Predicated region
        $region77: #{lstm_forward.1} parent=51 // pred_check
          %p395 = pneg %p188
        $region78: #{lstm_forward.1} parent=51 // pred_check_branch
          %397 = sbr.rel (%p395) target = $region80
        $region79: #{lstm_forward.1} parent=51 // pred_region
          %398 = dma.done [#allocation16], 1024
        $region80: #{lstm_forward.1} parent=51 // pred_fallthru
          _
        // Predicated region
        $region81: #{lstm_forward.1} parent=51 // pred_check
          %p399 = pneg %p209
        $region82: #{lstm_forward.1} parent=51 // pred_check_branch
          %401 = sbr.rel (%p399) target = $region84
        $region83: #{lstm_forward.1} parent=51 // pred_region
          %402 = dma.done [#allocation19], 16
        $region84: #{lstm_forward.1} parent=51 // pred_fallthru
          _
        %s403 = sand.u32 %s49, 1
        %s404 = scalar_lea.sflag [#allocation7], %s403
        %s405 = sand.u32 %s49, 1
        %s406 = smul.addr %s405, 64
        %s407 = scalar_lea.vmem [#allocation6], %s406
        %p408 = pneg %p62
        %p409 = pneg %p59
        %p410 = pneg %p83
        %p411 = pneg %p80
        %p412 = pneg %p104
        %p413 = pneg %p101
        %p414 = pneg %p125
        %p415 = pneg %p122
        %p416 = pneg %p146
        %p417 = pneg %p143
        %p418 = pneg %p167
        %p419 = pneg %p164
        %p420 = pneg %p188
        %p421 = pneg %p185
        %p422 = pneg %p209
        %p423 = pneg %p206
        %p424 = pneg %p235
        %p425 = pneg %p232
        %s426 = smul.u32 8, %s32
        %p427 = scmp.eq.s32.totalorder %s32, 0
        // Predicated region
        $region85: #{lstm_forward.1} parent=51 // pred_check
          %p428 = pneg %p427
        $region86: #{lstm_forward.1} parent=51 // pred_check_branch
          %430 = sbr.rel (%p428) target = $region88
        $region87: #{lstm_forward.1} parent=51 // pred_region
          %vm431 = vcmask 523264
          %432 = vst.msk [vmem:[#allocation2] sm:$0xff] %vm431, 0.0
          %433 = vst.msk [vmem:[#allocation3] sm:$0xff] %vm431, 0.0
          %434 = vst.msk [vmem:[#allocation4] sm:$0xff] %vm431, 0.0
          %435 = vst.msk [vmem:[#allocation5] sm:$0xff] %vm431, 0.0
        $region88: #{lstm_forward.1} parent=51 // pred_fallthru
          _
        %v436 = vld [vmem:[#allocation9] sm:$0xff]
        %v437 = vld [vmem:[#allocation9 + $0x8] sm:$0xff]
        %v438 = vld [vmem:[#allocation11] sm:$0xff]
        %v439 = vld [vmem:[#allocation11 + $0x8] sm:$0xff]
        %v440 = vld [vmem:[#allocation11 + $0x10] sm:$0xff]
        %v441 = vld [vmem:[#allocation11 + $0x18] sm:$0xff]
        %v442 = vld [vmem:[#allocation11 + $0x20] sm:$0xff]
        %v443 = vld [vmem:[#allocation11 + $0x28] sm:$0xff]
        %v444 = vld [vmem:[#allocation11 + $0x30] sm:$0xff]
        %v445 = vld [vmem:[#allocation11 + $0x38] sm:$0xff]
        %v446 = vld [vmem:[#allocation11 + $0x40] sm:$0xff]
        %v447 = vld [vmem:[#allocation11 + $0x48] sm:$0xff]
        %v448 = vld [vmem:[#allocation11 + $0x50] sm:$0xff]
        %v449 = vld [vmem:[#allocation11 + $0x58] sm:$0xff]
        %v450 = vld [vmem:[#allocation11 + $0x60] sm:$0xff]
        %v451 = vld [vmem:[#allocation11 + $0x68] sm:$0xff]
        %v452 = vld [vmem:[#allocation11 + $0x70] sm:$0xff]
        %v453 = vld [vmem:[#allocation11 + $0x78] sm:$0xff]
        %v454 = vld [vmem:[#allocation12] sm:$0xff]
        %v455 = vld [vmem:[#allocation12 + $0x8] sm:$0xff]
        %v456 = vld [vmem:[#allocation12 + $0x10] sm:$0xff]
        %v457 = vld [vmem:[#allocation12 + $0x18] sm:$0xff]
        %v458 = vld [vmem:[#allocation12 + $0x20] sm:$0xff]
        %v459 = vld [vmem:[#allocation12 + $0x28] sm:$0xff]
        %v460 = vld [vmem:[#allocation12 + $0x30] sm:$0xff]
        %v461 = vld [vmem:[#allocation12 + $0x38] sm:$0xff]
        %v462 = vld [vmem:[#allocation12 + $0x40] sm:$0xff]
        %v463 = vld [vmem:[#allocation12 + $0x48] sm:$0xff]
        %v464 = vld [vmem:[#allocation12 + $0x50] sm:$0xff]
        %v465 = vld [vmem:[#allocation12 + $0x58] sm:$0xff]
        %v466 = vld [vmem:[#allocation12 + $0x60] sm:$0xff]
        %v467 = vld [vmem:[#allocation12 + $0x68] sm:$0xff]
        %v468 = vld [vmem:[#allocation12 + $0x70] sm:$0xff]
        %v469 = vld [vmem:[#allocation12 + $0x78] sm:$0xff]
        %v470 = vld [vmem:[#allocation12 + $0x80] sm:$0xff]
        %v471 = vld [vmem:[#allocation12 + $0x88] sm:$0xff]
        %v472 = vld [vmem:[#allocation12 + $0x90] sm:$0xff]
        %v473 = vld [vmem:[#allocation12 + $0x98] sm:$0xff]
        %v474 = vld [vmem:[#allocation12 + $0xa0] sm:$0xff]
        %v475 = vld [vmem:[#allocation12 + $0xa8] sm:$0xff]
        %v476 = vld [vmem:[#allocation12 + $0xb0] sm:$0xff]
        %v477 = vld [vmem:[#allocation12 + $0xb8] sm:$0xff]
        %v478 = vld [vmem:[#allocation12 + $0xc0] sm:$0xff]
        %v479 = vld [vmem:[#allocation12 + $0xc8] sm:$0xff]
        %v480 = vld [vmem:[#allocation12 + $0xd0] sm:$0xff]
        %v481 = vld [vmem:[#allocation12 + $0xd8] sm:$0xff]
        %v482 = vld [vmem:[#allocation12 + $0xe0] sm:$0xff]
        %v483 = vld [vmem:[#allocation12 + $0xe8] sm:$0xff]
        %v484 = vld [vmem:[#allocation12 + $0xf0] sm:$0xff]
        %v485 = vld [vmem:[#allocation12 + $0xf8] sm:$0xff]
        %v486 = vld [vmem:[#allocation14] sm:$0x3]
        %v488 = vlaneseq
        %v489 = vshrl.u32 %v488, 7
        %v490 = vsub.s32 0, %v489
        %v491 = vrot.slane %v486, %v490
        %v492 = vlaneseq
        %v493 = vshrl.u32 %v492, 7
        %v494 = vsub.s32 1, %v493
        %v495 = vrot.slane %v486, %v494
        %v498 = vld [vmem:[#allocation15] sm:$0x3]
        %v500 = vlaneseq
        %v501 = vshrl.u32 %v500, 7
        %v502 = vsub.s32 0, %v501
        %v503 = vrot.slane %v498, %v502
        %v504 = vlaneseq
        %v505 = vshrl.u32 %v504, 7
        %v506 = vsub.s32 1, %v505
        %v507 = vrot.slane %v498, %v506
        %v510 = vld [vmem:[#allocation2] sm:$0xff]
        %v511 = vld [vmem:[#allocation3] sm:$0xff]
        %v512 = vld [vmem:[#allocation4] sm:$0xff]
        %v513 = vld [vmem:[#allocation5] sm:$0xff]
        %v514 = vld [vmem:[%s370] sm:$0xff]
        %vm515 = vcmask 523264
        %v517 = vsel %vm515, %v510, 0
        %519 = vmatprep.subr.mxu0 %v439
        %520 = vmatpush1.msra.mxu0 %v438
        %521 = vmatprep.subr.mxu0 %v441
        %522 = vmatpush1.msra.mxu0 %v440
        %523 = vmatprep.subr.mxu0 %v443
        %524 = vmatpush1.msra.mxu0 %v442
        %525 = vmatprep.subr.mxu0 %v445
        %526 = vmatpush1.msra.mxu0 %v444
        %527 = vmatprep.subr.mxu0 %v447
        %528 = vmatpush1.msra.mxu0 %v446
        %529 = vmatprep.subr.mxu0 %v449
        %530 = vmatpush1.msra.mxu0 %v448
        %531 = vmatprep.subr.mxu0 %v451
        %532 = vmatpush1.msra.mxu0 %v450
        %533 = vmatprep.subr.mxu0 %v453
        %534 = vmatpush1.msra.mxu0 %v452
        %535 = vmatprep.subr.mxu0 0.0
        %536 = vmatpush1.msra.mxu0 0.0
        %537 = vmatprep.subr.mxu0 0.0
        %538 = vmatpush1.msra.mxu0 0.0
        %539 = vmatprep.subr.mxu0 0.0
        %540 = vmatpush1.msra.mxu0 0.0
        %541 = vmatprep.subr.mxu0 0.0
        %542 = vmatpush1.msra.mxu0 0.0
        %543 = vmatprep.subr.mxu0 0.0
        %544 = vmatpush1.msra.mxu0 0.0
        %545 = vmatprep.subr.mxu0 0.0
        %546 = vmatpush1.msra.mxu0 0.0
        %547 = vmatprep.subr.mxu0 0.0
        %548 = vmatpush1.msra.mxu0 0.0
        %549 = vmatprep.subr.mxu0 0.0
        %550 = vmatpush1.msra.mxu0 0.0
        %551 = vmatprep.subr.mxu0 0.0
        %552 = vmatpush1.msra.mxu0 0.0
        %553 = vmatprep.subr.mxu0 0.0
        %554 = vmatpush1.msra.mxu0 0.0
        %555 = vmatprep.subr.mxu0 0.0
        %556 = vmatpush1.msra.mxu0 0.0
        %557 = vmatprep.subr.mxu0 0.0
        %558 = vmatpush1.msra.mxu0 0.0
        %559 = vmatprep.subr.mxu0 0.0
        %560 = vmatpush1.msra.mxu0 0.0
        %561 = vmatprep.subr.mxu0 0.0
        %562 = vmatpush1.msra.mxu0 0.0
        %563 = vmatprep.subr.mxu0 0.0
        %564 = vmatpush1.msra.mxu0 0.0
        %565 = vmatprep.subr.mxu0 0.0
        %566 = vmatpush1.msra.mxu0 0.0
        %567 = vmatprep.subr.mxu0 0.0
        %568 = vmatpush1.msra.mxu0 0.0
        %569 = vmatprep.subr.mxu0 0.0
        %570 = vmatpush1.msra.mxu0 0.0
        %571 = vmatprep.subr.mxu0 0.0
        %572 = vmatpush1.msra.mxu0 0.0
        %573 = vmatprep.subr.mxu0 0.0
        %574 = vmatpush1.msra.mxu0 0.0
        %575 = vmatprep.subr.mxu0 0.0
        %576 = vmatpush1.msra.mxu0 0.0
        %577 = vmatprep.subr.mxu0 0.0
        %578 = vmatpush1.msra.mxu0 0.0
        %579 = vmatprep.subr.mxu0 0.0
        %580 = vmatpush1.msra.mxu0 0.0
        %581 = vmatprep.subr.mxu0 0.0
        %582 = vmatpush1.msra.mxu0 0.0
        %583 = vmatprep.mubr.f32.mxu0 0.0
        %584 = vmatmul.mubr.f32.gmra.mrb[0].mxu0 %v517
        %v585 = vpop.f32.mrb[0].mxu0
        %v586 = vadd.f32 0.0, %v585
        %v587 = vpop.f32.mrb[0].mxu0
        %v588 = vadd.f32 0.0, %v587
        %589 = vdwg.mxu0
        %vm590 = vcmask 64512
        %v592 = vsel %vm590, %v514, 0
        %594 = vmatprep.subr.mxu0 %v437
        %595 = vmatpush1.msra.mxu0 %v436
        %596 = vmatprep.subr.mxu0 0.0
        %597 = vmatpush1.msra.mxu0 0.0
        %598 = vmatprep.subr.mxu0 0.0
        %599 = vmatpush1.msra.mxu0 0.0
        %600 = vmatprep.subr.mxu0 0.0
        %601 = vmatpush1.msra.mxu0 0.0
        %602 = vmatprep.subr.mxu0 0.0
        %603 = vmatpush1.msra.mxu0 0.0
        %604 = vmatprep.subr.mxu0 0.0
        %605 = vmatpush1.msra.mxu0 0.0
        %606 = vmatprep.subr.mxu0 0.0
        %607 = vmatpush1.msra.mxu0 0.0
        %608 = vmatprep.subr.mxu0 0.0
        %609 = vmatpush1.msra.mxu0 0.0
        %610 = vmatprep.subr.mxu0 0.0
        %611 = vmatpush1.msra.mxu0 0.0
        %612 = vmatprep.subr.mxu0 0.0
        %613 = vmatpush1.msra.mxu0 0.0
        %614 = vmatprep.subr.mxu0 0.0
        %615 = vmatpush1.msra.mxu0 0.0
        %616 = vmatprep.subr.mxu0 0.0
        %617 = vmatpush1.msra.mxu0 0.0
        %618 = vmatprep.subr.mxu0 0.0
        %619 = vmatpush1.msra.mxu0 0.0
        %620 = vmatprep.subr.mxu0 0.0
        %621 = vmatpush1.msra.mxu0 0.0
        %622 = vmatprep.subr.mxu0 0.0
        %623 = vmatpush1.msra.mxu0 0.0
        %624 = vmatprep.subr.mxu0 0.0
        %625 = vmatpush1.msra.mxu0 0.0
        %626 = vmatprep.subr.mxu0 0.0
        %627 = vmatpush1.msra.mxu0 0.0
        %628 = vmatprep.subr.mxu0 0.0
        %629 = vmatpush1.msra.mxu0 0.0
        %630 = vmatprep.subr.mxu0 0.0
        %631 = vmatpush1.msra.mxu0 0.0
        %632 = vmatprep.subr.mxu0 0.0
        %633 = vmatpush1.msra.mxu0 0.0
        %634 = vmatprep.subr.mxu0 0.0
        %635 = vmatpush1.msra.mxu0 0.0
        %636 = vmatprep.subr.mxu0 0.0
        %637 = vmatpush1.msra.mxu0 0.0
        %638 = vmatprep.subr.mxu0 0.0
        %639 = vmatpush1.msra.mxu0 0.0
        %640 = vmatprep.subr.mxu0 0.0
        %641 = vmatpush1.msra.mxu0 0.0
        %642 = vmatprep.subr.mxu0 0.0
        %643 = vmatpush1.msra.mxu0 0.0
        %644 = vmatprep.subr.mxu0 0.0
        %645 = vmatpush1.msra.mxu0 0.0
        %646 = vmatprep.subr.mxu0 0.0
        %647 = vmatpush1.msra.mxu0 0.0
        %648 = vmatprep.subr.mxu0 0.0
        %649 = vmatpush1.msra.mxu0 0.0
        %650 = vmatprep.subr.mxu0 0.0
        %651 = vmatpush1.msra.mxu0 0.0
        %652 = vmatprep.subr.mxu0 0.0
        %653 = vmatpush1.msra.mxu0 0.0
        %654 = vmatprep.subr.mxu0 0.0
        %655 = vmatpush1.msra.mxu0 0.0
        %656 = vmatprep.subr.mxu0 0.0
        %657 = vmatpush1.msra.mxu0 0.0
        %658 = vmatprep.mubr.f32.mxu0 0.0
        %659 = vmatmul.mubr.f32.gmra.mrb[0].mxu0 %v592
        %v660 = vpop.f32.mrb[0].mxu0
        %v661 = vadd.f32 %v586, %v660
        %v662 = vpop.f32.mrb[0].mxu0
        %v663 = vadd.f32 %v588, %v662
        %664 = vdwg.mxu0
        %v665 = vadd.f32 %v661, %v491
        %v666 = vadd.f32 %v663, %v495
        %v667 = vxor.u32 %v665, 2147483648
        %v668 = vxor.u32 %v666, 2147483648
        %v669 = vmul.f32 %v667, 1.442695
        %v670 = vpow.pop %v669
        %v671 = vmul.f32 %v668, 1.442695
        %v672 = vpow.pop %v671
        %v673 = vadd.f32 %v670, 1.0
        %v674 = vadd.f32 %v672, 1.0
        %v675 = vrcp.pop %v673
        %v676 = vmul.f32 1.0, %v675
        %v677 = vrcp.pop %v674
        %v678 = vmul.f32 1.0, %v677
        %v679 = vtanh.pop %v666
        %681 = vrot.lane.b32.xlu0 %v511, 64
        %v682 = vpop.permute.xlu0 %681
        %v684 = vmul.f32 %v676, %v682
        %686 = vrot.lane.b32.xlu0 %v679, 64
        %v687 = vpop.permute.xlu0 %686
        %v689 = vmul.f32 %v676, %v687
        %691 = vrot.lane.b32.xlu0 %v689, 64
        %v692 = vpop.permute.xlu0 %691
        %v694 = vadd.f32 %v684, %v692
        %v695 = vtanh.pop %v694
        %697 = vrot.lane.b32.xlu0 %v695, 64
        %v698 = vpop.permute.xlu0 %697
        %v700 = vmul.f32 %v678, %v698
        %702 = vrot.lane.b32.xlu0 %v512, 64
        %v703 = vpop.permute.xlu0 %702
        %v705 = vsel %vm515, %v700, %v703
        %706 = vmatprep.subr.mxu0 %v455
        %707 = vmatpush1.msra.mxu0 %v454
        %708 = vmatprep.subr.mxu0 %v457
        %709 = vmatpush1.msra.mxu0 %v456
        %710 = vmatprep.subr.mxu0 %v459
        %711 = vmatpush1.msra.mxu0 %v458
        %712 = vmatprep.subr.mxu0 %v461
        %713 = vmatpush1.msra.mxu0 %v460
        %714 = vmatprep.subr.mxu0 %v463
        %715 = vmatpush1.msra.mxu0 %v462
        %716 = vmatprep.subr.mxu0 %v465
        %717 = vmatpush1.msra.mxu0 %v464
        %718 = vmatprep.subr.mxu0 %v467
        %719 = vmatpush1.msra.mxu0 %v466
        %720 = vmatprep.subr.mxu0 %v469
        %721 = vmatpush1.msra.mxu0 %v468
        %722 = vmatprep.subr.mxu0 %v471
        %723 = vmatpush1.msra.mxu0 %v470
        %724 = vmatprep.subr.mxu0 %v473
        %725 = vmatpush1.msra.mxu0 %v472
        %726 = vmatprep.subr.mxu0 %v475
        %727 = vmatpush1.msra.mxu0 %v474
        %728 = vmatprep.subr.mxu0 %v477
        %729 = vmatpush1.msra.mxu0 %v476
        %730 = vmatprep.subr.mxu0 %v479
        %731 = vmatpush1.msra.mxu0 %v478
        %732 = vmatprep.subr.mxu0 %v481
        %733 = vmatpush1.msra.mxu0 %v480
        %734 = vmatprep.subr.mxu0 %v483
        %735 = vmatpush1.msra.mxu0 %v482
        %736 = vmatprep.subr.mxu0 %v485
        %737 = vmatpush1.msra.mxu0 %v484
        %738 = vmatprep.subr.mxu0 0.0
        %739 = vmatpush1.msra.mxu0 0.0
        %740 = vmatprep.subr.mxu0 0.0
        %741 = vmatpush1.msra.mxu0 0.0
        %742 = vmatprep.subr.mxu0 0.0
        %743 = vmatpush1.msra.mxu0 0.0
        %744 = vmatprep.subr.mxu0 0.0
        %745 = vmatpush1.msra.mxu0 0.0
        %746 = vmatprep.subr.mxu0 0.0
        %747 = vmatpush1.msra.mxu0 0.0
        %748 = vmatprep.subr.mxu0 0.0
        %749 = vmatpush1.msra.mxu0 0.0
        %750 = vmatprep.subr.mxu0 0.0
        %751 = vmatpush1.msra.mxu0 0.0
        %752 = vmatprep.subr.mxu0 0.0
        %753 = vmatpush1.msra.mxu0 0.0
        %754 = vmatprep.subr.mxu0 0.0
        %755 = vmatpush1.msra.mxu0 0.0
        %756 = vmatprep.subr.mxu0 0.0
        %757 = vmatpush1.msra.mxu0 0.0
        %758 = vmatprep.subr.mxu0 0.0
        %759 = vmatpush1.msra.mxu0 0.0
        %760 = vmatprep.subr.mxu0 0.0
        %761 = vmatpush1.msra.mxu0 0.0
        %762 = vmatprep.subr.mxu0 0.0
        %763 = vmatpush1.msra.mxu0 0.0
        %764 = vmatprep.subr.mxu0 0.0
        %765 = vmatpush1.msra.mxu0 0.0
        %766 = vmatprep.subr.mxu0 0.0
        %767 = vmatpush1.msra.mxu0 0.0
        %768 = vmatprep.subr.mxu0 0.0
        %769 = vmatpush1.msra.mxu0 0.0
        %770 = vmatprep.mubr.f32.mxu0 0.0
        %771 = vmatmul.mubr.f32.gmra.mrb[0].mxu0 %v705
        %v772 = vpop.f32.mrb[0].mxu0
        %v773 = vadd.f32 %v503, %v772
        %v774 = vpop.f32.mrb[0].mxu0
        %v775 = vadd.f32 %v507, %v774
        %776 = vdwg.mxu0
        %v777 = vxor.u32 %v773, 2147483648
        %v778 = vxor.u32 %v775, 2147483648
        %v779 = vmul.f32 %v777, 1.442695
        %v780 = vpow.pop %v779
        %v781 = vmul.f32 %v778, 1.442695
        %v782 = vpow.pop %v781
        %v783 = vadd.f32 %v780, 1.0
        %v784 = vadd.f32 %v782, 1.0
        %v785 = vrcp.pop %v783
        %v786 = vmul.f32 1.0, %v785
        %v787 = vrcp.pop %v784
        %v788 = vmul.f32 1.0, %v787
        %v789 = vtanh.pop %v775
        %791 = vrot.lane.b32.xlu0 %v513, 64
        %v792 = vpop.permute.xlu0 %791
        %v794 = vmul.f32 %v786, %v792
        %796 = vrot.lane.b32.xlu0 %v789, 64
        %v797 = vpop.permute.xlu0 %796
        %v799 = vmul.f32 %v786, %v797
        %801 = vrot.lane.b32.xlu0 %v799, 64
        %v802 = vpop.permute.xlu0 %801
        %v804 = vadd.f32 %v794, %v802
        %v805 = vtanh.pop %v804
        %807 = vrot.lane.b32.xlu0 %v805, 64
        %v808 = vpop.permute.xlu0 %807
        %v810 = vmul.f32 %v788, %v808
        %s811 = scalar_lea.vmem %s370, 8 [#allocation6]
        %v812 = vld [vmem:[%s811] sm:$0xff]
        %v814 = vsel %vm515, %v700, 0
        %816 = vmatprep.subr.mxu0 %v439
        %817 = vmatpush1.msra.mxu0 %v438
        %818 = vmatprep.subr.mxu0 %v441
        %819 = vmatpush1.msra.mxu0 %v440
        %820 = vmatprep.subr.mxu0 %v443
        %821 = vmatpush1.msra.mxu0 %v442
        %822 = vmatprep.subr.mxu0 %v445
        %823 = vmatpush1.msra.mxu0 %v444
        %824 = vmatprep.subr.mxu0 %v447
        %825 = vmatpush1.msra.mxu0 %v446
        %826 = vmatprep.subr.mxu0 %v449
        %827 = vmatpush1.msra.mxu0 %v448
        %828 = vmatprep.subr.mxu0 %v451
        %829 = vmatpush1.msra.mxu0 %v450
        %830 = vmatprep.subr.mxu0 %v453
        %831 = vmatpush1.msra.mxu0 %v452
        %832 = vmatprep.subr.mxu0 0.0
        %833 = vmatpush1.msra.mxu0 0.0
        %834 = vmatprep.subr.mxu0 0.0
        %835 = vmatpush1.msra.mxu0 0.0
        %836 = vmatprep.subr.mxu0 0.0
        %837 = vmatpush1.msra.mxu0 0.0
        %838 = vmatprep.subr.mxu0 0.0
        %839 = vmatpush1.msra.mxu0 0.0
        %840 = vmatprep.subr.mxu0 0.0
        %841 = vmatpush1.msra.mxu0 0.0
        %842 = vmatprep.subr.mxu0 0.0
        %843 = vmatpush1.msra.mxu0 0.0
        %844 = vmatprep.subr.mxu0 0.0
        %845 = vmatpush1.msra.mxu0 0.0
        %846 = vmatprep.subr.mxu0 0.0
        %847 = vmatpush1.msra.mxu0 0.0
        %848 = vmatprep.subr.mxu0 0.0
        %849 = vmatpush1.msra.mxu0 0.0
        %850 = vmatprep.subr.mxu0 0.0
        %851 = vmatpush1.msra.mxu0 0.0
        %852 = vmatprep.subr.mxu0 0.0
        %853 = vmatpush1.msra.mxu0 0.0
        %854 = vmatprep.subr.mxu0 0.0
        %855 = vmatpush1.msra.mxu0 0.0
        %856 = vmatprep.subr.mxu0 0.0
        %857 = vmatpush1.msra.mxu0 0.0
        %858 = vmatprep.subr.mxu0 0.0
        %859 = vmatpush1.msra.mxu0 0.0
        %860 = vmatprep.subr.mxu0 0.0
        %861 = vmatpush1.msra.mxu0 0.0
        %862 = vmatprep.subr.mxu0 0.0
        %863 = vmatpush1.msra.mxu0 0.0
        %864 = vmatprep.subr.mxu0 0.0
        %865 = vmatpush1.msra.mxu0 0.0
        %866 = vmatprep.subr.mxu0 0.0
        %867 = vmatpush1.msra.mxu0 0.0
        %868 = vmatprep.subr.mxu0 0.0
        %869 = vmatpush1.msra.mxu0 0.0
        %870 = vmatprep.subr.mxu0 0.0
        %871 = vmatpush1.msra.mxu0 0.0
        %872 = vmatprep.subr.mxu0 0.0
        %873 = vmatpush1.msra.mxu0 0.0
        %874 = vmatprep.subr.mxu0 0.0
        %875 = vmatpush1.msra.mxu0 0.0
        %876 = vmatprep.subr.mxu0 0.0
        %877 = vmatpush1.msra.mxu0 0.0
        %878 = vmatprep.subr.mxu0 0.0
        %879 = vmatpush1.msra.mxu0 0.0
        %880 = vmatprep.mubr.f32.mxu0 0.0
        %881 = vmatmul.mubr.f32.gmra.mrb[0].mxu0 %v814
        %v882 = vpop.f32.mrb[0].mxu0
        %v883 = vadd.f32 0.0, %v882
        %v884 = vpop.f32.mrb[0].mxu0
        %v885 = vadd.f32 0.0, %v884
        %886 = vdwg.mxu0
        %v888 = vsel %vm590, %v812, 0
        %890 = vmatprep.subr.mxu0 %v437
        %891 = vmatpush1.msra.mxu0 %v436
        %892 = vmatprep.subr.mxu0 0.0
        %893 = vmatpush1.msra.mxu0 0.0
        %894 = vmatprep.subr.mxu0 0.0
        %895 = vmatpush1.msra.mxu0 0.0
        %896 = vmatprep.subr.mxu0 0.0
        %897 = vmatpush1.msra.mxu0 0.0
        %898 = vmatprep.subr.mxu0 0.0
        %899 = vmatpush1.msra.mxu0 0.0
        %900 = vmatprep.subr.mxu0 0.0
        %901 = vmatpush1.msra.mxu0 0.0
        %902 = vmatprep.subr.mxu0 0.0
        %903 = vmatpush1.msra.mxu0 0.0
        %904 = vmatprep.subr.mxu0 0.0
        %905 = vmatpush1.msra.mxu0 0.0
        %906 = vmatprep.subr.mxu0 0.0
        %907 = vmatpush1.msra.mxu0 0.0
        %908 = vmatprep.subr.mxu0 0.0
        %909 = vmatpush1.msra.mxu0 0.0
        %910 = vmatprep.subr.mxu0 0.0
        %911 = vmatpush1.msra.mxu0 0.0
        %912 = vmatprep.subr.mxu0 0.0
        %913 = vmatpush1.msra.mxu0 0.0
        %914 = vmatprep.subr.mxu0 0.0
        %915 = vmatpush1.msra.mxu0 0.0
        %916 = vmatprep.subr.mxu0 0.0
        %917 = vmatpush1.msra.mxu0 0.0
        %918 = vmatprep.subr.mxu0 0.0
        %919 = vmatpush1.msra.mxu0 0.0
        %920 = vmatprep.subr.mxu0 0.0
        %921 = vmatpush1.msra.mxu0 0.0
        %922 = vmatprep.subr.mxu0 0.0
        %923 = vmatpush1.msra.mxu0 0.0
        %924 = vmatprep.subr.mxu0 0.0
        %925 = vmatpush1.msra.mxu0 0.0
        %926 = vmatprep.subr.mxu0 0.0
        %927 = vmatpush1.msra.mxu0 0.0
        %928 = vmatprep.subr.mxu0 0.0
        %929 = vmatpush1.msra.mxu0 0.0
        %930 = vmatprep.subr.mxu0 0.0
        %931 = vmatpush1.msra.mxu0 0.0
        %932 = vmatprep.subr.mxu0 0.0
        %933 = vmatpush1.msra.mxu0 0.0
        %934 = vmatprep.subr.mxu0 0.0
        %935 = vmatpush1.msra.mxu0 0.0
        %936 = vmatprep.subr.mxu0 0.0
        %937 = vmatpush1.msra.mxu0 0.0
        %938 = vmatprep.subr.mxu0 0.0
        %939 = vmatpush1.msra.mxu0 0.0
        %940 = vmatprep.subr.mxu0 0.0
        %941 = vmatpush1.msra.mxu0 0.0
        %942 = vmatprep.subr.mxu0 0.0
        %943 = vmatpush1.msra.mxu0 0.0
        %944 = vmatprep.subr.mxu0 0.0
        %945 = vmatpush1.msra.mxu0 0.0
        %946 = vmatprep.subr.mxu0 0.0
        %947 = vmatpush1.msra.mxu0 0.0
        %948 = vmatprep.subr.mxu0 0.0
        %949 = vmatpush1.msra.mxu0 0.0
        %950 = vmatprep.subr.mxu0 0.0
        %951 = vmatpush1.msra.mxu0 0.0
        %952 = vmatprep.subr.mxu0 0.0
        %953 = vmatpush1.msra.mxu0 0.0
        %954 = vmatprep.mubr.f32.mxu0 0.0
        %955 = vmatmul.mubr.f32.gmra.mrb[0].mxu0 %v888
        %v956 = vpop.f32.mrb[0].mxu0
        %v957 = vadd.f32 %v883, %v956
        %v958 = vpop.f32.mrb[0].mxu0
        %v959 = vadd.f32 %v885, %v958
        %960 = vdwg.mxu0
        %v961 = vadd.f32 %v957, %v491
        %v962 = vadd.f32 %v959, %v495
        %v963 = vxor.u32 %v961, 2147483648
        %v964 = vxor.u32 %v962, 2147483648
        %v965 = vmul.f32 %v963, 1.442695
        %v966 = vpow.pop %v965
        %v967 = vmul.f32 %v964, 1.442695
        %v968 = vpow.pop %v967
        %v969 = vadd.f32 %v966, 1.0
        %v970 = vadd.f32 %v968, 1.0
        %v971 = vrcp.pop %v969
        %v972 = vmul.f32 1.0, %v971
        %v973 = vrcp.pop %v970
        %v974 = vmul.f32 1.0, %v973
        %v975 = vtanh.pop %v962
        %v976 = vmul.f32 %v972, %v694
        %978 = vrot.lane.b32.xlu0 %v975, 64
        %v979 = vpop.permute.xlu0 %978
        %v981 = vmul.f32 %v972, %v979
        %983 = vrot.lane.b32.xlu0 %v981, 64
        %v984 = vpop.permute.xlu0 %983
        %v986 = vadd.f32 %v976, %v984
        %v987 = vtanh.pop %v986
        %989 = vrot.lane.b32.xlu0 %v987, 64
        %v990 = vpop.permute.xlu0 %989
        %v992 = vmul.f32 %v974, %v990
        %994 = vrot.lane.b32.xlu0 %v810, 64
        %v995 = vpop.permute.xlu0 %994
        %v997 = vsel %vm515, %v992, %v995
        %998 = vmatprep.subr.mxu0 %v455
        %999 = vmatpush1.msra.mxu0 %v454
        %1000 = vmatprep.subr.mxu0 %v457
        %1001 = vmatpush1.msra.mxu0 %v456
        %1002 = vmatprep.subr.mxu0 %v459
        %1003 = vmatpush1.msra.mxu0 %v458
        %1004 = vmatprep.subr.mxu0 %v461
        %1005 = vmatpush1.msra.mxu0 %v460
        %1006 = vmatprep.subr.mxu0 %v463
        %1007 = vmatpush1.msra.mxu0 %v462
        %1008 = vmatprep.subr.mxu0 %v465
        %1009 = vmatpush1.msra.mxu0 %v464
        %1010 = vmatprep.subr.mxu0 %v467
        %1011 = vmatpush1.msra.mxu0 %v466
        %1012 = vmatprep.subr.mxu0 %v469
        %1013 = vmatpush1.msra.mxu0 %v468
        %1014 = vmatprep.subr.mxu0 %v471
        %1015 = vmatpush1.msra.mxu0 %v470
        %1016 = vmatprep.subr.mxu0 %v473
        %1017 = vmatpush1.msra.mxu0 %v472
        %1018 = vmatprep.subr.mxu0 %v475
        %1019 = vmatpush1.msra.mxu0 %v474
        %1020 = vmatprep.subr.mxu0 %v477
        %1021 = vmatpush1.msra.mxu0 %v476
        %1022 = vmatprep.subr.mxu0 %v479
        %1023 = vmatpush1.msra.mxu0 %v478
        %1024 = vmatprep.subr.mxu0 %v481
        %1025 = vmatpush1.msra.mxu0 %v480
        %1026 = vmatprep.subr.mxu0 %v483
        %1027 = vmatpush1.msra.mxu0 %v482
        %1028 = vmatprep.subr.mxu0 %v485
        %1029 = vmatpush1.msra.mxu0 %v484
        %1030 = vmatprep.subr.mxu0 0.0
        %1031 = vmatpush1.msra.mxu0 0.0
        %1032 = vmatprep.subr.mxu0 0.0
        %1033 = vmatpush1.msra.mxu0 0.0
        %1034 = vmatprep.subr.mxu0 0.0
        %1035 = vmatpush1.msra.mxu0 0.0
        %1036 = vmatprep.subr.mxu0 0.0
        %1037 = vmatpush1.msra.mxu0 0.0
        %1038 = vmatprep.subr.mxu0 0.0
        %1039 = vmatpush1.msra.mxu0 0.0
        %1040 = vmatprep.subr.mxu0 0.0
        %1041 = vmatpush1.msra.mxu0 0.0
        %1042 = vmatprep.subr.mxu0 0.0
        %1043 = vmatpush1.msra.mxu0 0.0
        %1044 = vmatprep.subr.mxu0 0.0
        %1045 = vmatpush1.msra.mxu0 0.0
        %1046 = vmatprep.subr.mxu0 0.0
        %1047 = vmatpush1.msra.mxu0 0.0
        %1048 = vmatprep.subr.mxu0 0.0
        %1049 = vmatpush1.msra.mxu0 0.0
        %1050 = vmatprep.subr.mxu0 0.0
        %1051 = vmatpush1.msra.mxu0 0.0
        %1052 = vmatprep.subr.mxu0 0.0
        %1053 = vmatpush1.msra.mxu0 0.0
        %1054 = vmatprep.subr.mxu0 0.0
        %1055 = vmatpush1.msra.mxu0 0.0
        %1056 = vmatprep.subr.mxu0 0.0
        %1057 = vmatpush1.msra.mxu0 0.0
        %1058 = vmatprep.subr.mxu0 0.0
        %1059 = vmatpush1.msra.mxu0 0.0
        %1060 = vmatprep.subr.mxu0 0.0
        %1061 = vmatpush1.msra.mxu0 0.0
        %1062 = vmatprep.mubr.f32.mxu0 0.0
        %1063 = vmatmul.mubr.f32.gmra.mrb[0].mxu0 %v997
        %v1064 = vpop.f32.mrb[0].mxu0
        %v1065 = vadd.f32 %v503, %v1064
        %v1066 = vpop.f32.mrb[0].mxu0
        %v1067 = vadd.f32 %v507, %v1066
        %1068 = vdwg.mxu0
        %v1069 = vxor.u32 %v1065, 2147483648
        %v1070 = vxor.u32 %v1067, 2147483648
        %v1071 = vmul.f32 %v1069, 1.442695
        %v1072 = vpow.pop %v1071
        %v1073 = vmul.f32 %v1070, 1.442695
        %v1074 = vpow.pop %v1073
        %v1075 = vadd.f32 %v1072, 1.0
        %v1076 = vadd.f32 %v1074, 1.0
        %v1077 = vrcp.pop %v1075
        %v1078 = vmul.f32 1.0, %v1077
        %v1079 = vrcp.pop %v1076
        %v1080 = vmul.f32 1.0, %v1079
        %v1081 = vtanh.pop %v1067
        %v1082 = vmul.f32 %v1078, %v804
        %1084 = vrot.lane.b32.xlu0 %v1081, 64
        %v1085 = vpop.permute.xlu0 %1084
        %v1087 = vmul.f32 %v1078, %v1085
        %1089 = vrot.lane.b32.xlu0 %v1087, 64
        %v1090 = vpop.permute.xlu0 %1089
        %v1092 = vadd.f32 %v1082, %v1090
        %v1093 = vtanh.pop %v1092
        %1095 = vrot.lane.b32.xlu0 %v1093, 64
        %v1096 = vpop.permute.xlu0 %1095
        %v1098 = vmul.f32 %v1080, %v1096
        %s1099 = scalar_lea.vmem %s370, 16 [#allocation6]
        %v1100 = vld [vmem:[%s1099] sm:$0xff]
        %v1102 = vsel %vm515, %v992, 0
        %1104 = vmatprep.subr.mxu0 %v439
        %1105 = vmatpush1.msra.mxu0 %v438
        %1106 = vmatprep.subr.mxu0 %v441
        %1107 = vmatpush1.msra.mxu0 %v440
        %1108 = vmatprep.subr.mxu0 %v443
        %1109 = vmatpush1.msra.mxu0 %v442
        %1110 = vmatprep.subr.mxu0 %v445
        %1111 = vmatpush1.msra.mxu0 %v444
        %1112 = vmatprep.subr.mxu0 %v447
        %1113 = vmatpush1.msra.mxu0 %v446
        %1114 = vmatprep.subr.mxu0 %v449
        %1115 = vmatpush1.msra.mxu0 %v448
        %1116 = vmatprep.subr.mxu0 %v451
        %1117 = vmatpush1.msra.mxu0 %v450
        %1118 = vmatprep.subr.mxu0 %v453
        %1119 = vmatpush1.msra.mxu0 %v452
        %1120 = vmatprep.subr.mxu0 0.0
        %1121 = vmatpush1.msra.mxu0 0.0
        %1122 = vmatprep.subr.mxu0 0.0
        %1123 = vmatpush1.msra.mxu0 0.0
        %1124 = vmatprep.subr.mxu0 0.0
        %1125 = vmatpush1.msra.mxu0 0.0
        %1126 = vmatprep.subr.mxu0 0.0
        %1127 = vmatpush1.msra.mxu0 0.0
        %1128 = vmatprep.subr.mxu0 0.0
        %1129 = vmatpush1.msra.mxu0 0.0
        %1130 = vmatprep.subr.mxu0 0.0
        %1131 = vmatpush1.msra.mxu0 0.0
        %1132 = vmatprep.subr.mxu0 0.0
        %1133 = vmatpush1.msra.mxu0 0.0
        %1134 = vmatprep.subr.mxu0 0.0
        %1135 = vmatpush1.msra.mxu0 0.0
        %1136 = vmatprep.subr.mxu0 0.0
        %1137 = vmatpush1.msra.mxu0 0.0
        %1138 = vmatprep.subr.mxu0 0.0
        %1139 = vmatpush1.msra.mxu0 0.0
        %1140 = vmatprep.subr.mxu0 0.0
        %1141 = vmatpush1.msra.mxu0 0.0
        %1142 = vmatprep.subr.mxu0 0.0
        %1143 = vmatpush1.msra.mxu0 0.0
        %1144 = vmatprep.subr.mxu0 0.0
        %1145 = vmatpush1.msra.mxu0 0.0
        %1146 = vmatprep.subr.mxu0 0.0
        %1147 = vmatpush1.msra.mxu0 0.0
        %1148 = vmatprep.subr.mxu0 0.0
        %1149 = vmatpush1.msra.mxu0 0.0
        %1150 = vmatprep.subr.mxu0 0.0
        %1151 = vmatpush1.msra.mxu0 0.0
        %1152 = vmatprep.subr.mxu0 0.0
        %1153 = vmatpush1.msra.mxu0 0.0
        %1154 = vmatprep.subr.mxu0 0.0
        %1155 = vmatpush1.msra.mxu0 0.0
        %1156 = vmatprep.subr.mxu0 0.0
        %1157 = vmatpush1.msra.mxu0 0.0
        %1158 = vmatprep.subr.mxu0 0.0
        %1159 = vmatpush1.msra.mxu0 0.0
        %1160 = vmatprep.subr.mxu0 0.0
        %1161 = vmatpush1.msra.mxu0 0.0
        %1162 = vmatprep.subr.mxu0 0.0
        %1163 = vmatpush1.msra.mxu0 0.0
        %1164 = vmatprep.subr.mxu0 0.0
        %1165 = vmatpush1.msra.mxu0 0.0
        %1166 = vmatprep.subr.mxu0 0.0
        %1167 = vmatpush1.msra.mxu0 0.0
        %1168 = vmatprep.mubr.f32.mxu0 0.0
        %1169 = vmatmul.mubr.f32.gmra.mrb[0].mxu0 %v1102
        %v1170 = vpop.f32.mrb[0].mxu0
        %v1171 = vadd.f32 0.0, %v1170
        %v1172 = vpop.f32.mrb[0].mxu0
        %v1173 = vadd.f32 0.0, %v1172
        %1174 = vdwg.mxu0
        %v1176 = vsel %vm590, %v1100, 0
        %1178 = vmatprep.subr.mxu0 %v437
        %1179 = vmatpush1.msra.mxu0 %v436
        %1180 = vmatprep.subr.mxu0 0.0
        %1181 = vmatpush1.msra.mxu0 0.0
        %1182 = vmatprep.subr.mxu0 0.0
        %1183 = vmatpush1.msra.mxu0 0.0
        %1184 = vmatprep.subr.mxu0 0.0
        %1185 = vmatpush1.msra.mxu0 0.0
        %1186 = vmatprep.subr.mxu0 0.0
        %1187 = vmatpush1.msra.mxu0 0.0
        %1188 = vmatprep.subr.mxu0 0.0
        %1189 = vmatpush1.msra.mxu0 0.0
        %1190 = vmatprep.subr.mxu0 0.0
        %1191 = vmatpush1.msra.mxu0 0.0
        %1192 = vmatprep.subr.mxu0 0.0
        %1193 = vmatpush1.msra.mxu0 0.0
        %1194 = vmatprep.subr.mxu0 0.0
        %1195 = vmatpush1.msra.mxu0 0.0
        %1196 = vmatprep.subr.mxu0 0.0
        %1197 = vmatpush1.msra.mxu0 0.0
        %1198 = vmatprep.subr.mxu0 0.0
        %1199 = vmatpush1.msra.mxu0 0.0
        %1200 = vmatprep.subr.mxu0 0.0
        %1201 = vmatpush1.msra.mxu0 0.0
        %1202 = vmatprep.subr.mxu0 0.0
        %1203 = vmatpush1.msra.mxu0 0.0
        %1204 = vmatprep.subr.mxu0 0.0
        %1205 = vmatpush1.msra.mxu0 0.0
        %1206 = vmatprep.subr.mxu0 0.0
        %1207 = vmatpush1.msra.mxu0 0.0
        %1208 = vmatprep.subr.mxu0 0.0
        %1209 = vmatpush1.msra.mxu0 0.0
        %1210 = vmatprep.subr.mxu0 0.0
        %1211 = vmatpush1.msra.mxu0 0.0
        %1212 = vmatprep.subr.mxu0 0.0
        %1213 = vmatpush1.msra.mxu0 0.0
        %1214 = vmatprep.subr.mxu0 0.0
        %1215 = vmatpush1.msra.mxu0 0.0
        %1216 = vmatprep.subr.mxu0 0.0
        %1217 = vmatpush1.msra.mxu0 0.0
        %1218 = vmatprep.subr.mxu0 0.0
        %1219 = vmatpush1.msra.mxu0 0.0
        %1220 = vmatprep.subr.mxu0 0.0
        %1221 = vmatpush1.msra.mxu0 0.0
        %1222 = vmatprep.subr.mxu0 0.0
        %1223 = vmatpush1.msra.mxu0 0.0
        %1224 = vmatprep.subr.mxu0 0.0
        %1225 = vmatpush1.msra.mxu0 0.0
        %1226 = vmatprep.subr.mxu0 0.0
        %1227 = vmatpush1.msra.mxu0 0.0
        %1228 = vmatprep.subr.mxu0 0.0
        %1229 = vmatpush1.msra.mxu0 0.0
        %1230 = vmatprep.subr.mxu0 0.0
        %1231 = vmatpush1.msra.mxu0 0.0
        %1232 = vmatprep.subr.mxu0 0.0
        %1233 = vmatpush1.msra.mxu0 0.0
        %1234 = vmatprep.subr.mxu0 0.0
        %1235 = vmatpush1.msra.mxu0 0.0
        %1236 = vmatprep.subr.mxu0 0.0
        %1237 = vmatpush1.msra.mxu0 0.0
        %1238 = vmatprep.subr.mxu0 0.0
        %1239 = vmatpush1.msra.mxu0 0.0
        %1240 = vmatprep.subr.mxu0 0.0
        %1241 = vmatpush1.msra.mxu0 0.0
        %1242 = vmatprep.mubr.f32.mxu0 0.0
        %1243 = vmatmul.mubr.f32.gmra.mrb[0].mxu0 %v1176
        %v1244 = vpop.f32.mrb[0].mxu0
        %v1245 = vadd.f32 %v1171, %v1244
        %v1246 = vpop.f32.mrb[0].mxu0
        %v1247 = vadd.f32 %v1173, %v1246
        %1248 = vdwg.mxu0
        %v1249 = vadd.f32 %v1245, %v491
        %v1250 = vadd.f32 %v1247, %v495
        %v1251 = vxor.u32 %v1249, 2147483648
        %v1252 = vxor.u32 %v1250, 2147483648
        %v1253 = vmul.f32 %v1251, 1.442695
        %v1254 = vpow.pop %v1253
        %v1255 = vmul.f32 %v1252, 1.442695
        %v1256 = vpow.pop %v1255
        %v1257 = vadd.f32 %v1254, 1.0
        %v1258 = vadd.f32 %v1256, 1.0
        %v1259 = vrcp.pop %v1257
        %v1260 = vmul.f32 1.0, %v1259
        %v1261 = vrcp.pop %v1258
        %v1262 = vmul.f32 1.0, %v1261
        %v1263 = vtanh.pop %v1250
        %v1264 = vmul.f32 %v1260, %v986
        %1266 = vrot.lane.b32.xlu0 %v1263, 64
        %v1267 = vpop.permute.xlu0 %1266
        %v1269 = vmul.f32 %v1260, %v1267
        %1271 = vrot.lane.b32.xlu0 %v1269, 64
        %v1272 = vpop.permute.xlu0 %1271
        %v1274 = vadd.f32 %v1264, %v1272
        %v1275 = vtanh.pop %v1274
        %1277 = vrot.lane.b32.xlu0 %v1275, 64
        %v1278 = vpop.permute.xlu0 %1277
        %v1280 = vmul.f32 %v1262, %v1278
        %1282 = vrot.lane.b32.xlu0 %v1098, 64
        %v1283 = vpop.permute.xlu0 %1282
        %v1285 = vsel %vm515, %v1280, %v1283
        %1286 = vmatprep.subr.mxu0 %v455
        %1287 = vmatpush1.msra.mxu0 %v454
        %1288 = vmatprep.subr.mxu0 %v457
        %1289 = vmatpush1.msra.mxu0 %v456
        %1290 = vmatprep.subr.mxu0 %v459
        %1291 = vmatpush1.msra.mxu0 %v458
        %1292 = vmatprep.subr.mxu0 %v461
        %1293 = vmatpush1.msra.mxu0 %v460
        %1294 = vmatprep.subr.mxu0 %v463
        %1295 = vmatpush1.msra.mxu0 %v462
        %1296 = vmatprep.subr.mxu0 %v465
        %1297 = vmatpush1.msra.mxu0 %v464
        %1298 = vmatprep.subr.mxu0 %v467
        %1299 = vmatpush1.msra.mxu0 %v466
        %1300 = vmatprep.subr.mxu0 %v469
        %1301 = vmatpush1.msra.mxu0 %v468
        %1302 = vmatprep.subr.mxu0 %v471
        %1303 = vmatpush1.msra.mxu0 %v470
        %1304 = vmatprep.subr.mxu0 %v473
        %1305 = vmatpush1.msra.mxu0 %v472
        %1306 = vmatprep.subr.mxu0 %v475
        %1307 = vmatpush1.msra.mxu0 %v474
        %1308 = vmatprep.subr.mxu0 %v477
        %1309 = vmatpush1.msra.mxu0 %v476
        %1310 = vmatprep.subr.mxu0 %v479
        %1311 = vmatpush1.msra.mxu0 %v478
        %1312 = vmatprep.subr.mxu0 %v481
        %1313 = vmatpush1.msra.mxu0 %v480
        %1314 = vmatprep.subr.mxu0 %v483
        %1315 = vmatpush1.msra.mxu0 %v482
        %1316 = vmatprep.subr.mxu0 %v485
        %1317 = vmatpush1.msra.mxu0 %v484
        %1318 = vmatprep.subr.mxu0 0.0
        %1319 = vmatpush1.msra.mxu0 0.0
        %1320 = vmatprep.subr.mxu0 0.0
        %1321 = vmatpush1.msra.mxu0 0.0
        %1322 = vmatprep.subr.mxu0 0.0
        %1323 = vmatpush1.msra.mxu0 0.0
        %1324 = vmatprep.subr.mxu0 0.0
        %1325 = vmatpush1.msra.mxu0 0.0
        %1326 = vmatprep.subr.mxu0 0.0
        %1327 = vmatpush1.msra.mxu0 0.0
        %1328 = vmatprep.subr.mxu0 0.0
        %1329 = vmatpush1.msra.mxu0 0.0
        %1330 = vmatprep.subr.mxu0 0.0
        %1331 = vmatpush1.msra.mxu0 0.0
        %1332 = vmatprep.subr.mxu0 0.0
        %1333 = vmatpush1.msra.mxu0 0.0
        %1334 = vmatprep.subr.mxu0 0.0
        %1335 = vmatpush1.msra.mxu0 0.0
        %1336 = vmatprep.subr.mxu0 0.0
        %1337 = vmatpush1.msra.mxu0 0.0
        %1338 = vmatprep.subr.mxu0 0.0
        %1339 = vmatpush1.msra.mxu0 0.0
        %1340 = vmatprep.subr.mxu0 0.0
        %1341 = vmatpush1.msra.mxu0 0.0
        %1342 = vmatprep.subr.mxu0 0.0
        %1343 = vmatpush1.msra.mxu0 0.0
        %1344 = vmatprep.subr.mxu0 0.0
        %1345 = vmatpush1.msra.mxu0 0.0
        %1346 = vmatprep.subr.mxu0 0.0
        %1347 = vmatpush1.msra.mxu0 0.0
        %1348 = vmatprep.subr.mxu0 0.0
        %1349 = vmatpush1.msra.mxu0 0.0
        %1350 = vmatprep.mubr.f32.mxu0 0.0
        %1351 = vmatmul.mubr.f32.gmra.mrb[0].mxu0 %v1285
        %v1352 = vpop.f32.mrb[0].mxu0
        %v1353 = vadd.f32 %v503, %v1352
        %v1354 = vpop.f32.mrb[0].mxu0
        %v1355 = vadd.f32 %v507, %v1354
        %1356 = vdwg.mxu0
        %v1357 = vxor.u32 %v1353, 2147483648
        %v1358 = vxor.u32 %v1355, 2147483648
        %v1359 = vmul.f32 %v1357, 1.442695
        %v1360 = vpow.pop %v1359
        %v1361 = vmul.f32 %v1358, 1.442695
        %v1362 = vpow.pop %v1361
        %v1363 = vadd.f32 %v1360, 1.0
        %v1364 = vadd.f32 %v1362, 1.0
        %v1365 = vrcp.pop %v1363
        %v1366 = vmul.f32 1.0, %v1365
        %v1367 = vrcp.pop %v1364
        %v1368 = vmul.f32 1.0, %v1367
        %v1369 = vtanh.pop %v1355
        %v1370 = vmul.f32 %v1366, %v1092
        %1372 = vrot.lane.b32.xlu0 %v1369, 64
        %v1373 = vpop.permute.xlu0 %1372
        %v1375 = vmul.f32 %v1366, %v1373
        %1377 = vrot.lane.b32.xlu0 %v1375, 64
        %v1378 = vpop.permute.xlu0 %1377
        %v1380 = vadd.f32 %v1370, %v1378
        %v1381 = vtanh.pop %v1380
        %1383 = vrot.lane.b32.xlu0 %v1381, 64
        %v1384 = vpop.permute.xlu0 %1383
        %v1386 = vmul.f32 %v1368, %v1384
        %s1387 = scalar_lea.vmem %s370, 24 [#allocation6]
        %v1388 = vld [vmem:[%s1387] sm:$0xff]
        %v1390 = vsel %vm515, %v1280, 0
        %1392 = vmatprep.subr.mxu0 %v439
        %1393 = vmatpush1.msra.mxu0 %v438
        %1394 = vmatprep.subr.mxu0 %v441
        %1395 = vmatpush1.msra.mxu0 %v440
        %1396 = vmatprep.subr.mxu0 %v443
        %1397 = vmatpush1.msra.mxu0 %v442
        %1398 = vmatprep.subr.mxu0 %v445
        %1399 = vmatpush1.msra.mxu0 %v444
        %1400 = vmatprep.subr.mxu0 %v447
        %1401 = vmatpush1.msra.mxu0 %v446
        %1402 = vmatprep.subr.mxu0 %v449
        %1403 = vmatpush1.msra.mxu0 %v448
        %1404 = vmatprep.subr.mxu0 %v451
        %1405 = vmatpush1.msra.mxu0 %v450
        %1406 = vmatprep.subr.mxu0 %v453
        %1407 = vmatpush1.msra.mxu0 %v452
        %1408 = vmatprep.subr.mxu0 0.0
        %1409 = vmatpush1.msra.mxu0 0.0
        %1410 = vmatprep.subr.mxu0 0.0
        %1411 = vmatpush1.msra.mxu0 0.0
        %1412 = vmatprep.subr.mxu0 0.0
        %1413 = vmatpush1.msra.mxu0 0.0
        %1414 = vmatprep.subr.mxu0 0.0
        %1415 = vmatpush1.msra.mxu0 0.0
        %1416 = vmatprep.subr.mxu0 0.0
        %1417 = vmatpush1.msra.mxu0 0.0
        %1418 = vmatprep.subr.mxu0 0.0
        %1419 = vmatpush1.msra.mxu0 0.0
        %1420 = vmatprep.subr.mxu0 0.0
        %1421 = vmatpush1.msra.mxu0 0.0
        %1422 = vmatprep.subr.mxu0 0.0
        %1423 = vmatpush1.msra.mxu0 0.0
        %1424 = vmatprep.subr.mxu0 0.0
        %1425 = vmatpush1.msra.mxu0 0.0
        %1426 = vmatprep.subr.mxu0 0.0
        %1427 = vmatpush1.msra.mxu0 0.0
        %1428 = vmatprep.subr.mxu0 0.0
        %1429 = vmatpush1.msra.mxu0 0.0
        %1430 = vmatprep.subr.mxu0 0.0
        %1431 = vmatpush1.msra.mxu0 0.0
        %1432 = vmatprep.subr.mxu0 0.0
        %1433 = vmatpush1.msra.mxu0 0.0
        %1434 = vmatprep.subr.mxu0 0.0
        %1435 = vmatpush1.msra.mxu0 0.0
        %1436 = vmatprep.subr.mxu0 0.0
        %1437 = vmatpush1.msra.mxu0 0.0
        %1438 = vmatprep.subr.mxu0 0.0
        %1439 = vmatpush1.msra.mxu0 0.0
        %1440 = vmatprep.subr.mxu0 0.0
        %1441 = vmatpush1.msra.mxu0 0.0
        %1442 = vmatprep.subr.mxu0 0.0
        %1443 = vmatpush1.msra.mxu0 0.0
        %1444 = vmatprep.subr.mxu0 0.0
        %1445 = vmatpush1.msra.mxu0 0.0
        %1446 = vmatprep.subr.mxu0 0.0
        %1447 = vmatpush1.msra.mxu0 0.0
        %1448 = vmatprep.subr.mxu0 0.0
        %1449 = vmatpush1.msra.mxu0 0.0
        %1450 = vmatprep.subr.mxu0 0.0
        %1451 = vmatpush1.msra.mxu0 0.0
        %1452 = vmatprep.subr.mxu0 0.0
        %1453 = vmatpush1.msra.mxu0 0.0
        %1454 = vmatprep.subr.mxu0 0.0
        %1455 = vmatpush1.msra.mxu0 0.0
        %1456 = vmatprep.mubr.f32.mxu0 0.0
        %1457 = vmatmul.mubr.f32.gmra.mrb[0].mxu0 %v1390
        %v1458 = vpop.f32.mrb[0].mxu0
        %v1459 = vadd.f32 0.0, %v1458
        %v1460 = vpop.f32.mrb[0].mxu0
        %v1461 = vadd.f32 0.0, %v1460
        %1462 = vdwg.mxu0
        %v1464 = vsel %vm590, %v1388, 0
        %1466 = vmatprep.subr.mxu0 %v437
        %1467 = vmatpush1.msra.mxu0 %v436
        %1468 = vmatprep.subr.mxu0 0.0
        %1469 = vmatpush1.msra.mxu0 0.0
        %1470 = vmatprep.subr.mxu0 0.0
        %1471 = vmatpush1.msra.mxu0 0.0
        %1472 = vmatprep.subr.mxu0 0.0
        %1473 = vmatpush1.msra.mxu0 0.0
        %1474 = vmatprep.subr.mxu0 0.0
        %1475 = vmatpush1.msra.mxu0 0.0
        %1476 = vmatprep.subr.mxu0 0.0
        %1477 = vmatpush1.msra.mxu0 0.0
        %1478 = vmatprep.subr.mxu0 0.0
        %1479 = vmatpush1.msra.mxu0 0.0
        %1480 = vmatprep.subr.mxu0 0.0
        %1481 = vmatpush1.msra.mxu0 0.0
        %1482 = vmatprep.subr.mxu0 0.0
        %1483 = vmatpush1.msra.mxu0 0.0
        %1484 = vmatprep.subr.mxu0 0.0
        %1485 = vmatpush1.msra.mxu0 0.0
        %1486 = vmatprep.subr.mxu0 0.0
        %1487 = vmatpush1.msra.mxu0 0.0
        %1488 = vmatprep.subr.mxu0 0.0
        %1489 = vmatpush1.msra.mxu0 0.0
        %1490 = vmatprep.subr.mxu0 0.0
        %1491 = vmatpush1.msra.mxu0 0.0
        %1492 = vmatprep.subr.mxu0 0.0
        %1493 = vmatpush1.msra.mxu0 0.0
        %1494 = vmatprep.subr.mxu0 0.0
        %1495 = vmatpush1.msra.mxu0 0.0
        %1496 = vmatprep.subr.mxu0 0.0
        %1497 = vmatpush1.msra.mxu0 0.0
        %1498 = vmatprep.subr.mxu0 0.0
        %1499 = vmatpush1.msra.mxu0 0.0
        %1500 = vmatprep.subr.mxu0 0.0
        %1501 = vmatpush1.msra.mxu0 0.0
        %1502 = vmatprep.subr.mxu0 0.0
        %1503 = vmatpush1.msra.mxu0 0.0
        %1504 = vmatprep.subr.mxu0 0.0
        %1505 = vmatpush1.msra.mxu0 0.0
        %1506 = vmatprep.subr.mxu0 0.0
        %1507 = vmatpush1.msra.mxu0 0.0
        %1508 = vmatprep.subr.mxu0 0.0
        %1509 = vmatpush1.msra.mxu0 0.0
        %1510 = vmatprep.subr.mxu0 0.0
        %1511 = vmatpush1.msra.mxu0 0.0
        %1512 = vmatprep.subr.mxu0 0.0
        %1513 = vmatpush1.msra.mxu0 0.0
        %1514 = vmatprep.subr.mxu0 0.0
        %1515 = vmatpush1.msra.mxu0 0.0
        %1516 = vmatprep.subr.mxu0 0.0
        %1517 = vmatpush1.msra.mxu0 0.0
        %1518 = vmatprep.subr.mxu0 0.0
        %1519 = vmatpush1.msra.mxu0 0.0
        %1520 = vmatprep.subr.mxu0 0.0
        %1521 = vmatpush1.msra.mxu0 0.0
        %1522 = vmatprep.subr.mxu0 0.0
        %1523 = vmatpush1.msra.mxu0 0.0
        %1524 = vmatprep.subr.mxu0 0.0
        %1525 = vmatpush1.msra.mxu0 0.0
        %1526 = vmatprep.subr.mxu0 0.0
        %1527 = vmatpush1.msra.mxu0 0.0
        %1528 = vmatprep.subr.mxu0 0.0
        %1529 = vmatpush1.msra.mxu0 0.0
        %1530 = vmatprep.mubr.f32.mxu0 0.0
        %1531 = vmatmul.mubr.f32.gmra.mrb[0].mxu0 %v1464
        %v1532 = vpop.f32.mrb[0].mxu0
        %v1533 = vadd.f32 %v1459, %v1532
        %v1534 = vpop.f32.mrb[0].mxu0
        %v1535 = vadd.f32 %v1461, %v1534
        %1536 = vdwg.mxu0
        %v1537 = vadd.f32 %v1533, %v491
        %v1538 = vadd.f32 %v1535, %v495
        %v1539 = vxor.u32 %v1537, 2147483648
        %v1540 = vxor.u32 %v1538, 2147483648
        %v1541 = vmul.f32 %v1539, 1.442695
        %v1542 = vpow.pop %v1541
        %v1543 = vmul.f32 %v1540, 1.442695
        %v1544 = vpow.pop %v1543
        %v1545 = vadd.f32 %v1542, 1.0
        %v1546 = vadd.f32 %v1544, 1.0
        %v1547 = vrcp.pop %v1545
        %v1548 = vmul.f32 1.0, %v1547
        %v1549 = vrcp.pop %v1546
        %v1550 = vmul.f32 1.0, %v1549
        %v1551 = vtanh.pop %v1538
        %v1552 = vmul.f32 %v1548, %v1274
        %1554 = vrot.lane.b32.xlu0 %v1551, 64
        %v1555 = vpop.permute.xlu0 %1554
        %v1557 = vmul.f32 %v1548, %v1555
        %1559 = vrot.lane.b32.xlu0 %v1557, 64
        %v1560 = vpop.permute.xlu0 %1559
        %v1562 = vadd.f32 %v1552, %v1560
        %v1563 = vtanh.pop %v1562
        %1565 = vrot.lane.b32.xlu0 %v1563, 64
        %v1566 = vpop.permute.xlu0 %1565
        %v1568 = vmul.f32 %v1550, %v1566
        %1570 = vrot.lane.b32.xlu0 %v1386, 64
        %v1571 = vpop.permute.xlu0 %1570
        %v1573 = vsel %vm515, %v1568, %v1571
        %1574 = vmatprep.subr.mxu0 %v455
        %1575 = vmatpush1.msra.mxu0 %v454
        %1576 = vmatprep.subr.mxu0 %v457
        %1577 = vmatpush1.msra.mxu0 %v456
        %1578 = vmatprep.subr.mxu0 %v459
        %1579 = vmatpush1.msra.mxu0 %v458
        %1580 = vmatprep.subr.mxu0 %v461
        %1581 = vmatpush1.msra.mxu0 %v460
        %1582 = vmatprep.subr.mxu0 %v463
        %1583 = vmatpush1.msra.mxu0 %v462
        %1584 = vmatprep.subr.mxu0 %v465
        %1585 = vmatpush1.msra.mxu0 %v464
        %1586 = vmatprep.subr.mxu0 %v467
        %1587 = vmatpush1.msra.mxu0 %v466
        %1588 = vmatprep.subr.mxu0 %v469
        %1589 = vmatpush1.msra.mxu0 %v468
        %1590 = vmatprep.subr.mxu0 %v471
        %1591 = vmatpush1.msra.mxu0 %v470
        %1592 = vmatprep.subr.mxu0 %v473
        %1593 = vmatpush1.msra.mxu0 %v472
        %1594 = vmatprep.subr.mxu0 %v475
        %1595 = vmatpush1.msra.mxu0 %v474
        %1596 = vmatprep.subr.mxu0 %v477
        %1597 = vmatpush1.msra.mxu0 %v476
        %1598 = vmatprep.subr.mxu0 %v479
        %1599 = vmatpush1.msra.mxu0 %v478
        %1600 = vmatprep.subr.mxu0 %v481
        %1601 = vmatpush1.msra.mxu0 %v480
        %1602 = vmatprep.subr.mxu0 %v483
        %1603 = vmatpush1.msra.mxu0 %v482
        %1604 = vmatprep.subr.mxu0 %v485
        %1605 = vmatpush1.msra.mxu0 %v484
        %1606 = vmatprep.subr.mxu0 0.0
        %1607 = vmatpush1.msra.mxu0 0.0
        %1608 = vmatprep.subr.mxu0 0.0
        %1609 = vmatpush1.msra.mxu0 0.0
        %1610 = vmatprep.subr.mxu0 0.0
        %1611 = vmatpush1.msra.mxu0 0.0
        %1612 = vmatprep.subr.mxu0 0.0
        %1613 = vmatpush1.msra.mxu0 0.0
        %1614 = vmatprep.subr.mxu0 0.0
        %1615 = vmatpush1.msra.mxu0 0.0
        %1616 = vmatprep.subr.mxu0 0.0
        %1617 = vmatpush1.msra.mxu0 0.0
        %1618 = vmatprep.subr.mxu0 0.0
        %1619 = vmatpush1.msra.mxu0 0.0
        %1620 = vmatprep.subr.mxu0 0.0
        %1621 = vmatpush1.msra.mxu0 0.0
        %1622 = vmatprep.subr.mxu0 0.0
        %1623 = vmatpush1.msra.mxu0 0.0
        %1624 = vmatprep.subr.mxu0 0.0
        %1625 = vmatpush1.msra.mxu0 0.0
        %1626 = vmatprep.subr.mxu0 0.0
        %1627 = vmatpush1.msra.mxu0 0.0
        %1628 = vmatprep.subr.mxu0 0.0
        %1629 = vmatpush1.msra.mxu0 0.0
        %1630 = vmatprep.subr.mxu0 0.0
        %1631 = vmatpush1.msra.mxu0 0.0
        %1632 = vmatprep.subr.mxu0 0.0
        %1633 = vmatpush1.msra.mxu0 0.0
        %1634 = vmatprep.subr.mxu0 0.0
        %1635 = vmatpush1.msra.mxu0 0.0
        %1636 = vmatprep.subr.mxu0 0.0
        %1637 = vmatpush1.msra.mxu0 0.0
        %1638 = vmatprep.mubr.f32.mxu0 0.0
        %1639 = vmatmul.mubr.f32.gmra.mrb[0].mxu0 %v1573
        %v1640 = vpop.f32.mrb[0].mxu0
        %v1641 = vadd.f32 %v503, %v1640
        %v1642 = vpop.f32.mrb[0].mxu0
        %v1643 = vadd.f32 %v507, %v1642
        %1644 = vdwg.mxu0
        %v1645 = vxor.u32 %v1641, 2147483648
        %v1646 = vxor.u32 %v1643, 2147483648
        %v1647 = vmul.f32 %v1645, 1.442695
        %v1648 = vpow.pop %v1647
        %v1649 = vmul.f32 %v1646, 1.442695
        %v1650 = vpow.pop %v1649
        %v1651 = vadd.f32 %v1648, 1.0
        %v1652 = vadd.f32 %v1650, 1.0
        %v1653 = vrcp.pop %v1651
        %v1654 = vmul.f32 1.0, %v1653
        %v1655 = vrcp.pop %v1652
        %v1656 = vmul.f32 1.0, %v1655
        %v1657 = vtanh.pop %v1643
        %v1658 = vmul.f32 %v1654, %v1380
        %1660 = vrot.lane.b32.xlu0 %v1657, 64
        %v1661 = vpop.permute.xlu0 %1660
        %v1663 = vmul.f32 %v1654, %v1661
        %1665 = vrot.lane.b32.xlu0 %v1663, 64
        %v1666 = vpop.permute.xlu0 %1665
        %v1668 = vadd.f32 %v1658, %v1666
        %v1669 = vtanh.pop %v1668
        %1671 = vrot.lane.b32.xlu0 %v1669, 64
        %v1672 = vpop.permute.xlu0 %1671
        %v1674 = vmul.f32 %v1656, %v1672
        %s1675 = scalar_lea.vmem %s370, 32 [#allocation6]
        %v1676 = vld [vmem:[%s1675] sm:$0xff]
        %v1678 = vsel %vm515, %v1568, 0
        %1680 = vmatprep.subr.mxu0 %v439
        %1681 = vmatpush1.msra.mxu0 %v438
        %1682 = vmatprep.subr.mxu0 %v441
        %1683 = vmatpush1.msra.mxu0 %v440
        %1684 = vmatprep.subr.mxu0 %v443
        %1685 = vmatpush1.msra.mxu0 %v442
        %1686 = vmatprep.subr.mxu0 %v445
        %1687 = vmatpush1.msra.mxu0 %v444
        %1688 = vmatprep.subr.mxu0 %v447
        %1689 = vmatpush1.msra.mxu0 %v446
        %1690 = vmatprep.subr.mxu0 %v449
        %1691 = vmatpush1.msra.mxu0 %v448
        %1692 = vmatprep.subr.mxu0 %v451
        %1693 = vmatpush1.msra.mxu0 %v450
        %1694 = vmatprep.subr.mxu0 %v453
        %1695 = vmatpush1.msra.mxu0 %v452
        %1696 = vmatprep.subr.mxu0 0.0
        %1697 = vmatpush1.msra.mxu0 0.0
        %1698 = vmatprep.subr.mxu0 0.0
        %1699 = vmatpush1.msra.mxu0 0.0
        %1700 = vmatprep.subr.mxu0 0.0
        %1701 = vmatpush1.msra.mxu0 0.0
        %1702 = vmatprep.subr.mxu0 0.0
        %1703 = vmatpush1.msra.mxu0 0.0
        %1704 = vmatprep.subr.mxu0 0.0
        %1705 = vmatpush1.msra.mxu0 0.0
        %1706 = vmatprep.subr.mxu0 0.0
        %1707 = vmatpush1.msra.mxu0 0.0
        %1708 = vmatprep.subr.mxu0 0.0
        %1709 = vmatpush1.msra.mxu0 0.0
        %1710 = vmatprep.subr.mxu0 0.0
        %1711 = vmatpush1.msra.mxu0 0.0
        %1712 = vmatprep.subr.mxu0 0.0
        %1713 = vmatpush1.msra.mxu0 0.0
        %1714 = vmatprep.subr.mxu0 0.0
        %1715 = vmatpush1.msra.mxu0 0.0
        %1716 = vmatprep.subr.mxu0 0.0
        %1717 = vmatpush1.msra.mxu0 0.0
        %1718 = vmatprep.subr.mxu0 0.0
        %1719 = vmatpush1.msra.mxu0 0.0
        %1720 = vmatprep.subr.mxu0 0.0
        %1721 = vmatpush1.msra.mxu0 0.0
        %1722 = vmatprep.subr.mxu0 0.0
        %1723 = vmatpush1.msra.mxu0 0.0
        %1724 = vmatprep.subr.mxu0 0.0
        %1725 = vmatpush1.msra.mxu0 0.0
        %1726 = vmatprep.subr.mxu0 0.0
        %1727 = vmatpush1.msra.mxu0 0.0
        %1728 = vmatprep.subr.mxu0 0.0
        %1729 = vmatpush1.msra.mxu0 0.0
        %1730 = vmatprep.subr.mxu0 0.0
        %1731 = vmatpush1.msra.mxu0 0.0
        %1732 = vmatprep.subr.mxu0 0.0
        %1733 = vmatpush1.msra.mxu0 0.0
        %1734 = vmatprep.subr.mxu0 0.0
        %1735 = vmatpush1.msra.mxu0 0.0
        %1736 = vmatprep.subr.mxu0 0.0
        %1737 = vmatpush1.msra.mxu0 0.0
        %1738 = vmatprep.subr.mxu0 0.0
        %1739 = vmatpush1.msra.mxu0 0.0
        %1740 = vmatprep.subr.mxu0 0.0
        %1741 = vmatpush1.msra.mxu0 0.0
        %1742 = vmatprep.subr.mxu0 0.0
        %1743 = vmatpush1.msra.mxu0 0.0
        %1744 = vmatprep.mubr.f32.mxu0 0.0
        %1745 = vmatmul.mubr.f32.gmra.mrb[0].mxu0 %v1678
        %v1746 = vpop.f32.mrb[0].mxu0
        %v1747 = vadd.f32 0.0, %v1746
        %v1748 = vpop.f32.mrb[0].mxu0
        %v1749 = vadd.f32 0.0, %v1748
        %1750 = vdwg.mxu0
        %v1752 = vsel %vm590, %v1676, 0
        %1754 = vmatprep.subr.mxu0 %v437
        %1755 = vmatpush1.msra.mxu0 %v436
        %1756 = vmatprep.subr.mxu0 0.0
        %1757 = vmatpush1.msra.mxu0 0.0
        %1758 = vmatprep.subr.mxu0 0.0
        %1759 = vmatpush1.msra.mxu0 0.0
        %1760 = vmatprep.subr.mxu0 0.0
        %1761 = vmatpush1.msra.mxu0 0.0
        %1762 = vmatprep.subr.mxu0 0.0
        %1763 = vmatpush1.msra.mxu0 0.0
        %1764 = vmatprep.subr.mxu0 0.0
        %1765 = vmatpush1.msra.mxu0 0.0
        %1766 = vmatprep.subr.mxu0 0.0
        %1767 = vmatpush1.msra.mxu0 0.0
        %1768 = vmatprep.subr.mxu0 0.0
        %1769 = vmatpush1.msra.mxu0 0.0
        %1770 = vmatprep.subr.mxu0 0.0
        %1771 = vmatpush1.msra.mxu0 0.0
        %1772 = vmatprep.subr.mxu0 0.0
        %1773 = vmatpush1.msra.mxu0 0.0
        %1774 = vmatprep.subr.mxu0 0.0
        %1775 = vmatpush1.msra.mxu0 0.0
        %1776 = vmatprep.subr.mxu0 0.0
        %1777 = vmatpush1.msra.mxu0 0.0
        %1778 = vmatprep.subr.mxu0 0.0
        %1779 = vmatpush1.msra.mxu0 0.0
        %1780 = vmatprep.subr.mxu0 0.0
        %1781 = vmatpush1.msra.mxu0 0.0
        %1782 = vmatprep.subr.mxu0 0.0
        %1783 = vmatpush1.msra.mxu0 0.0
        %1784 = vmatprep.subr.mxu0 0.0
        %1785 = vmatpush1.msra.mxu0 0.0
        %1786 = vmatprep.subr.mxu0 0.0
        %1787 = vmatpush1.msra.mxu0 0.0
        %1788 = vmatprep.subr.mxu0 0.0
        %1789 = vmatpush1.msra.mxu0 0.0
        %1790 = vmatprep.subr.mxu0 0.0
        %1791 = vmatpush1.msra.mxu0 0.0
        %1792 = vmatprep.subr.mxu0 0.0
        %1793 = vmatpush1.msra.mxu0 0.0
        %1794 = vmatprep.subr.mxu0 0.0
        %1795 = vmatpush1.msra.mxu0 0.0
        %1796 = vmatprep.subr.mxu0 0.0
        %1797 = vmatpush1.msra.mxu0 0.0
        %1798 = vmatprep.subr.mxu0 0.0
        %1799 = vmatpush1.msra.mxu0 0.0
        %1800 = vmatprep.subr.mxu0 0.0
        %1801 = vmatpush1.msra.mxu0 0.0
        %1802 = vmatprep.subr.mxu0 0.0
        %1803 = vmatpush1.msra.mxu0 0.0
        %1804 = vmatprep.subr.mxu0 0.0
        %1805 = vmatpush1.msra.mxu0 0.0
        %1806 = vmatprep.subr.mxu0 0.0
        %1807 = vmatpush1.msra.mxu0 0.0
        %1808 = vmatprep.subr.mxu0 0.0
        %1809 = vmatpush1.msra.mxu0 0.0
        %1810 = vmatprep.subr.mxu0 0.0
        %1811 = vmatpush1.msra.mxu0 0.0
        %1812 = vmatprep.subr.mxu0 0.0
        %1813 = vmatpush1.msra.mxu0 0.0
        %1814 = vmatprep.subr.mxu0 0.0
        %1815 = vmatpush1.msra.mxu0 0.0
        %1816 = vmatprep.subr.mxu0 0.0
        %1817 = vmatpush1.msra.mxu0 0.0
        %1818 = vmatprep.mubr.f32.mxu0 0.0
        %1819 = vmatmul.mubr.f32.gmra.mrb[0].mxu0 %v1752
        %v1820 = vpop.f32.mrb[0].mxu0
        %v1821 = vadd.f32 %v1747, %v1820
        %v1822 = vpop.f32.mrb[0].mxu0
        %v1823 = vadd.f32 %v1749, %v1822
        %1824 = vdwg.mxu0
        %v1825 = vadd.f32 %v1821, %v491
        %v1826 = vadd.f32 %v1823, %v495
        %v1827 = vxor.u32 %v1825, 2147483648
        %v1828 = vxor.u32 %v1826, 2147483648
        %v1829 = vmul.f32 %v1827, 1.442695
        %v1830 = vpow.pop %v1829
        %v1831 = vmul.f32 %v1828, 1.442695
        %v1832 = vpow.pop %v1831
        %v1833 = vadd.f32 %v1830, 1.0
        %v1834 = vadd.f32 %v1832, 1.0
        %v1835 = vrcp.pop %v1833
        %v1836 = vmul.f32 1.0, %v1835
        %v1837 = vrcp.pop %v1834
        %v1838 = vmul.f32 1.0, %v1837
        %v1839 = vtanh.pop %v1826
        %v1840 = vmul.f32 %v1836, %v1562
        %1842 = vrot.lane.b32.xlu0 %v1839, 64
        %v1843 = vpop.permute.xlu0 %1842
        %v1845 = vmul.f32 %v1836, %v1843
        %1847 = vrot.lane.b32.xlu0 %v1845, 64
        %v1848 = vpop.permute.xlu0 %1847
        %v1850 = vadd.f32 %v1840, %v1848
        %v1851 = vtanh.pop %v1850
        %1853 = vrot.lane.b32.xlu0 %v1851, 64
        %v1854 = vpop.permute.xlu0 %1853
        %v1856 = vmul.f32 %v1838, %v1854
        %1858 = vrot.lane.b32.xlu0 %v1674, 64
        %v1859 = vpop.permute.xlu0 %1858
        %v1861 = vsel %vm515, %v1856, %v1859
        %1862 = vmatprep.subr.mxu0 %v455
        %1863 = vmatpush1.msra.mxu0 %v454
        %1864 = vmatprep.subr.mxu0 %v457
        %1865 = vmatpush1.msra.mxu0 %v456
        %1866 = vmatprep.subr.mxu0 %v459
        %1867 = vmatpush1.msra.mxu0 %v458
        %1868 = vmatprep.subr.mxu0 %v461
        %1869 = vmatpush1.msra.mxu0 %v460
        %1870 = vmatprep.subr.mxu0 %v463
        %1871 = vmatpush1.msra.mxu0 %v462
        %1872 = vmatprep.subr.mxu0 %v465
        %1873 = vmatpush1.msra.mxu0 %v464
        %1874 = vmatprep.subr.mxu0 %v467
        %1875 = vmatpush1.msra.mxu0 %v466
        %1876 = vmatprep.subr.mxu0 %v469
        %1877 = vmatpush1.msra.mxu0 %v468
        %1878 = vmatprep.subr.mxu0 %v471
        %1879 = vmatpush1.msra.mxu0 %v470
        %1880 = vmatprep.subr.mxu0 %v473
        %1881 = vmatpush1.msra.mxu0 %v472
        %1882 = vmatprep.subr.mxu0 %v475
        %1883 = vmatpush1.msra.mxu0 %v474
        %1884 = vmatprep.subr.mxu0 %v477
        %1885 = vmatpush1.msra.mxu0 %v476
        %1886 = vmatprep.subr.mxu0 %v479
        %1887 = vmatpush1.msra.mxu0 %v478
        %1888 = vmatprep.subr.mxu0 %v481
        %1889 = vmatpush1.msra.mxu0 %v480
        %1890 = vmatprep.subr.mxu0 %v483
        %1891 = vmatpush1.msra.mxu0 %v482
        %1892 = vmatprep.subr.mxu0 %v485
        %1893 = vmatpush1.msra.mxu0 %v484
        %1894 = vmatprep.subr.mxu0 0.0
        %1895 = vmatpush1.msra.mxu0 0.0
        %1896 = vmatprep.subr.mxu0 0.0
        %1897 = vmatpush1.msra.mxu0 0.0
        %1898 = vmatprep.subr.mxu0 0.0
        %1899 = vmatpush1.msra.mxu0 0.0
        %1900 = vmatprep.subr.mxu0 0.0
        %1901 = vmatpush1.msra.mxu0 0.0
        %1902 = vmatprep.subr.mxu0 0.0
        %1903 = vmatpush1.msra.mxu0 0.0
        %1904 = vmatprep.subr.mxu0 0.0
        %1905 = vmatpush1.msra.mxu0 0.0
        %1906 = vmatprep.subr.mxu0 0.0
        %1907 = vmatpush1.msra.mxu0 0.0
        %1908 = vmatprep.subr.mxu0 0.0
        %1909 = vmatpush1.msra.mxu0 0.0
        %1910 = vmatprep.subr.mxu0 0.0
        %1911 = vmatpush1.msra.mxu0 0.0
        %1912 = vmatprep.subr.mxu0 0.0
        %1913 = vmatpush1.msra.mxu0 0.0
        %1914 = vmatprep.subr.mxu0 0.0
        %1915 = vmatpush1.msra.mxu0 0.0
        %1916 = vmatprep.subr.mxu0 0.0
        %1917 = vmatpush1.msra.mxu0 0.0
        %1918 = vmatprep.subr.mxu0 0.0
        %1919 = vmatpush1.msra.mxu0 0.0
        %1920 = vmatprep.subr.mxu0 0.0
        %1921 = vmatpush1.msra.mxu0 0.0
        %1922 = vmatprep.subr.mxu0 0.0
        %1923 = vmatpush1.msra.mxu0 0.0
        %1924 = vmatprep.subr.mxu0 0.0
        %1925 = vmatpush1.msra.mxu0 0.0
        %1926 = vmatprep.mubr.f32.mxu0 0.0
        %1927 = vmatmul.mubr.f32.gmra.mrb[0].mxu0 %v1861
        %v1928 = vpop.f32.mrb[0].mxu0
        %v1929 = vadd.f32 %v503, %v1928
        %v1930 = vpop.f32.mrb[0].mxu0
        %v1931 = vadd.f32 %v507, %v1930
        %1932 = vdwg.mxu0
        %v1933 = vxor.u32 %v1929, 2147483648
        %v1934 = vxor.u32 %v1931, 2147483648
        %v1935 = vmul.f32 %v1933, 1.442695
        %v1936 = vpow.pop %v1935
        %v1937 = vmul.f32 %v1934, 1.442695
        %v1938 = vpow.pop %v1937
        %v1939 = vadd.f32 %v1936, 1.0
        %v1940 = vadd.f32 %v1938, 1.0
        %v1941 = vrcp.pop %v1939
        %v1942 = vmul.f32 1.0, %v1941
        %v1943 = vrcp.pop %v1940
        %v1944 = vmul.f32 1.0, %v1943
        %v1945 = vtanh.pop %v1931
        %v1946 = vmul.f32 %v1942, %v1668
        %1948 = vrot.lane.b32.xlu0 %v1945, 64
        %v1949 = vpop.permute.xlu0 %1948
        %v1951 = vmul.f32 %v1942, %v1949
        %1953 = vrot.lane.b32.xlu0 %v1951, 64
        %v1954 = vpop.permute.xlu0 %1953
        %v1956 = vadd.f32 %v1946, %v1954
        %v1957 = vtanh.pop %v1956
        %1959 = vrot.lane.b32.xlu0 %v1957, 64
        %v1960 = vpop.permute.xlu0 %1959
        %v1962 = vmul.f32 %v1944, %v1960
        %s1963 = scalar_lea.vmem %s370, 40 [#allocation6]
        %v1964 = vld [vmem:[%s1963] sm:$0xff]
        %v1966 = vsel %vm515, %v1856, 0
        %1968 = vmatprep.subr.mxu0 %v439
        %1969 = vmatpush1.msra.mxu0 %v438
        %1970 = vmatprep.subr.mxu0 %v441
        %1971 = vmatpush1.msra.mxu0 %v440
        %1972 = vmatprep.subr.mxu0 %v443
        %1973 = vmatpush1.msra.mxu0 %v442
        %1974 = vmatprep.subr.mxu0 %v445
        %1975 = vmatpush1.msra.mxu0 %v444
        %1976 = vmatprep.subr.mxu0 %v447
        %1977 = vmatpush1.msra.mxu0 %v446
        %1978 = vmatprep.subr.mxu0 %v449
        %1979 = vmatpush1.msra.mxu0 %v448
        %1980 = vmatprep.subr.mxu0 %v451
        %1981 = vmatpush1.msra.mxu0 %v450
        %1982 = vmatprep.subr.mxu0 %v453
        %1983 = vmatpush1.msra.mxu0 %v452
        %1984 = vmatprep.subr.mxu0 0.0
        %1985 = vmatpush1.msra.mxu0 0.0
        %1986 = vmatprep.subr.mxu0 0.0
        %1987 = vmatpush1.msra.mxu0 0.0
        %1988 = vmatprep.subr.mxu0 0.0
        %1989 = vmatpush1.msra.mxu0 0.0
        %1990 = vmatprep.subr.mxu0 0.0
        %1991 = vmatpush1.msra.mxu0 0.0
        %1992 = vmatprep.subr.mxu0 0.0
        %1993 = vmatpush1.msra.mxu0 0.0
        %1994 = vmatprep.subr.mxu0 0.0
        %1995 = vmatpush1.msra.mxu0 0.0
        %1996 = vmatprep.subr.mxu0 0.0
        %1997 = vmatpush1.msra.mxu0 0.0
        %1998 = vmatprep.subr.mxu0 0.0
        %1999 = vmatpush1.msra.mxu0 0.0
        %2000 = vmatprep.subr.mxu0 0.0
        %2001 = vmatpush1.msra.mxu0 0.0
        %2002 = vmatprep.subr.mxu0 0.0
        %2003 = vmatpush1.msra.mxu0 0.0
        %2004 = vmatprep.subr.mxu0 0.0
        %2005 = vmatpush1.msra.mxu0 0.0
        %2006 = vmatprep.subr.mxu0 0.0
        %2007 = vmatpush1.msra.mxu0 0.0
        %2008 = vmatprep.subr.mxu0 0.0
        %2009 = vmatpush1.msra.mxu0 0.0
        %2010 = vmatprep.subr.mxu0 0.0
        %2011 = vmatpush1.msra.mxu0 0.0
        %2012 = vmatprep.subr.mxu0 0.0
        %2013 = vmatpush1.msra.mxu0 0.0
        %2014 = vmatprep.subr.mxu0 0.0
        %2015 = vmatpush1.msra.mxu0 0.0
        %2016 = vmatprep.subr.mxu0 0.0
        %2017 = vmatpush1.msra.mxu0 0.0
        %2018 = vmatprep.subr.mxu0 0.0
        %2019 = vmatpush1.msra.mxu0 0.0
        %2020 = vmatprep.subr.mxu0 0.0
        %2021 = vmatpush1.msra.mxu0 0.0
        %2022 = vmatprep.subr.mxu0 0.0
        %2023 = vmatpush1.msra.mxu0 0.0
        %2024 = vmatprep.subr.mxu0 0.0
        %2025 = vmatpush1.msra.mxu0 0.0
        %2026 = vmatprep.subr.mxu0 0.0
        %2027 = vmatpush1.msra.mxu0 0.0
        %2028 = vmatprep.subr.mxu0 0.0
        %2029 = vmatpush1.msra.mxu0 0.0
        %2030 = vmatprep.subr.mxu0 0.0
        %2031 = vmatpush1.msra.mxu0 0.0
        %2032 = vmatprep.mubr.f32.mxu0 0.0
        %2033 = vmatmul.mubr.f32.gmra.mrb[0].mxu0 %v1966
        %v2034 = vpop.f32.mrb[0].mxu0
        %v2035 = vadd.f32 0.0, %v2034
        %v2036 = vpop.f32.mrb[0].mxu0
        %v2037 = vadd.f32 0.0, %v2036
        %2038 = vdwg.mxu0
        %v2040 = vsel %vm590, %v1964, 0
        %2042 = vmatprep.subr.mxu0 %v437
        %2043 = vmatpush1.msra.mxu0 %v436
        %2044 = vmatprep.subr.mxu0 0.0
        %2045 = vmatpush1.msra.mxu0 0.0
        %2046 = vmatprep.subr.mxu0 0.0
        %2047 = vmatpush1.msra.mxu0 0.0
        %2048 = vmatprep.subr.mxu0 0.0
        %2049 = vmatpush1.msra.mxu0 0.0
        %2050 = vmatprep.subr.mxu0 0.0
        %2051 = vmatpush1.msra.mxu0 0.0
        %2052 = vmatprep.subr.mxu0 0.0
        %2053 = vmatpush1.msra.mxu0 0.0
        %2054 = vmatprep.subr.mxu0 0.0
        %2055 = vmatpush1.msra.mxu0 0.0
        %2056 = vmatprep.subr.mxu0 0.0
        %2057 = vmatpush1.msra.mxu0 0.0
        %2058 = vmatprep.subr.mxu0 0.0
        %2059 = vmatpush1.msra.mxu0 0.0
        %2060 = vmatprep.subr.mxu0 0.0
        %2061 = vmatpush1.msra.mxu0 0.0
        %2062 = vmatprep.subr.mxu0 0.0
        %2063 = vmatpush1.msra.mxu0 0.0
        %2064 = vmatprep.subr.mxu0 0.0
        %2065 = vmatpush1.msra.mxu0 0.0
        %2066 = vmatprep.subr.mxu0 0.0
        %2067 = vmatpush1.msra.mxu0 0.0
        %2068 = vmatprep.subr.mxu0 0.0
        %2069 = vmatpush1.msra.mxu0 0.0
        %2070 = vmatprep.subr.mxu0 0.0
        %2071 = vmatpush1.msra.mxu0 0.0
        %2072 = vmatprep.subr.mxu0 0.0
        %2073 = vmatpush1.msra.mxu0 0.0
        %2074 = vmatprep.subr.mxu0 0.0
        %2075 = vmatpush1.msra.mxu0 0.0
        %2076 = vmatprep.subr.mxu0 0.0
        %2077 = vmatpush1.msra.mxu0 0.0
        %2078 = vmatprep.subr.mxu0 0.0
        %2079 = vmatpush1.msra.mxu0 0.0
        %2080 = vmatprep.subr.mxu0 0.0
        %2081 = vmatpush1.msra.mxu0 0.0
        %2082 = vmatprep.subr.mxu0 0.0
        %2083 = vmatpush1.msra.mxu0 0.0
        %2084 = vmatprep.subr.mxu0 0.0
        %2085 = vmatpush1.msra.mxu0 0.0
        %2086 = vmatprep.subr.mxu0 0.0
        %2087 = vmatpush1.msra.mxu0 0.0
        %2088 = vmatprep.subr.mxu0 0.0
        %2089 = vmatpush1.msra.mxu0 0.0
        %2090 = vmatprep.subr.mxu0 0.0
        %2091 = vmatpush1.msra.mxu0 0.0
        %2092 = vmatprep.subr.mxu0 0.0
        %2093 = vmatpush1.msra.mxu0 0.0
        %2094 = vmatprep.subr.mxu0 0.0
        %2095 = vmatpush1.msra.mxu0 0.0
        %2096 = vmatprep.subr.mxu0 0.0
        %2097 = vmatpush1.msra.mxu0 0.0
        %2098 = vmatprep.subr.mxu0 0.0
        %2099 = vmatpush1.msra.mxu0 0.0
        %2100 = vmatprep.subr.mxu0 0.0
        %2101 = vmatpush1.msra.mxu0 0.0
        %2102 = vmatprep.subr.mxu0 0.0
        %2103 = vmatpush1.msra.mxu0 0.0
        %2104 = vmatprep.subr.mxu0 0.0
        %2105 = vmatpush1.msra.mxu0 0.0
        %2106 = vmatprep.mubr.f32.mxu0 0.0
        %2107 = vmatmul.mubr.f32.gmra.mrb[0].mxu0 %v2040
        %v2108 = vpop.f32.mrb[0].mxu0
        %v2109 = vadd.f32 %v2035, %v2108
        %v2110 = vpop.f32.mrb[0].mxu0
        %v2111 = vadd.f32 %v2037, %v2110
        %2112 = vdwg.mxu0
        %v2113 = vadd.f32 %v2109, %v491
        %v2114 = vadd.f32 %v2111, %v495
        %v2115 = vxor.u32 %v2113, 2147483648
        %v2116 = vxor.u32 %v2114, 2147483648
        %v2117 = vmul.f32 %v2115, 1.442695
        %v2118 = vpow.pop %v2117
        %v2119 = vmul.f32 %v2116, 1.442695
        %v2120 = vpow.pop %v2119
        %v2121 = vadd.f32 %v2118, 1.0
        %v2122 = vadd.f32 %v2120, 1.0
        %v2123 = vrcp.pop %v2121
        %v2124 = vmul.f32 1.0, %v2123
        %v2125 = vrcp.pop %v2122
        %v2126 = vmul.f32 1.0, %v2125
        %v2127 = vtanh.pop %v2114
        %v2128 = vmul.f32 %v2124, %v1850
        %2130 = vrot.lane.b32.xlu0 %v2127, 64
        %v2131 = vpop.permute.xlu0 %2130
        %v2133 = vmul.f32 %v2124, %v2131
        %2135 = vrot.lane.b32.xlu0 %v2133, 64
        %v2136 = vpop.permute.xlu0 %2135
        %v2138 = vadd.f32 %v2128, %v2136
        %v2139 = vtanh.pop %v2138
        %2141 = vrot.lane.b32.xlu0 %v2139, 64
        %v2142 = vpop.permute.xlu0 %2141
        %v2144 = vmul.f32 %v2126, %v2142
        %2146 = vrot.lane.b32.xlu0 %v1962, 64
        %v2147 = vpop.permute.xlu0 %2146
        %v2149 = vsel %vm515, %v2144, %v2147
        %2150 = vmatprep.subr.mxu0 %v455
        %2151 = vmatpush1.msra.mxu0 %v454
        %2152 = vmatprep.subr.mxu0 %v457
        %2153 = vmatpush1.msra.mxu0 %v456
        %2154 = vmatprep.subr.mxu0 %v459
        %2155 = vmatpush1.msra.mxu0 %v458
        %2156 = vmatprep.subr.mxu0 %v461
        %2157 = vmatpush1.msra.mxu0 %v460
        %2158 = vmatprep.subr.mxu0 %v463
        %2159 = vmatpush1.msra.mxu0 %v462
        %2160 = vmatprep.subr.mxu0 %v465
        %2161 = vmatpush1.msra.mxu0 %v464
        %2162 = vmatprep.subr.mxu0 %v467
        %2163 = vmatpush1.msra.mxu0 %v466
        %2164 = vmatprep.subr.mxu0 %v469
        %2165 = vmatpush1.msra.mxu0 %v468
        %2166 = vmatprep.subr.mxu0 %v471
        %2167 = vmatpush1.msra.mxu0 %v470
        %2168 = vmatprep.subr.mxu0 %v473
        %2169 = vmatpush1.msra.mxu0 %v472
        %2170 = vmatprep.subr.mxu0 %v475
        %2171 = vmatpush1.msra.mxu0 %v474
        %2172 = vmatprep.subr.mxu0 %v477
        %2173 = vmatpush1.msra.mxu0 %v476
        %2174 = vmatprep.subr.mxu0 %v479
        %2175 = vmatpush1.msra.mxu0 %v478
        %2176 = vmatprep.subr.mxu0 %v481
        %2177 = vmatpush1.msra.mxu0 %v480
        %2178 = vmatprep.subr.mxu0 %v483
        %2179 = vmatpush1.msra.mxu0 %v482
        %2180 = vmatprep.subr.mxu0 %v485
        %2181 = vmatpush1.msra.mxu0 %v484
        %2182 = vmatprep.subr.mxu0 0.0
        %2183 = vmatpush1.msra.mxu0 0.0
        %2184 = vmatprep.subr.mxu0 0.0
        %2185 = vmatpush1.msra.mxu0 0.0
        %2186 = vmatprep.subr.mxu0 0.0
        %2187 = vmatpush1.msra.mxu0 0.0
        %2188 = vmatprep.subr.mxu0 0.0
        %2189 = vmatpush1.msra.mxu0 0.0
        %2190 = vmatprep.subr.mxu0 0.0
        %2191 = vmatpush1.msra.mxu0 0.0
        %2192 = vmatprep.subr.mxu0 0.0
        %2193 = vmatpush1.msra.mxu0 0.0
        %2194 = vmatprep.subr.mxu0 0.0
        %2195 = vmatpush1.msra.mxu0 0.0
        %2196 = vmatprep.subr.mxu0 0.0
        %2197 = vmatpush1.msra.mxu0 0.0
        %2198 = vmatprep.subr.mxu0 0.0
        %2199 = vmatpush1.msra.mxu0 0.0
        %2200 = vmatprep.subr.mxu0 0.0
        %2201 = vmatpush1.msra.mxu0 0.0
        %2202 = vmatprep.subr.mxu0 0.0
        %2203 = vmatpush1.msra.mxu0 0.0
        %2204 = vmatprep.subr.mxu0 0.0
        %2205 = vmatpush1.msra.mxu0 0.0
        %2206 = vmatprep.subr.mxu0 0.0
        %2207 = vmatpush1.msra.mxu0 0.0
        %2208 = vmatprep.subr.mxu0 0.0
        %2209 = vmatpush1.msra.mxu0 0.0
        %2210 = vmatprep.subr.mxu0 0.0
        %2211 = vmatpush1.msra.mxu0 0.0
        %2212 = vmatprep.subr.mxu0 0.0
        %2213 = vmatpush1.msra.mxu0 0.0
        %2214 = vmatprep.mubr.f32.mxu0 0.0
        %2215 = vmatmul.mubr.f32.gmra.mrb[0].mxu0 %v2149
        %v2216 = vpop.f32.mrb[0].mxu0
        %v2217 = vadd.f32 %v503, %v2216
        %v2218 = vpop.f32.mrb[0].mxu0
        %v2219 = vadd.f32 %v507, %v2218
        %2220 = vdwg.mxu0
        %v2221 = vxor.u32 %v2217, 2147483648
        %v2222 = vxor.u32 %v2219, 2147483648
        %v2223 = vmul.f32 %v2221, 1.442695
        %v2224 = vpow.pop %v2223
        %v2225 = vmul.f32 %v2222, 1.442695
        %v2226 = vpow.pop %v2225
        %v2227 = vadd.f32 %v2224, 1.0
        %v2228 = vadd.f32 %v2226, 1.0
        %v2229 = vrcp.pop %v2227
        %v2230 = vmul.f32 1.0, %v2229
        %v2231 = vrcp.pop %v2228
        %v2232 = vmul.f32 1.0, %v2231
        %v2233 = vtanh.pop %v2219
        %v2234 = vmul.f32 %v2230, %v1956
        %2236 = vrot.lane.b32.xlu0 %v2233, 64
        %v2237 = vpop.permute.xlu0 %2236
        %v2239 = vmul.f32 %v2230, %v2237
        %2241 = vrot.lane.b32.xlu0 %v2239, 64
        %v2242 = vpop.permute.xlu0 %2241
        %v2244 = vadd.f32 %v2234, %v2242
        %v2245 = vtanh.pop %v2244
        %2247 = vrot.lane.b32.xlu0 %v2245, 64
        %v2248 = vpop.permute.xlu0 %2247
        %v2250 = vmul.f32 %v2232, %v2248
        %s2251 = scalar_lea.vmem %s370, 48 [#allocation6]
        %v2252 = vld [vmem:[%s2251] sm:$0xff]
        %v2254 = vsel %vm515, %v2144, 0
        %2256 = vmatprep.subr.mxu0 %v439
        %2257 = vmatpush1.msra.mxu0 %v438
        %2258 = vmatprep.subr.mxu0 %v441
        %2259 = vmatpush1.msra.mxu0 %v440
        %2260 = vmatprep.subr.mxu0 %v443
        %2261 = vmatpush1.msra.mxu0 %v442
        %2262 = vmatprep.subr.mxu0 %v445
        %2263 = vmatpush1.msra.mxu0 %v444
        %2264 = vmatprep.subr.mxu0 %v447
        %2265 = vmatpush1.msra.mxu0 %v446
        %2266 = vmatprep.subr.mxu0 %v449
        %2267 = vmatpush1.msra.mxu0 %v448
        %2268 = vmatprep.subr.mxu0 %v451
        %2269 = vmatpush1.msra.mxu0 %v450
        %2270 = vmatprep.subr.mxu0 %v453
        %2271 = vmatpush1.msra.mxu0 %v452
        %2272 = vmatprep.subr.mxu0 0.0
        %2273 = vmatpush1.msra.mxu0 0.0
        %2274 = vmatprep.subr.mxu0 0.0
        %2275 = vmatpush1.msra.mxu0 0.0
        %2276 = vmatprep.subr.mxu0 0.0
        %2277 = vmatpush1.msra.mxu0 0.0
        %2278 = vmatprep.subr.mxu0 0.0
        %2279 = vmatpush1.msra.mxu0 0.0
        %2280 = vmatprep.subr.mxu0 0.0
        %2281 = vmatpush1.msra.mxu0 0.0
        %2282 = vmatprep.subr.mxu0 0.0
        %2283 = vmatpush1.msra.mxu0 0.0
        %2284 = vmatprep.subr.mxu0 0.0
        %2285 = vmatpush1.msra.mxu0 0.0
        %2286 = vmatprep.subr.mxu0 0.0
        %2287 = vmatpush1.msra.mxu0 0.0
        %2288 = vmatprep.subr.mxu0 0.0
        %2289 = vmatpush1.msra.mxu0 0.0
        %2290 = vmatprep.subr.mxu0 0.0
        %2291 = vmatpush1.msra.mxu0 0.0
        %2292 = vmatprep.subr.mxu0 0.0
        %2293 = vmatpush1.msra.mxu0 0.0
        %2294 = vmatprep.subr.mxu0 0.0
        %2295 = vmatpush1.msra.mxu0 0.0
        %2296 = vmatprep.subr.mxu0 0.0
        %2297 = vmatpush1.msra.mxu0 0.0
        %2298 = vmatprep.subr.mxu0 0.0
        %2299 = vmatpush1.msra.mxu0 0.0
        %2300 = vmatprep.subr.mxu0 0.0
        %2301 = vmatpush1.msra.mxu0 0.0
        %2302 = vmatprep.subr.mxu0 0.0
        %2303 = vmatpush1.msra.mxu0 0.0
        %2304 = vmatprep.subr.mxu0 0.0
        %2305 = vmatpush1.msra.mxu0 0.0
        %2306 = vmatprep.subr.mxu0 0.0
        %2307 = vmatpush1.msra.mxu0 0.0
        %2308 = vmatprep.subr.mxu0 0.0
        %2309 = vmatpush1.msra.mxu0 0.0
        %2310 = vmatprep.subr.mxu0 0.0
        %2311 = vmatpush1.msra.mxu0 0.0
        %2312 = vmatprep.subr.mxu0 0.0
        %2313 = vmatpush1.msra.mxu0 0.0
        %2314 = vmatprep.subr.mxu0 0.0
        %2315 = vmatpush1.msra.mxu0 0.0
        %2316 = vmatprep.subr.mxu0 0.0
        %2317 = vmatpush1.msra.mxu0 0.0
        %2318 = vmatprep.subr.mxu0 0.0
        %2319 = vmatpush1.msra.mxu0 0.0
        %2320 = vmatprep.mubr.f32.mxu0 0.0
        %2321 = vmatmul.mubr.f32.gmra.mrb[0].mxu0 %v2254
        %v2322 = vpop.f32.mrb[0].mxu0
        %v2323 = vadd.f32 0.0, %v2322
        %v2324 = vpop.f32.mrb[0].mxu0
        %v2325 = vadd.f32 0.0, %v2324
        %2326 = vdwg.mxu0
        %v2328 = vsel %vm590, %v2252, 0
        %2330 = vmatprep.subr.mxu0 %v437
        %2331 = vmatpush1.msra.mxu0 %v436
        %2332 = vmatprep.subr.mxu0 0.0
        %2333 = vmatpush1.msra.mxu0 0.0
        %2334 = vmatprep.subr.mxu0 0.0
        %2335 = vmatpush1.msra.mxu0 0.0
        %2336 = vmatprep.subr.mxu0 0.0
        %2337 = vmatpush1.msra.mxu0 0.0
        %2338 = vmatprep.subr.mxu0 0.0
        %2339 = vmatpush1.msra.mxu0 0.0
        %2340 = vmatprep.subr.mxu0 0.0
        %2341 = vmatpush1.msra.mxu0 0.0
        %2342 = vmatprep.subr.mxu0 0.0
        %2343 = vmatpush1.msra.mxu0 0.0
        %2344 = vmatprep.subr.mxu0 0.0
        %2345 = vmatpush1.msra.mxu0 0.0
        %2346 = vmatprep.subr.mxu0 0.0
        %2347 = vmatpush1.msra.mxu0 0.0
        %2348 = vmatprep.subr.mxu0 0.0
        %2349 = vmatpush1.msra.mxu0 0.0
        %2350 = vmatprep.subr.mxu0 0.0
        %2351 = vmatpush1.msra.mxu0 0.0
        %2352 = vmatprep.subr.mxu0 0.0
        %2353 = vmatpush1.msra.mxu0 0.0
        %2354 = vmatprep.subr.mxu0 0.0
        %2355 = vmatpush1.msra.mxu0 0.0
        %2356 = vmatprep.subr.mxu0 0.0
        %2357 = vmatpush1.msra.mxu0 0.0
        %2358 = vmatprep.subr.mxu0 0.0
        %2359 = vmatpush1.msra.mxu0 0.0
        %2360 = vmatprep.subr.mxu0 0.0
        %2361 = vmatpush1.msra.mxu0 0.0
        %2362 = vmatprep.subr.mxu0 0.0
        %2363 = vmatpush1.msra.mxu0 0.0
        %2364 = vmatprep.subr.mxu0 0.0
        %2365 = vmatpush1.msra.mxu0 0.0
        %2366 = vmatprep.subr.mxu0 0.0
        %2367 = vmatpush1.msra.mxu0 0.0
        %2368 = vmatprep.subr.mxu0 0.0
        %2369 = vmatpush1.msra.mxu0 0.0
        %2370 = vmatprep.subr.mxu0 0.0
        %2371 = vmatpush1.msra.mxu0 0.0
        %2372 = vmatprep.subr.mxu0 0.0
        %2373 = vmatpush1.msra.mxu0 0.0
        %2374 = vmatprep.subr.mxu0 0.0
        %2375 = vmatpush1.msra.mxu0 0.0
        %2376 = vmatprep.subr.mxu0 0.0
        %2377 = vmatpush1.msra.mxu0 0.0
        %2378 = vmatprep.subr.mxu0 0.0
        %2379 = vmatpush1.msra.mxu0 0.0
        %2380 = vmatprep.subr.mxu0 0.0
        %2381 = vmatpush1.msra.mxu0 0.0
        %2382 = vmatprep.subr.mxu0 0.0
        %2383 = vmatpush1.msra.mxu0 0.0
        %2384 = vmatprep.subr.mxu0 0.0
        %2385 = vmatpush1.msra.mxu0 0.0
        %2386 = vmatprep.subr.mxu0 0.0
        %2387 = vmatpush1.msra.mxu0 0.0
        %2388 = vmatprep.subr.mxu0 0.0
        %2389 = vmatpush1.msra.mxu0 0.0
        %2390 = vmatprep.subr.mxu0 0.0
        %2391 = vmatpush1.msra.mxu0 0.0
        %2392 = vmatprep.subr.mxu0 0.0
        %2393 = vmatpush1.msra.mxu0 0.0
        %2394 = vmatprep.mubr.f32.mxu0 0.0
        %2395 = vmatmul.mubr.f32.gmra.mrb[0].mxu0 %v2328
        %v2396 = vpop.f32.mrb[0].mxu0
        %v2397 = vadd.f32 %v2323, %v2396
        %v2398 = vpop.f32.mrb[0].mxu0
        %v2399 = vadd.f32 %v2325, %v2398
        %2400 = vdwg.mxu0
        %v2401 = vadd.f32 %v2397, %v491
        %v2402 = vadd.f32 %v2399, %v495
        %v2403 = vxor.u32 %v2401, 2147483648
        %v2404 = vxor.u32 %v2402, 2147483648
        %v2405 = vmul.f32 %v2403, 1.442695
        %v2406 = vpow.pop %v2405
        %v2407 = vmul.f32 %v2404, 1.442695
        %v2408 = vpow.pop %v2407
        %v2409 = vadd.f32 %v2406, 1.0
        %v2410 = vadd.f32 %v2408, 1.0
        %v2411 = vrcp.pop %v2409
        %v2412 = vmul.f32 1.0, %v2411
        %v2413 = vrcp.pop %v2410
        %v2414 = vmul.f32 1.0, %v2413
        %v2415 = vtanh.pop %v2402
        %v2416 = vmul.f32 %v2412, %v2138
        %2418 = vrot.lane.b32.xlu0 %v2415, 64
        %v2419 = vpop.permute.xlu0 %2418
        %v2421 = vmul.f32 %v2412, %v2419
        %2423 = vrot.lane.b32.xlu0 %v2421, 64
        %v2424 = vpop.permute.xlu0 %2423
        %v2426 = vadd.f32 %v2416, %v2424
        %v2427 = vtanh.pop %v2426
        %2429 = vrot.lane.b32.xlu0 %v2427, 64
        %v2430 = vpop.permute.xlu0 %2429
        %v2432 = vmul.f32 %v2414, %v2430
        %2434 = vrot.lane.b32.xlu0 %v2250, 64
        %v2435 = vpop.permute.xlu0 %2434
        %v2437 = vsel %vm515, %v2432, %v2435
        %2438 = vmatprep.subr.mxu0 %v455
        %2439 = vmatpush1.msra.mxu0 %v454
        %2440 = vmatprep.subr.mxu0 %v457
        %2441 = vmatpush1.msra.mxu0 %v456
        %2442 = vmatprep.subr.mxu0 %v459
        %2443 = vmatpush1.msra.mxu0 %v458
        %2444 = vmatprep.subr.mxu0 %v461
        %2445 = vmatpush1.msra.mxu0 %v460
        %2446 = vmatprep.subr.mxu0 %v463
        %2447 = vmatpush1.msra.mxu0 %v462
        %2448 = vmatprep.subr.mxu0 %v465
        %2449 = vmatpush1.msra.mxu0 %v464
        %2450 = vmatprep.subr.mxu0 %v467
        %2451 = vmatpush1.msra.mxu0 %v466
        %2452 = vmatprep.subr.mxu0 %v469
        %2453 = vmatpush1.msra.mxu0 %v468
        %2454 = vmatprep.subr.mxu0 %v471
        %2455 = vmatpush1.msra.mxu0 %v470
        %2456 = vmatprep.subr.mxu0 %v473
        %2457 = vmatpush1.msra.mxu0 %v472
        %2458 = vmatprep.subr.mxu0 %v475
        %2459 = vmatpush1.msra.mxu0 %v474
        %2460 = vmatprep.subr.mxu0 %v477
        %2461 = vmatpush1.msra.mxu0 %v476
        %2462 = vmatprep.subr.mxu0 %v479
        %2463 = vmatpush1.msra.mxu0 %v478
        %2464 = vmatprep.subr.mxu0 %v481
        %2465 = vmatpush1.msra.mxu0 %v480
        %2466 = vmatprep.subr.mxu0 %v483
        %2467 = vmatpush1.msra.mxu0 %v482
        %2468 = vmatprep.subr.mxu0 %v485
        %2469 = vmatpush1.msra.mxu0 %v484
        %2470 = vmatprep.subr.mxu0 0.0
        %2471 = vmatpush1.msra.mxu0 0.0
        %2472 = vmatprep.subr.mxu0 0.0
        %2473 = vmatpush1.msra.mxu0 0.0
        %2474 = vmatprep.subr.mxu0 0.0
        %2475 = vmatpush1.msra.mxu0 0.0
        %2476 = vmatprep.subr.mxu0 0.0
        %2477 = vmatpush1.msra.mxu0 0.0
        %2478 = vmatprep.subr.mxu0 0.0
        %2479 = vmatpush1.msra.mxu0 0.0
        %2480 = vmatprep.subr.mxu0 0.0
        %2481 = vmatpush1.msra.mxu0 0.0
        %2482 = vmatprep.subr.mxu0 0.0
        %2483 = vmatpush1.msra.mxu0 0.0
        %2484 = vmatprep.subr.mxu0 0.0
        %2485 = vmatpush1.msra.mxu0 0.0
        %2486 = vmatprep.subr.mxu0 0.0
        %2487 = vmatpush1.msra.mxu0 0.0
        %2488 = vmatprep.subr.mxu0 0.0
        %2489 = vmatpush1.msra.mxu0 0.0
        %2490 = vmatprep.subr.mxu0 0.0
        %2491 = vmatpush1.msra.mxu0 0.0
        %2492 = vmatprep.subr.mxu0 0.0
        %2493 = vmatpush1.msra.mxu0 0.0
        %2494 = vmatprep.subr.mxu0 0.0
        %2495 = vmatpush1.msra.mxu0 0.0
        %2496 = vmatprep.subr.mxu0 0.0
        %2497 = vmatpush1.msra.mxu0 0.0
        %2498 = vmatprep.subr.mxu0 0.0
        %2499 = vmatpush1.msra.mxu0 0.0
        %2500 = vmatprep.subr.mxu0 0.0
        %2501 = vmatpush1.msra.mxu0 0.0
        %2502 = vmatprep.mubr.f32.mxu0 0.0
        %2503 = vmatmul.mubr.f32.gmra.mrb[0].mxu0 %v2437
        %v2504 = vpop.f32.mrb[0].mxu0
        %v2505 = vadd.f32 %v503, %v2504
        %v2506 = vpop.f32.mrb[0].mxu0
        %v2507 = vadd.f32 %v507, %v2506
        %2508 = vdwg.mxu0
        %v2509 = vxor.u32 %v2505, 2147483648
        %v2510 = vxor.u32 %v2507, 2147483648
        %v2511 = vmul.f32 %v2509, 1.442695
        %v2512 = vpow.pop %v2511
        %v2513 = vmul.f32 %v2510, 1.442695
        %v2514 = vpow.pop %v2513
        %v2515 = vadd.f32 %v2512, 1.0
        %v2516 = vadd.f32 %v2514, 1.0
        %v2517 = vrcp.pop %v2515
        %v2518 = vmul.f32 1.0, %v2517
        %v2519 = vrcp.pop %v2516
        %v2520 = vmul.f32 1.0, %v2519
        %v2521 = vtanh.pop %v2507
        %v2522 = vmul.f32 %v2518, %v2244
        %2524 = vrot.lane.b32.xlu0 %v2521, 64
        %v2525 = vpop.permute.xlu0 %2524
        %v2527 = vmul.f32 %v2518, %v2525
        %2529 = vrot.lane.b32.xlu0 %v2527, 64
        %v2530 = vpop.permute.xlu0 %2529
        %v2532 = vadd.f32 %v2522, %v2530
        %v2533 = vtanh.pop %v2532
        %2535 = vrot.lane.b32.xlu0 %v2533, 64
        %v2536 = vpop.permute.xlu0 %2535
        %v2538 = vmul.f32 %v2520, %v2536
        %s2539 = scalar_lea.vmem %s370, 56 [#allocation6]
        %v2540 = vld [vmem:[%s2539] sm:$0xff]
        %v2542 = vsel %vm515, %v2432, 0
        %2544 = vmatprep.subr.mxu0 %v439
        %2545 = vmatpush1.msra.mxu0 %v438
        %2546 = vmatprep.subr.mxu0 %v441
        %2547 = vmatpush1.msra.mxu0 %v440
        %2548 = vmatprep.subr.mxu0 %v443
        %2549 = vmatpush1.msra.mxu0 %v442
        %2550 = vmatprep.subr.mxu0 %v445
        %2551 = vmatpush1.msra.mxu0 %v444
        %2552 = vmatprep.subr.mxu0 %v447
        %2553 = vmatpush1.msra.mxu0 %v446
        %2554 = vmatprep.subr.mxu0 %v449
        %2555 = vmatpush1.msra.mxu0 %v448
        %2556 = vmatprep.subr.mxu0 %v451
        %2557 = vmatpush1.msra.mxu0 %v450
        %2558 = vmatprep.subr.mxu0 %v453
        %2559 = vmatpush1.msra.mxu0 %v452
        %2560 = vmatprep.subr.mxu0 0.0
        %2561 = vmatpush1.msra.mxu0 0.0
        %2562 = vmatprep.subr.mxu0 0.0
        %2563 = vmatpush1.msra.mxu0 0.0
        %2564 = vmatprep.subr.mxu0 0.0
        %2565 = vmatpush1.msra.mxu0 0.0
        %2566 = vmatprep.subr.mxu0 0.0
        %2567 = vmatpush1.msra.mxu0 0.0
        %2568 = vmatprep.subr.mxu0 0.0
        %2569 = vmatpush1.msra.mxu0 0.0
        %2570 = vmatprep.subr.mxu0 0.0
        %2571 = vmatpush1.msra.mxu0 0.0
        %2572 = vmatprep.subr.mxu0 0.0
        %2573 = vmatpush1.msra.mxu0 0.0
        %2574 = vmatprep.subr.mxu0 0.0
        %2575 = vmatpush1.msra.mxu0 0.0
        %2576 = vmatprep.subr.mxu0 0.0
        %2577 = vmatpush1.msra.mxu0 0.0
        %2578 = vmatprep.subr.mxu0 0.0
        %2579 = vmatpush1.msra.mxu0 0.0
        %2580 = vmatprep.subr.mxu0 0.0
        %2581 = vmatpush1.msra.mxu0 0.0
        %2582 = vmatprep.subr.mxu0 0.0
        %2583 = vmatpush1.msra.mxu0 0.0
        %2584 = vmatprep.subr.mxu0 0.0
        %2585 = vmatpush1.msra.mxu0 0.0
        %2586 = vmatprep.subr.mxu0 0.0
        %2587 = vmatpush1.msra.mxu0 0.0
        %2588 = vmatprep.subr.mxu0 0.0
        %2589 = vmatpush1.msra.mxu0 0.0
        %2590 = vmatprep.subr.mxu0 0.0
        %2591 = vmatpush1.msra.mxu0 0.0
        %2592 = vmatprep.subr.mxu0 0.0
        %2593 = vmatpush1.msra.mxu0 0.0
        %2594 = vmatprep.subr.mxu0 0.0
        %2595 = vmatpush1.msra.mxu0 0.0
        %2596 = vmatprep.subr.mxu0 0.0
        %2597 = vmatpush1.msra.mxu0 0.0
        %2598 = vmatprep.subr.mxu0 0.0
        %2599 = vmatpush1.msra.mxu0 0.0
        %2600 = vmatprep.subr.mxu0 0.0
        %2601 = vmatpush1.msra.mxu0 0.0
        %2602 = vmatprep.subr.mxu0 0.0
        %2603 = vmatpush1.msra.mxu0 0.0
        %2604 = vmatprep.subr.mxu0 0.0
        %2605 = vmatpush1.msra.mxu0 0.0
        %2606 = vmatprep.subr.mxu0 0.0
        %2607 = vmatpush1.msra.mxu0 0.0
        %2608 = vmatprep.mubr.f32.mxu0 0.0
        %2609 = vmatmul.mubr.f32.gmra.mrb[0].mxu0 %v2542
        %v2610 = vpop.f32.mrb[0].mxu0
        %v2611 = vadd.f32 0.0, %v2610
        %v2612 = vpop.f32.mrb[0].mxu0
        %v2613 = vadd.f32 0.0, %v2612
        %2614 = vdwg.mxu0
        %v2616 = vsel %vm590, %v2540, 0
        %2618 = vmatprep.subr.mxu0 %v437
        %2619 = vmatpush1.msra.mxu0 %v436
        %2620 = vmatprep.subr.mxu0 0.0
        %2621 = vmatpush1.msra.mxu0 0.0
        %2622 = vmatprep.subr.mxu0 0.0
        %2623 = vmatpush1.msra.mxu0 0.0
        %2624 = vmatprep.subr.mxu0 0.0
        %2625 = vmatpush1.msra.mxu0 0.0
        %2626 = vmatprep.subr.mxu0 0.0
        %2627 = vmatpush1.msra.mxu0 0.0
        %2628 = vmatprep.subr.mxu0 0.0
        %2629 = vmatpush1.msra.mxu0 0.0
        %2630 = vmatprep.subr.mxu0 0.0
        %2631 = vmatpush1.msra.mxu0 0.0
        %2632 = vmatprep.subr.mxu0 0.0
        %2633 = vmatpush1.msra.mxu0 0.0
        %2634 = vmatprep.subr.mxu0 0.0
        %2635 = vmatpush1.msra.mxu0 0.0
        %2636 = vmatprep.subr.mxu0 0.0
        %2637 = vmatpush1.msra.mxu0 0.0
        %2638 = vmatprep.subr.mxu0 0.0
        %2639 = vmatpush1.msra.mxu0 0.0
        %2640 = vmatprep.subr.mxu0 0.0
        %2641 = vmatpush1.msra.mxu0 0.0
        %2642 = vmatprep.subr.mxu0 0.0
        %2643 = vmatpush1.msra.mxu0 0.0
        %2644 = vmatprep.subr.mxu0 0.0
        %2645 = vmatpush1.msra.mxu0 0.0
        %2646 = vmatprep.subr.mxu0 0.0
        %2647 = vmatpush1.msra.mxu0 0.0
        %2648 = vmatprep.subr.mxu0 0.0
        %2649 = vmatpush1.msra.mxu0 0.0
        %2650 = vmatprep.subr.mxu0 0.0
        %2651 = vmatpush1.msra.mxu0 0.0
        %2652 = vmatprep.subr.mxu0 0.0
        %2653 = vmatpush1.msra.mxu0 0.0
        %2654 = vmatprep.subr.mxu0 0.0
        %2655 = vmatpush1.msra.mxu0 0.0
        %2656 = vmatprep.subr.mxu0 0.0
        %2657 = vmatpush1.msra.mxu0 0.0
        %2658 = vmatprep.subr.mxu0 0.0
        %2659 = vmatpush1.msra.mxu0 0.0
        %2660 = vmatprep.subr.mxu0 0.0
        %2661 = vmatpush1.msra.mxu0 0.0
        %2662 = vmatprep.subr.mxu0 0.0
        %2663 = vmatpush1.msra.mxu0 0.0
        %2664 = vmatprep.subr.mxu0 0.0
        %2665 = vmatpush1.msra.mxu0 0.0
        %2666 = vmatprep.subr.mxu0 0.0
        %2667 = vmatpush1.msra.mxu0 0.0
        %2668 = vmatprep.subr.mxu0 0.0
        %2669 = vmatpush1.msra.mxu0 0.0
        %2670 = vmatprep.subr.mxu0 0.0
        %2671 = vmatpush1.msra.mxu0 0.0
        %2672 = vmatprep.subr.mxu0 0.0
        %2673 = vmatpush1.msra.mxu0 0.0
        %2674 = vmatprep.subr.mxu0 0.0
        %2675 = vmatpush1.msra.mxu0 0.0
        %2676 = vmatprep.subr.mxu0 0.0
        %2677 = vmatpush1.msra.mxu0 0.0
        %2678 = vmatprep.subr.mxu0 0.0
        %2679 = vmatpush1.msra.mxu0 0.0
        %2680 = vmatprep.subr.mxu0 0.0
        %2681 = vmatpush1.msra.mxu0 0.0
        %2682 = vmatprep.mubr.f32.mxu0 0.0
        %2683 = vmatmul.mubr.f32.gmra.mrb[0].mxu0 %v2616
        %v2684 = vpop.f32.mrb[0].mxu0
        %v2685 = vadd.f32 %v2611, %v2684
        %v2686 = vpop.f32.mrb[0].mxu0
        %v2687 = vadd.f32 %v2613, %v2686
        %2688 = vdwg.mxu0
        %v2689 = vadd.f32 %v2685, %v491
        %v2690 = vadd.f32 %v2687, %v495
        %v2691 = vxor.u32 %v2689, 2147483648
        %v2692 = vxor.u32 %v2690, 2147483648
        %v2693 = vmul.f32 %v2691, 1.442695
        %v2694 = vpow.pop %v2693
        %v2695 = vmul.f32 %v2692, 1.442695
        %v2696 = vpow.pop %v2695
        %v2697 = vadd.f32 %v2694, 1.0
        %v2698 = vadd.f32 %v2696, 1.0
        %v2699 = vrcp.pop %v2697
        %v2700 = vmul.f32 1.0, %v2699
        %v2701 = vrcp.pop %v2698
        %v2702 = vmul.f32 1.0, %v2701
        %v2703 = vtanh.pop %v2690
        %v2704 = vmul.f32 %v2700, %v2426
        %2706 = vrot.lane.b32.xlu0 %v2703, 64
        %v2707 = vpop.permute.xlu0 %2706
        %v2709 = vmul.f32 %v2700, %v2707
        %2711 = vrot.lane.b32.xlu0 %v2709, 64
        %v2712 = vpop.permute.xlu0 %2711
        %v2714 = vadd.f32 %v2704, %v2712
        %v2715 = vtanh.pop %v2714
        %2717 = vrot.lane.b32.xlu0 %v2715, 64
        %v2718 = vpop.permute.xlu0 %2717
        %v2720 = vmul.f32 %v2702, %v2718
        %2722 = vrot.lane.b32.xlu0 %v2538, 64
        %v2723 = vpop.permute.xlu0 %2722
        %v2725 = vsel %vm515, %v2720, %v2723
        %2726 = vmatprep.subr.mxu0 %v455
        %2727 = vmatpush1.msra.mxu0 %v454
        %2728 = vmatprep.subr.mxu0 %v457
        %2729 = vmatpush1.msra.mxu0 %v456
        %2730 = vmatprep.subr.mxu0 %v459
        %2731 = vmatpush1.msra.mxu0 %v458
        %2732 = vmatprep.subr.mxu0 %v461
        %2733 = vmatpush1.msra.mxu0 %v460
        %2734 = vmatprep.subr.mxu0 %v463
        %2735 = vmatpush1.msra.mxu0 %v462
        %2736 = vmatprep.subr.mxu0 %v465
        %2737 = vmatpush1.msra.mxu0 %v464
        %2738 = vmatprep.subr.mxu0 %v467
        %2739 = vmatpush1.msra.mxu0 %v466
        %2740 = vmatprep.subr.mxu0 %v469
        %2741 = vmatpush1.msra.mxu0 %v468
        %2742 = vmatprep.subr.mxu0 %v471
        %2743 = vmatpush1.msra.mxu0 %v470
        %2744 = vmatprep.subr.mxu0 %v473
        %2745 = vmatpush1.msra.mxu0 %v472
        %2746 = vmatprep.subr.mxu0 %v475
        %2747 = vmatpush1.msra.mxu0 %v474
        %2748 = vmatprep.subr.mxu0 %v477
        %2749 = vmatpush1.msra.mxu0 %v476
        %2750 = vmatprep.subr.mxu0 %v479
        %2751 = vmatpush1.msra.mxu0 %v478
        %2752 = vmatprep.subr.mxu0 %v481
        %2753 = vmatpush1.msra.mxu0 %v480
        %2754 = vmatprep.subr.mxu0 %v483
        %2755 = vmatpush1.msra.mxu0 %v482
        %2756 = vmatprep.subr.mxu0 %v485
        %2757 = vmatpush1.msra.mxu0 %v484
        %2758 = vmatprep.subr.mxu0 0.0
        %2759 = vmatpush1.msra.mxu0 0.0
        %2760 = vmatprep.subr.mxu0 0.0
        %2761 = vmatpush1.msra.mxu0 0.0
        %2762 = vmatprep.subr.mxu0 0.0
        %2763 = vmatpush1.msra.mxu0 0.0
        %2764 = vmatprep.subr.mxu0 0.0
        %2765 = vmatpush1.msra.mxu0 0.0
        %2766 = vmatprep.subr.mxu0 0.0
        %2767 = vmatpush1.msra.mxu0 0.0
        %2768 = vmatprep.subr.mxu0 0.0
        %2769 = vmatpush1.msra.mxu0 0.0
        %2770 = vmatprep.subr.mxu0 0.0
        %2771 = vmatpush1.msra.mxu0 0.0
        %2772 = vmatprep.subr.mxu0 0.0
        %2773 = vmatpush1.msra.mxu0 0.0
        %2774 = vmatprep.subr.mxu0 0.0
        %2775 = vmatpush1.msra.mxu0 0.0
        %2776 = vmatprep.subr.mxu0 0.0
        %2777 = vmatpush1.msra.mxu0 0.0
        %2778 = vmatprep.subr.mxu0 0.0
        %2779 = vmatpush1.msra.mxu0 0.0
        %2780 = vmatprep.subr.mxu0 0.0
        %2781 = vmatpush1.msra.mxu0 0.0
        %2782 = vmatprep.subr.mxu0 0.0
        %2783 = vmatpush1.msra.mxu0 0.0
        %2784 = vmatprep.subr.mxu0 0.0
        %2785 = vmatpush1.msra.mxu0 0.0
        %2786 = vmatprep.subr.mxu0 0.0
        %2787 = vmatpush1.msra.mxu0 0.0
        %2788 = vmatprep.subr.mxu0 0.0
        %2789 = vmatpush1.msra.mxu0 0.0
        %2790 = vmatprep.mubr.f32.mxu0 0.0
        %2791 = vmatmul.mubr.f32.gmra.mrb[0].mxu0 %v2725
        %v2792 = vpop.f32.mrb[0].mxu0
        %v2793 = vadd.f32 %v503, %v2792
        %v2794 = vpop.f32.mrb[0].mxu0
        %v2795 = vadd.f32 %v507, %v2794
        %2796 = vdwg.mxu0
        %v2797 = vxor.u32 %v2793, 2147483648
        %v2798 = vxor.u32 %v2795, 2147483648
        %v2799 = vmul.f32 %v2797, 1.442695
        %v2800 = vpow.pop %v2799
        %v2801 = vmul.f32 %v2798, 1.442695
        %v2802 = vpow.pop %v2801
        %v2803 = vadd.f32 %v2800, 1.0
        %v2804 = vadd.f32 %v2802, 1.0
        %v2805 = vrcp.pop %v2803
        %v2806 = vmul.f32 1.0, %v2805
        %v2807 = vrcp.pop %v2804
        %v2808 = vmul.f32 1.0, %v2807
        %v2809 = vtanh.pop %v2795
        %v2810 = vmul.f32 %v2806, %v2532
        %2812 = vrot.lane.b32.xlu0 %v2809, 64
        %v2813 = vpop.permute.xlu0 %2812
        %v2815 = vmul.f32 %v2806, %v2813
        %2817 = vrot.lane.b32.xlu0 %v2815, 64
        %v2818 = vpop.permute.xlu0 %2817
        %v2820 = vadd.f32 %v2810, %v2818
        %v2821 = vtanh.pop %v2820
        %2823 = vrot.lane.b32.xlu0 %v2821, 64
        %v2824 = vpop.permute.xlu0 %2823
        %v2826 = vmul.f32 %v2808, %v2824
        %2827 = vst.msk [vmem:[#allocation2] sm:$0xff] %vm515, %v2720
        %2829 = vrot.lane.b32.xlu0 %v2714, 64
        %v2830 = vpop.permute.xlu0 %2829
        %2832 = vst.msk [vmem:[#allocation3] sm:$0xff] %vm515, %v2830
        %2833 = vst.msk [vmem:[#allocation4] sm:$0xff] %vm515, %v2826
        %2835 = vrot.lane.b32.xlu0 %v2820, 64
        %v2836 = vpop.permute.xlu0 %2835
        %2838 = vst.msk [vmem:[#allocation5] sm:$0xff] %vm515, %v2836
        %p2839 = scmp.eq.s32.totalorder %s32, 1
        // Predicated region
        $region89: #{lstm_forward.1} parent=51 // pred_check
          %p2840 = pneg %p2839
        $region90: #{lstm_forward.1} parent=51 // pred_check_branch
          %2842 = sbr.rel (%p2840) target = $region92
        $region91: #{lstm_forward.1} parent=51 // pred_region
          %v2843 = vld [vmem:[#allocation17] sm:$0xff]
          %v2844 = vld [vmem:[#allocation17 + $0x8] sm:$0xff]
          %v2845 = vld [vmem:[#allocation17 + $0x10] sm:$0xff]
          %v2846 = vld [vmem:[#allocation17 + $0x18] sm:$0xff]
          %v2847 = vld [vmem:[#allocation17 + $0x20] sm:$0xff]
          %v2848 = vld [vmem:[#allocation17 + $0x28] sm:$0xff]
          %v2849 = vld [vmem:[#allocation17 + $0x30] sm:$0xff]
          %v2850 = vld [vmem:[#allocation17 + $0x38] sm:$0xff]
          %v2851 = vld [vmem:[#allocation18] sm:$0x1]
          %v2853 = vlaneseq
          %v2854 = vshrl.u32 %v2853, 7
          %v2855 = vsub.s32 0, %v2854
          %v2856 = vrot.slane %v2851, %v2855
          %v2859 = vsel %vm515, %v2826, 0
          %2861 = vmatprep.subr.mxu0 0.0
          %2862 = vmatpush1.msra.mxu0 %v2843
          %2863 = vmatprep.subr.mxu0 0.0
          %2864 = vmatpush1.msra.mxu0 %v2844
          %2865 = vmatprep.subr.mxu0 0.0
          %2866 = vmatpush1.msra.mxu0 %v2845
          %2867 = vmatprep.subr.mxu0 0.0
          %2868 = vmatpush1.msra.mxu0 %v2846
          %2869 = vmatprep.subr.mxu0 0.0
          %2870 = vmatpush1.msra.mxu0 %v2847
          %2871 = vmatprep.subr.mxu0 0.0
          %2872 = vmatpush1.msra.mxu0 %v2848
          %2873 = vmatprep.subr.mxu0 0.0
          %2874 = vmatpush1.msra.mxu0 %v2849
          %2875 = vmatprep.subr.mxu0 0.0
          %2876 = vmatpush1.msra.mxu0 %v2850
          %2877 = vmatprep.subr.mxu0 0.0
          %2878 = vmatpush1.msra.mxu0 0.0
          %2879 = vmatprep.subr.mxu0 0.0
          %2880 = vmatpush1.msra.mxu0 0.0
          %2881 = vmatprep.subr.mxu0 0.0
          %2882 = vmatpush1.msra.mxu0 0.0
          %2883 = vmatprep.subr.mxu0 0.0
          %2884 = vmatpush1.msra.mxu0 0.0
          %2885 = vmatprep.subr.mxu0 0.0
          %2886 = vmatpush1.msra.mxu0 0.0
          %2887 = vmatprep.subr.mxu0 0.0
          %2888 = vmatpush1.msra.mxu0 0.0
          %2889 = vmatprep.subr.mxu0 0.0
          %2890 = vmatpush1.msra.mxu0 0.0
          %2891 = vmatprep.subr.mxu0 0.0
          %2892 = vmatpush1.msra.mxu0 0.0
          %2893 = vmatprep.subr.mxu0 0.0
          %2894 = vmatpush1.msra.mxu0 0.0
          %2895 = vmatprep.subr.mxu0 0.0
          %2896 = vmatpush1.msra.mxu0 0.0
          %2897 = vmatprep.subr.mxu0 0.0
          %2898 = vmatpush1.msra.mxu0 0.0
          %2899 = vmatprep.subr.mxu0 0.0
          %2900 = vmatpush1.msra.mxu0 0.0
          %2901 = vmatprep.subr.mxu0 0.0
          %2902 = vmatpush1.msra.mxu0 0.0
          %2903 = vmatprep.subr.mxu0 0.0
          %2904 = vmatpush1.msra.mxu0 0.0
          %2905 = vmatprep.subr.mxu0 0.0
          %2906 = vmatpush1.msra.mxu0 0.0
          %2907 = vmatprep.subr.mxu0 0.0
          %2908 = vmatpush1.msra.mxu0 0.0
          %2909 = vmatprep.subr.mxu0 0.0
          %2910 = vmatpush1.msra.mxu0 0.0
          %2911 = vmatprep.subr.mxu0 0.0
          %2912 = vmatpush1.msra.mxu0 0.0
          %2913 = vmatprep.subr.mxu0 0.0
          %2914 = vmatpush1.msra.mxu0 0.0
          %2915 = vmatprep.subr.mxu0 0.0
          %2916 = vmatpush1.msra.mxu0 0.0
          %2917 = vmatprep.subr.mxu0 0.0
          %2918 = vmatpush1.msra.mxu0 0.0
          %2919 = vmatprep.subr.mxu0 0.0
          %2920 = vmatpush1.msra.mxu0 0.0
          %2921 = vmatprep.subr.mxu0 0.0
          %2922 = vmatpush1.msra.mxu0 0.0
          %2923 = vmatprep.subr.mxu0 0.0
          %2924 = vmatpush1.msra.mxu0 0.0
          %2925 = vmatprep.mubr.f32.mxu0 0.0
          %2926 = vmatmul.mubr.f32.gmra.mrb[0].mxu0 %v2859
          %v2927 = vpop.f32.mrb[0].mxu0
          %v2928 = vadd.f32 %v2856, %v2927
          %v2929 = vpop.f32.mrb[0].mxu0
          %2930 = vdwg.mxu0
          %vm2931 = vcmask 31744
          %2932 = vst.msk [vmem:[#allocation20] sm:$0xff] %vm2931, %v2928
        $region92: #{lstm_forward.1} parent=51 // pred_fallthru
          _
        // Predicated region
        $region93: #{lstm_forward.1} parent=51 // pred_check
          %p2933 = pneg %p232
        $region94: #{lstm_forward.1} parent=51 // pred_check_branch
          %2935 = sbr.rel (%p2933) target = $region96
        $region95: #{lstm_forward.1} parent=51 // pred_region
          %s2937 = ssub.s32 128, 128
          %2938 = vsyncadd [#allocation8], %s2937
          %s2939 = smul.addr %s31, 128
          %s2940 = scalar_lea.hbm %s8, %s2939
          %s2942 = sshll.u32 [#allocation20], 4
          %s2943 = int_to_ptr.vmem [resolvable:$true] %s2942
          %2945 = dma.vmem_to_hbm [thread:$0]  %s2943, 128, %s2940, [#allocation8]
        $region96: #{lstm_forward.1} parent=51 // pred_fallthru
          _
        // Predicated region
        $region97: #{lstm_forward.1} parent=51 // pred_check
          %p2946 = pneg %p232
        $region98: #{lstm_forward.1} parent=51 // pred_check_branch
          %2948 = sbr.rel (%p2946) target = $region100
        $region99: #{lstm_forward.1} parent=51 // pred_region
          %2949 = dma.done [#allocation8], 128
        $region100: #{lstm_forward.1} parent=51 // pred_fallthru
          _
      $region52: #{lstm_forward.1} parent=5 // pred_fallthru
        _
      %p2950 = scmp.le.s32.totalorder 2, %s22
      // Predicated region
      $region101: #{lstm_forward.1} parent=5 // pred_check
        %p2951 = pneg %p2950
      $region102: #{lstm_forward.1} parent=5 // pred_check_branch
        %2953 = sbr.rel (%p2951) target = $region104
      $region103: #{lstm_forward.1} parent=5 // pred_region
        %s2954 = ssub.s32 %s22, 2
      $region104: #{lstm_forward.1} parent=5 // pred_fallthru
        _
    $region6: #{lstm_forward.1} parent=1 // loop_footer
      %s26 = sadd.s32 1, %s22
    $region7: #{lstm_forward.1} parent=1 // loop_footer_branch
      %21 = sbr.rel target = $region3
    $region8: #{lstm_forward.1} parent=1 // loop_exit
      _
    %2955 = vsyncpa [#allocation7], 1
    %s2956 = scalar_lea.sflag [#allocation7], 1
    %2957 = vsyncpa %s2956, 1
    %2958 = vsyncpa [#allocation10], 1
    %2959 = vsyncpa [#allocation13], 1
    %2960 = vsyncpa [#allocation16], 1
    %2961 = vsyncpa [#allocation19], 1
    %2962 = vsyncpa [#allocation8], 1
    %s2963 = scalar_lea.sflag [#allocation8], 1
    %2964 = vsyncpa %s2963, 1

</llo_original>
